<compile_context>
chip_gen: v6e
topology: v6e:2x2x1
jax: 0.10.0
libtpu: 0.0.40
codegen_flags: <defaults>
</compile_context>

<pallas_src>
import math
import functools

import jax
import jax.numpy as jnp
from jax import lax
from jax.experimental import pallas as pl
from jax.experimental.pallas import tpu as pltpu


def _layer_norm(x, gamma, beta, eps=1e-5):
    mu = jnp.mean(x, axis=-1, keepdims=True)
    var = jnp.mean((x - mu) ** 2, axis=-1, keepdims=True)
    return (x - mu) * lax.rsqrt(var + eps) * gamma + beta


def transformer_block_kernel(
    x_ref,            # (TB, S, E)   input tile
    in_wt_ref,        # (E, 3E)      packed q/k/v projection (pre-transposed, q pre-scaled)
    in_b_ref,         # (1, 3E)      f32, q part pre-scaled
    out_wt_ref,       # (E, E)       attention output projection (pre-transposed)
    out_b_ref,        # (1, E)
    g1_ref, b1_ref,   # (1, E)       norm1 gamma / beta
    ff1_wt_ref,       # (E, H)       pre-transposed
    ff1_b_ref,        # (1, H)
    ff2_wt_ref,       # (H, E)       pre-transposed
    ff2_b_ref,        # (1, E)
    g2_ref, b2_ref,   # (1, E)       norm2 gamma / beta
    o_ref,            # (TB, S, E)
    *,
    num_heads: int,
    compute_dtype,
    kv_chunk: int,
    h_chunk: int,
    fast_head_layout: bool,
):
    TB, S, E = x_ref.shape
    nh = num_heads
    dh = E // nh
    M = TB * S
    H = ff1_wt_ref.shape[1]

    # Load the tile once; one cast per consumer (no f32 round-trip).
    x_in = x_ref[...].reshape(M, E)
    x_f32 = x_in.astype(jnp.float32)       # residual / LayerNorm path
    x_cd = x_in.astype(compute_dtype)      # MXU operand (no-op when dtypes match)

    # ---- packed QKV projection: one MXU matmul over all TB*S rows (scale pre-folded) ----
    qkv = jnp.dot(x_cd, in_wt_ref[...],
                  preferred_element_type=jnp.float32) + in_b_ref[...]        # (M, 3E) f32

    # ---- head split: (M, 3E) -> q/k/v of shape (nh*TB, S, dh), batch order (h, tb) ----
    # Columns are ordered (3, nh, dh) (native torch in_proj layout).
    qkv_cd = qkv.astype(compute_dtype)
    if fast_head_layout:
        # Single whole-slab relayout (lane-layout aware) instead of 3*nh narrow slices.
        qkv_hmd = pltpu.einshape("mhd->hmd", qkv_cd.reshape(M, 3 * nh, dh))  # (3*nh, M, dh)
        qkv_hmd = qkv_hmd.reshape(3, nh * TB, S, dh)
        qh, kh, vh = qkv_hmd[0], qkv_hmd[1], qkv_hmd[2]
    else:
        # Conservative fallback (always lowers): per-head narrow slices + stack.
        def split(sel):
            heads = [qkv_cd[:, sel * E + h * dh: sel * E + (h + 1) * dh] for h in range(nh)]
            return jnp.stack(heads, axis=0).reshape(nh * TB, S, dh)
        qh, kh, vh = split(0), split(1), split(2)

    # ---- attention: online-softmax (flash) over static KV chunks ----
    BH = nh * TB
    n_kv = pl.cdiv(S, kv_chunk)
    m_i = jnp.full((BH, S, 1), -jnp.inf, jnp.float32)
    l_i = jnp.zeros((BH, S, 1), jnp.float32)
    acc = jnp.zeros((BH, S, dh), jnp.float32)
    for c in range(n_kv):                      # static trip count (S, kv_chunk are static)
        lo = c * kv_chunk
        hi = min(S, lo + kv_chunk)
        k_c = kh[:, lo:hi, :]
        v_c = vh[:, lo:hi, :]
        s = jnp.einsum("hqd,hkd->hqk", qh, k_c,
                       preferred_element_type=jnp.float32)                  # (BH, S, chunk)
        m_new = jnp.maximum(m_i, jnp.max(s, axis=-1, keepdims=True))
        alpha = jnp.exp(m_i - m_new)
        p = jnp.exp(s - m_new)                                              # f32 (exact on v5e)
        l_i = alpha * l_i + jnp.sum(p, axis=-1, keepdims=True)
        acc = alpha * acc + jnp.einsum("hqk,hkd->hqd", p.astype(compute_dtype), v_c,
                                       preferred_element_type=jnp.float32)
        m_i = m_new
    ctx = acc * pl.reciprocal(l_i, approx=True)                             # (BH, S, dh) f32
    ctx_cd = ctx.astype(compute_dtype)

    # ---- merge heads back: (nh*TB, S, dh) -> (M, E), single relayout ----
    if fast_head_layout:
        ctx2 = pltpu.einshape("hmd->mhd", ctx_cd.reshape(nh, M, dh)).reshape(M, E)
    else:
        ctx3 = ctx_cd.reshape(nh, M, dh)
        ctx2 = jnp.concatenate([ctx3[h] for h in range(nh)], axis=-1)       # (M, E)

    attn_out = jnp.dot(ctx2, out_wt_ref[...],
                       preferred_element_type=jnp.float32) + out_b_ref[...]  # (M, E) f32

    # ---- residual + LayerNorm 1 (f32); dropout is identity at inference ----
    h1 = _layer_norm(x_f32 + attn_out, g1_ref[...], b1_ref[...])

    # ---- feed-forward, chunked over H to bound the (M, H) live slab ----
    h1_cd = h1.astype(compute_dtype)
    ff = jnp.zeros((M, E), jnp.float32)
    n_h = pl.cdiv(H, h_chunk)
    for c in range(n_h):                        # static trip count
        lo = c * h_chunk
        hi = min(H, lo + h_chunk)
        z = jnp.dot(h1_cd, ff1_wt_ref[:, lo:hi],
                    preferred_element_type=jnp.float32) + ff1_b_ref[:, lo:hi]
        z = z * jax.nn.sigmoid(z)                                           # SiLU (f32)
        ff = ff + jnp.dot(z.astype(compute_dtype), ff2_wt_ref[lo:hi, :],
                          preferred_element_type=jnp.float32)
    ff = ff + ff2_b_ref[...]

    # ---- residual + LayerNorm 2, store ----
    out = _layer_norm(h1 + ff, g2_ref[...], b2_ref[...])
    o_ref[...] = out.reshape(TB, S, E).astype(o_ref.dtype)


def _vmem_capacity_bytes():
    try:
        return int(pltpu.get_tpu_info().vmem_capacity_bytes)
    except Exception:
        return 64 * 1024 * 1024   # conservative default (v7x per-TensorCore VMEM)


def _pick_batch_tile(B, S, E, H, nh, cd_bytes, kv_chunk, h_chunk, vmem_budget):
    """Largest TB dividing B whose per-step working set fits the VMEM budget,
    preferring grid >= 2 so both v7x TensorCores get work and I/O DMA overlaps compute."""
    def step_bytes(tb):
        m = tb * S
        ck = min(S, kv_chunk)
        ch = min(H, h_chunk)
        io = 2 * 2 * tb * S * E * 4                        # double-buffered in/out tiles
        qkv = m * 3 * E * (4 + cd_bytes)                   # f32 qkv + compute-dtype q/k/v heads
        scores = tb * nh * S * ck * (4 + cd_bytes)         # scores / probs per KV chunk
        attn = m * E * 4 + 2 * tb * nh * S * 4             # flash acc + m/l state
        ffn = m * ch * (4 + cd_bytes) + m * E * 4          # z chunk + ff accumulator
        misc = 3 * m * E * 4                               # x_f32, h1, attn_out, ctx
        return io + qkv + scores + attn + ffn + misc

    best = 1
    for tb in range(1, B + 1):
        if B % tb:
            continue
        if B >= 2 and B // tb < 2:                          # keep grid >= 2 when possible
            continue
        if step_bytes(tb) <= vmem_budget:
            best = tb
    return best


def transformer_block(x, params, num_heads, compute_dtype=jnp.bfloat16,
                      kv_chunk=512, h_chunk=2048):
    B, S, E = x.shape
    H = params["ff1_w"].shape[0]
    dh = E // num_heads
    scale = 1.0 / math.sqrt(dh)

    # ---- one-time host-side weight prep -------------------------------------------
    # Contraction axis leading; fold 1/sqrt(dh) into the q projection (exact);
    # MXU operands cast to compute_dtype, biases stay f32 (added to f32 accum).
    qkv_scale = jnp.concatenate([jnp.full((E,), scale, jnp.float32),
                                 jnp.ones((2 * E,), jnp.float32)])
    in_wt = (params["in_w"].T * qkv_scale[None, :]).astype(compute_dtype)   # (E, 3E)
    in_b = (params["in_b"] * qkv_scale[None, :]).astype(jnp.float32)        # (1, 3E)
    out_wt = params["out_w"].T.astype(compute_dtype)                         # (E, E)
    ff1_wt = params["ff1_w"].T.astype(compute_dtype)                         # (E, H)
    ff2_wt = params["ff2_w"].T.astype(compute_dtype)                         # (H, E)

    consts = (in_wt, in_b, out_wt, params["out_b"], params["g1"], params["b1"],
              ff1_wt, params["ff1_b"], ff2_wt, params["ff2_b"],
              params["g2"], params["b2"])

    cd_bytes = jnp.finfo(compute_dtype).bits // 8
    weight_bytes = sum(int(a.size) * a.dtype.itemsize for a in consts)

    vmem_cap = _vmem_capacity_bytes()                       # 128 MiB v5e/v6e, 64 MiB v7x
    vmem_limit = min(int(vmem_cap * 3 // 4), 100 * 1024 * 1024)
    budget = max(int(vmem_limit * 0.8) - 2 * weight_bytes, 4 * 1024 * 1024)

    TB = _pick_batch_tile(B, S, E, H, num_heads, cd_bytes, kv_chunk, h_chunk, budget)
    grid = (B // TB,)

    kernel_fn = functools.partial(
        transformer_block_kernel, num_heads=num_heads, compute_dtype=compute_dtype,
        kv_chunk=min(S, kv_chunk), h_chunk=min(H, h_chunk))

    def const_spec(arr, single_buffer):
        zeros = (0,) * arr.ndim
        if single_buffer:
            # Constant index_map -> block never changes; single buffer halves weight VMEM.
            return pl.BlockSpec(arr.shape, lambda b: zeros, pipeline_mode=pl.Buffered(1))
        return pl.BlockSpec(arr.shape, lambda b: zeros)

    def run(fast: bool):
        return pl.pallas_call(
            functools.partial(kernel_fn, fast_head_layout=fast),
            out_shape=jax.ShapeDtypeStruct((B, S, E), x.dtype),
            grid_spec=pltpu.PrefetchScalarGridSpec(
                num_scalar_prefetch=0,
                grid=grid,
                in_specs=[pl.BlockSpec((TB, S, E), lambda b: (b, 0, 0))]
                         + [const_spec(a, single_buffer=fast) for a in consts],
                out_specs=pl.BlockSpec((TB, S, E), lambda b: (b, 0, 0)),
            ),
            compiler_params=pltpu.CompilerParams(
                dimension_semantics=("parallel",),
                vmem_limit_bytes=vmem_limit,
            ),
        )(x, *consts)

    try:
        return run(True)
    except Exception:
        # TODO(synk): pltpu.einshape / pl.Buffered(1) not available on this jax version;
        # fall back to per-head slices + default double-buffering (known-lowerable path).
        return run(False)


def reference_block(x, params, num_heads):
    """Pure-JAX reference mirroring nn.MultiheadAttention + the PyTorch forward."""
    B, S, E = x.shape
    dh = E // num_heads
    qkv = x @ params["in_w"].T + params["in_b"][0]
    q, k, v = qkv[..., :E], qkv[..., E:2 * E], qkv[..., 2 * E:]

    def split_heads(t):
        return t.reshape(B, S, num_heads, dh).transpose(0, 2, 1, 3)

    q, k, v = split_heads(q), split_heads(k), split_heads(v)
    scores = jnp.einsum("bhqd,bhkd->bhqk", q, k) / math.sqrt(dh)
    p = jax.nn.softmax(scores, axis=-1)
    ctx = jnp.einsum("bhqk,bhkd->bhqd", p, v).transpose(0, 2, 1, 3).reshape(B, S, E)
    attn_out = ctx @ params["out_w"].T + params["out_b"][0]

    def ln(t, g, b):
        mu = jnp.mean(t, axis=-1, keepdims=True)
        var = jnp.mean((t - mu) ** 2, axis=-1, keepdims=True)
        return (t - mu) / jnp.sqrt(var + 1e-5) * g[0] + b[0]

    h1 = ln(x + attn_out, params["g1"], params["b1"])
    z = h1 @ params["ff1_w"].T + params["ff1_b"][0]
    z = z * jax.nn.sigmoid(z)
    ff_out = z @ params["ff2_w"].T + params["ff2_b"][0]
    return ln(h1 + ff_out, params["g2"], params["b2"])


if __name__ == "__main__":
    B, S = 2, 8
    embed_size = 32
    num_heads = 4
    forward_expansion = 4
    hidden = forward_expansion * embed_size

    key = jax.random.PRNGKey(0)
    ks = jax.random.split(key, 9)

    params = {
        "in_w":  0.05 * jax.random.normal(ks[0], (3 * embed_size, embed_size), jnp.float32),
        "in_b":  0.01 * jax.random.normal(ks[1], (1, 3 * embed_size), jnp.float32),
        "out_w": 0.05 * jax.random.normal(ks[2], (embed_size, embed_size), jnp.float32),
        "out_b": 0.01 * jax.random.normal(ks[3], (1, embed_size), jnp.float32),
        "g1":    jnp.ones((1, embed_size), jnp.float32),
        "b1":    jnp.zeros((1, embed_size), jnp.float32),
        "ff1_w": 0.05 * jax.random.normal(ks[4], (hidden, embed_size), jnp.float32),
        "ff1_b": 0.01 * jax.random.normal(ks[5], (1, hidden), jnp.float32),
        "ff2_w": 0.05 * jax.random.normal(ks[6], (embed_size, hidden), jnp.float32),
        "ff2_b": 0.01 * jax.random.normal(ks[7], (1, embed_size), jnp.float32),
        "g2":    jnp.ones((1, embed_size), jnp.float32),
        "b2":    jnp.zeros((1, embed_size), jnp.float32),
    }

    x = jax.random.normal(ks[8], (B, S, embed_size), jnp.float32)
    ref = reference_block(x, params, num_heads)

    # f32 MXU-operand path: tight check (tolerance covers approx softmax reciprocal).
    out_f32 = jax.block_until_ready(
        transformer_block(x, params, num_heads, compute_dtype=jnp.float32))
    assert out_f32.shape == (B, S, embed_size)
    assert jnp.allclose(out_f32, ref, atol=5e-3, rtol=5e-3), "f32 path mismatch vs reference"

    # Default bf16 MXU-operand path (f32 accumulation, f32 LN/softmax): looser tolerance.
    out_bf16 = jax.block_until_ready(transformer_block(x, params, num_heads))
    assert out_bf16.shape == (B, S, embed_size)
    assert jnp.allclose(out_bf16, ref, atol=2e-2, rtol=2e-2), "bf16 path mismatch vs reference"

    print("KERNEL_OK")
</pallas_src>

<mosaic_0001>
module attributes {stable_mosaic.version = 11 : i64} {
  func.func @transformer_block_kernel(%arg0: i32, %arg1: memref<1x8x32xf32, #tpu.memory_space<vmem>>, %arg2: memref<32x96xf32, #tpu.memory_space<vmem>>, %arg3: memref<1x96xf32, #tpu.memory_space<vmem>>, %arg4: memref<32x32xf32, #tpu.memory_space<vmem>>, %arg5: memref<1x32xf32, #tpu.memory_space<vmem>>, %arg6: memref<1x32xf32, #tpu.memory_space<vmem>>, %arg7: memref<1x32xf32, #tpu.memory_space<vmem>>, %arg8: memref<32x128xf32, #tpu.memory_space<vmem>>, %arg9: memref<1x128xf32, #tpu.memory_space<vmem>>, %arg10: memref<128x32xf32, #tpu.memory_space<vmem>>, %arg11: memref<1x32xf32, #tpu.memory_space<vmem>>, %arg12: memref<1x32xf32, #tpu.memory_space<vmem>>, %arg13: memref<1x32xf32, #tpu.memory_space<vmem>>, %arg14: memref<1x8x32xf32, #tpu.memory_space<vmem>>) attributes {dimension_semantics = [#tpu.dimension_semantics<parallel>], iteration_bounds = array<i64: 2>, scalar_prefetch = 0 : i64, scratch_operands = 0 : i64, tpu.core_type = #tpu.core_type<tc>, window_params = [{transform_indices = @transform_0, window_bounds = array<i64: 1, 8, 32>}, {pipeline_mode = #tpu.pipeline_mode<synchronous>, transform_indices = @transform_1, window_bounds = array<i64: 32, 96>}, {pipeline_mode = #tpu.pipeline_mode<synchronous>, transform_indices = @transform_2, window_bounds = array<i64: 1, 96>}, {pipeline_mode = #tpu.pipeline_mode<synchronous>, transform_indices = @transform_3, window_bounds = array<i64: 32, 32>}, {pipeline_mode = #tpu.pipeline_mode<synchronous>, transform_indices = @transform_4, window_bounds = array<i64: 1, 32>}, {pipeline_mode = #tpu.pipeline_mode<synchronous>, transform_indices = @transform_5, window_bounds = array<i64: 1, 32>}, {pipeline_mode = #tpu.pipeline_mode<synchronous>, transform_indices = @transform_6, window_bounds = array<i64: 1, 32>}, {pipeline_mode = #tpu.pipeline_mode<synchronous>, transform_indices = @transform_7, window_bounds = array<i64: 32, 128>}, {pipeline_mode = #tpu.pipeline_mode<synchronous>, transform_indices = @transform_8, window_bounds = array<i64: 1, 128>}, {pipeline_mode = #tpu.pipeline_mode<synchronous>, transform_indices = @transform_9, window_bounds = array<i64: 128, 32>}, {pipeline_mode = #tpu.pipeline_mode<synchronous>, transform_indices = @transform_10, window_bounds = array<i64: 1, 32>}, {pipeline_mode = #tpu.pipeline_mode<synchronous>, transform_indices = @transform_11, window_bounds = array<i64: 1, 32>}, {pipeline_mode = #tpu.pipeline_mode<synchronous>, transform_indices = @transform_12, window_bounds = array<i64: 1, 32>}, {transform_indices = @transform_13, window_bounds = array<i64: 1, 8, 32>}]} {
    %c0 = arith.constant 0 : index
    %c0_0 = arith.constant 0 : index
    %c0_1 = arith.constant 0 : index
    %0 = vector.load %arg1[%c0, %c0_0, %c0_1] : memref<1x8x32xf32, #tpu.memory_space<vmem>>, vector<1x8x32xf32>
    %1 = vector.shape_cast %0 : vector<1x8x32xf32> to vector<8x32xf32>
    %c0_2 = arith.constant 0 : index
    %c0_3 = arith.constant 0 : index
    %2 = vector.load %arg2[%c0_2, %c0_3] : memref<32x96xf32, #tpu.memory_space<vmem>>, vector<32x96xf32>
    %cst = arith.constant dense<0.000000e+00> : vector<8x96xf32>
    %3 = tpu.matmul %1, %2, %cst {dimension_numbers = #tpu.dot_dimension_numbers<[1], [0], [0], [1], [0, 0, 1, 1], [], []>} : vector<8x32xf32>, vector<32x96xf32>, vector<8x96xf32> -> vector<8x96xf32>
    %c0_4 = arith.constant 0 : index
    %c0_5 = arith.constant 0 : index
    %4 = vector.load %arg3[%c0_4, %c0_5] : memref<1x96xf32, #tpu.memory_space<vmem>>, vector<1x96xf32>
    %5 = vector.broadcast %4 : vector<1x96xf32> to vector<8x96xf32>
    %6 = arith.addf %3, %5 : vector<8x96xf32>
    %7 = vector.shape_cast %6 : vector<8x96xf32> to vector<8x12x8xf32>
    %8 = tpu.transpose %7, [1, 0, 2] : vector<8x12x8xf32> -> vector<12x8x8xf32>
    %9 = vector.shape_cast %8 : vector<12x8x8xf32> to vector<3x4x8x8xf32>
    %10 = vector.extract_strided_slice %9 {offsets = [0, 0, 0, 0], sizes = [1, 4, 8, 8], strides = [1, 1, 1, 1]} : vector<3x4x8x8xf32> to vector<1x4x8x8xf32>
    %11 = vector.shape_cast %10 : vector<1x4x8x8xf32> to vector<4x8x8xf32>
    %12 = vector.extract_strided_slice %9 {offsets = [1, 0, 0, 0], sizes = [1, 4, 8, 8], strides = [1, 1, 1, 1]} : vector<3x4x8x8xf32> to vector<1x4x8x8xf32>
    %13 = vector.shape_cast %12 : vector<1x4x8x8xf32> to vector<4x8x8xf32>
    %14 = vector.extract_strided_slice %9 {offsets = [2, 0, 0, 0], sizes = [1, 4, 8, 8], strides = [1, 1, 1, 1]} : vector<3x4x8x8xf32> to vector<1x4x8x8xf32>
    %15 = vector.shape_cast %14 : vector<1x4x8x8xf32> to vector<4x8x8xf32>
    %cst_6 = arith.constant 0xFF800000 : f32
    %16 = vector.broadcast %cst_6 : f32 to vector<4x8x1xf32>
    %cst_7 = arith.constant 0.000000e+00 : f32
    %17 = vector.broadcast %cst_7 : f32 to vector<4x8x1xf32>
    %cst_8 = arith.constant 0.000000e+00 : f32
    %18 = vector.broadcast %cst_8 : f32 to vector<4x8x8xf32>
    "tpu.trace_start"() <{level = 10 : i32, message = "hqd,hkd->hqk"}> : () -> ()
    %cst_9 = arith.constant dense<0.000000e+00> : vector<4x8x8xf32>
    %19 = tpu.matmul %11, %13, %cst_9 {dimension_numbers = #tpu.dot_dimension_numbers<[2], [2], [1], [1], [0, 0, 0, 1, 1, 1], [0], [0]>} : vector<4x8x8xf32>, vector<4x8x8xf32>, vector<4x8x8xf32> -> vector<4x8x8xf32>
    "tpu.trace_stop"() : () -> ()
    %cst_10 = arith.constant dense<0xFF800000> : vector<4x8xf32>
    %20 = vector.multi_reduction <maximumf>, %19, %cst_10 [2] : vector<4x8x8xf32> to vector<4x8xf32>
    %21 = vector.shape_cast %20 : vector<4x8xf32> to vector<4x8x1xf32>
    %22 = arith.maximumf %16, %21 : vector<4x8x1xf32>
    %23 = arith.subf %16, %22 : vector<4x8x1xf32>
    %24 = math.exp %23 : vector<4x8x1xf32>
    %25 = vector.broadcast %22 : vector<4x8x1xf32> to vector<4x8x8xf32>
    %26 = arith.subf %19, %25 : vector<4x8x8xf32>
    %27 = math.exp %26 : vector<4x8x8xf32>
    %28 = arith.mulf %24, %17 : vector<4x8x1xf32>
    %cst_11 = arith.constant dense<0.000000e+00> : vector<4x8xf32>
    %29 = vector.multi_reduction <add>, %27, %cst_11 [2] : vector<4x8x8xf32> to vector<4x8xf32>
    %30 = vector.shape_cast %29 : vector<4x8xf32> to vector<4x8x1xf32>
    %31 = arith.addf %28, %30 : vector<4x8x1xf32>
    %32 = vector.broadcast %24 : vector<4x8x1xf32> to vector<4x8x8xf32>
    %33 = arith.mulf %32, %18 : vector<4x8x8xf32>
    "tpu.trace_start"() <{level = 10 : i32, message = "hqk,hkd->hqd"}> : () -> ()
    %cst_12 = arith.constant dense<0.000000e+00> : vector<4x8x8xf32>
    %34 = tpu.matmul %27, %15, %cst_12 {dimension_numbers = #tpu.dot_dimension_numbers<[2], [1], [1], [2], [0, 0, 0, 1, 1, 2], [0], [0]>} : vector<4x8x8xf32>, vector<4x8x8xf32>, vector<4x8x8xf32> -> vector<4x8x8xf32>
    "tpu.trace_stop"() : () -> ()
    %35 = arith.addf %33, %34 : vector<4x8x8xf32>
    %36 = tpu.reciprocal %31 {approx = true} : vector<4x8x1xf32> -> vector<4x8x1xf32>
    %37 = vector.broadcast %36 : vector<4x8x1xf32> to vector<4x8x8xf32>
    %38 = arith.mulf %35, %37 : vector<4x8x8xf32>
    %39 = tpu.transpose %38, [1, 0, 2] : vector<4x8x8xf32> -> vector<8x4x8xf32>
    %40 = vector.shape_cast %39 : vector<8x4x8xf32> to vector<8x32xf32>
    %c0_13 = arith.constant 0 : index
    %c0_14 = arith.constant 0 : index
    %41 = vector.load %arg4[%c0_13, %c0_14] : memref<32x32xf32, #tpu.memory_space<vmem>>, vector<32x32xf32>
    %cst_15 = arith.constant dense<0.000000e+00> : vector<8x32xf32>
    %42 = tpu.matmul %40, %41, %cst_15 {dimension_numbers = #tpu.dot_dimension_numbers<[1], [0], [0], [1], [0, 0, 1, 1], [], []>} : vector<8x32xf32>, vector<32x32xf32>, vector<8x32xf32> -> vector<8x32xf32>
    %c0_16 = arith.constant 0 : index
    %c0_17 = arith.constant 0 : index
    %43 = vector.load %arg5[%c0_16, %c0_17] : memref<1x32xf32, #tpu.memory_space<vmem>>, vector<1x32xf32>
    %44 = vector.broadcast %43 : vector<1x32xf32> to vector<8x32xf32>
    %45 = arith.addf %42, %44 : vector<8x32xf32>
    %46 = arith.addf %1, %45 : vector<8x32xf32>
    %c0_18 = arith.constant 0 : index
    %c0_19 = arith.constant 0 : index
    %47 = vector.load %arg6[%c0_18, %c0_19] : memref<1x32xf32, #tpu.memory_space<vmem>>, vector<1x32xf32>
    %c0_20 = arith.constant 0 : index
    %c0_21 = arith.constant 0 : index
    %48 = vector.load %arg7[%c0_20, %c0_21] : memref<1x32xf32, #tpu.memory_space<vmem>>, vector<1x32xf32>
    %cst_22 = arith.constant dense<0.000000e+00> : vector<8xf32>
    %49 = vector.multi_reduction <add>, %46, %cst_22 [1] : vector<8x32xf32> to vector<8xf32>
    %50 = vector.shape_cast %49 : vector<8xf32> to vector<8x1xf32>
    %cst_23 = arith.constant 3.200000e+01 : f32
    %51 = vector.broadcast %cst_23 : f32 to vector<8x1xf32>
    %52 = arith.divf %50, %51 : vector<8x1xf32>
    %53 = vector.broadcast %52 : vector<8x1xf32> to vector<8x32xf32>
    %54 = arith.subf %46, %53 : vector<8x32xf32>
    %55 = arith.mulf %54, %54 : vector<8x32xf32>
    %cst_24 = arith.constant dense<0.000000e+00> : vector<8xf32>
    %56 = vector.multi_reduction <add>, %55, %cst_24 [1] : vector<8x32xf32> to vector<8xf32>
    %57 = vector.shape_cast %56 : vector<8xf32> to vector<8x1xf32>
    %cst_25 = arith.constant 3.200000e+01 : f32
    %58 = vector.broadcast %cst_25 : f32 to vector<8x1xf32>
    %59 = arith.divf %57, %58 : vector<8x1xf32>
    %60 = vector.broadcast %52 : vector<8x1xf32> to vector<8x32xf32>
    %61 = arith.subf %46, %60 : vector<8x32xf32>
    %cst_26 = arith.constant 9.99999974E-6 : f32
    %62 = vector.broadcast %cst_26 : f32 to vector<8x1xf32>
    %63 = arith.addf %59, %62 : vector<8x1xf32>
    %64 = math.rsqrt %63 : vector<8x1xf32>
    %65 = vector.broadcast %64 : vector<8x1xf32> to vector<8x32xf32>
    %66 = arith.mulf %61, %65 : vector<8x32xf32>
    %67 = vector.broadcast %47 : vector<1x32xf32> to vector<8x32xf32>
    %68 = arith.mulf %66, %67 : vector<8x32xf32>
    %69 = vector.broadcast %48 : vector<1x32xf32> to vector<8x32xf32>
    %70 = arith.addf %68, %69 : vector<8x32xf32>
    %cst_27 = arith.constant 0.000000e+00 : f32
    %71 = vector.broadcast %cst_27 : f32 to vector<8x32xf32>
    %c0_28 = arith.constant 0 : index
    %c0_29 = arith.constant 0 : index
    %72 = vector.load %arg8[%c0_28, %c0_29] : memref<32x128xf32, #tpu.memory_space<vmem>>, vector<32x128xf32>
    %cst_30 = arith.constant dense<0.000000e+00> : vector<8x128xf32>
    %73 = tpu.matmul %70, %72, %cst_30 {dimension_numbers = #tpu.dot_dimension_numbers<[1], [0], [0], [1], [0, 0, 1, 1], [], []>} : vector<8x32xf32>, vector<32x128xf32>, vector<8x128xf32> -> vector<8x128xf32>
    %c0_31 = arith.constant 0 : index
    %c0_32 = arith.constant 0 : index
    %74 = vector.load %arg9[%c0_31, %c0_32] : memref<1x128xf32, #tpu.memory_space<vmem>>, vector<1x128xf32>
    %75 = vector.broadcast %74 : vector<1x128xf32> to vector<8x128xf32>
    %76 = arith.addf %73, %75 : vector<8x128xf32>
    %77 = arith.negf %76 : vector<8x128xf32>
    %78 = math.exp %77 : vector<8x128xf32>
    %cst_33 = arith.constant 1.000000e+00 : f32
    %79 = vector.broadcast %cst_33 : f32 to vector<8x128xf32>
    %80 = arith.addf %79, %78 : vector<8x128xf32>
    %81 = arith.divf %79, %80 : vector<8x128xf32>
    %82 = arith.mulf %76, %81 : vector<8x128xf32>
    %c0_34 = arith.constant 0 : index
    %c0_35 = arith.constant 0 : index
    %83 = vector.load %arg10[%c0_34, %c0_35] : memref<128x32xf32, #tpu.memory_space<vmem>>, vector<128x32xf32>
    %cst_36 = arith.constant dense<0.000000e+00> : vector<8x32xf32>
    %84 = tpu.matmul %82, %83, %cst_36 {dimension_numbers = #tpu.dot_dimension_numbers<[1], [0], [0], [1], [0, 0, 1, 1], [], []>} : vector<8x128xf32>, vector<128x32xf32>, vector<8x32xf32> -> vector<8x32xf32>
    %85 = arith.addf %71, %84 : vector<8x32xf32>
    %c0_37 = arith.constant 0 : index
    %c0_38 = arith.constant 0 : index
    %86 = vector.load %arg11[%c0_37, %c0_38] : memref<1x32xf32, #tpu.memory_space<vmem>>, vector<1x32xf32>
    %87 = vector.broadcast %86 : vector<1x32xf32> to vector<8x32xf32>
    %88 = arith.addf %85, %87 : vector<8x32xf32>
    %89 = arith.addf %70, %88 : vector<8x32xf32>
    %c0_39 = arith.constant 0 : index
    %c0_40 = arith.constant 0 : index
    %90 = vector.load %arg12[%c0_39, %c0_40] : memref<1x32xf32, #tpu.memory_space<vmem>>, vector<1x32xf32>
    %c0_41 = arith.constant 0 : index
    %c0_42 = arith.constant 0 : index
    %91 = vector.load %arg13[%c0_41, %c0_42] : memref<1x32xf32, #tpu.memory_space<vmem>>, vector<1x32xf32>
    %cst_43 = arith.constant dense<0.000000e+00> : vector<8xf32>
    %92 = vector.multi_reduction <add>, %89, %cst_43 [1] : vector<8x32xf32> to vector<8xf32>
    %93 = vector.shape_cast %92 : vector<8xf32> to vector<8x1xf32>
    %cst_44 = arith.constant 3.200000e+01 : f32
    %94 = vector.broadcast %cst_44 : f32 to vector<8x1xf32>
    %95 = arith.divf %93, %94 : vector<8x1xf32>
    %96 = vector.broadcast %95 : vector<8x1xf32> to vector<8x32xf32>
    %97 = arith.subf %89, %96 : vector<8x32xf32>
    %98 = arith.mulf %97, %97 : vector<8x32xf32>
    %cst_45 = arith.constant dense<0.000000e+00> : vector<8xf32>
    %99 = vector.multi_reduction <add>, %98, %cst_45 [1] : vector<8x32xf32> to vector<8xf32>
    %100 = vector.shape_cast %99 : vector<8xf32> to vector<8x1xf32>
    %cst_46 = arith.constant 3.200000e+01 : f32
    %101 = vector.broadcast %cst_46 : f32 to vector<8x1xf32>
    %102 = arith.divf %100, %101 : vector<8x1xf32>
    %103 = vector.broadcast %95 : vector<8x1xf32> to vector<8x32xf32>
    %104 = arith.subf %89, %103 : vector<8x32xf32>
    %cst_47 = arith.constant 9.99999974E-6 : f32
    %105 = vector.broadcast %cst_47 : f32 to vector<8x1xf32>
    %106 = arith.addf %102, %105 : vector<8x1xf32>
    %107 = math.rsqrt %106 : vector<8x1xf32>
    %108 = vector.broadcast %107 : vector<8x1xf32> to vector<8x32xf32>
    %109 = arith.mulf %104, %108 : vector<8x32xf32>
    %110 = vector.broadcast %90 : vector<1x32xf32> to vector<8x32xf32>
    %111 = arith.mulf %109, %110 : vector<8x32xf32>
    %112 = vector.broadcast %91 : vector<1x32xf32> to vector<8x32xf32>
    %113 = arith.addf %111, %112 : vector<8x32xf32>
    %114 = vector.shape_cast %113 : vector<8x32xf32> to vector<1x8x32xf32>
    %c0_48 = arith.constant 0 : index
    %c0_49 = arith.constant 0 : index
    %c0_50 = arith.constant 0 : index
    %115 = vector.load %arg14[%c0_48, %c0_49, %c0_50] : memref<1x8x32xf32, #tpu.memory_space<vmem>>, vector<1x8x32xf32>
    tpu.vector_store %arg14[%c0_48, %c0_49, %c0_50], %114 {strides = array<i32>} : memref<1x8x32xf32, #tpu.memory_space<vmem>>, vector<1x8x32xf32>,
    return
  }
  func.func @transform_0(%arg0: i32) -> (i32, i32, i32) {
    %c0_i32 = arith.constant 0 : i32
    %c0_i32_0 = arith.constant 0 : i32
    %c0_i32_1 = arith.constant 0 : i32
    return %arg0, %c0_i32, %c0_i32_0 : i32, i32, i32
  }
  func.func @transform_1(%arg0: i32) -> (i32, i32) {
    %c0_i32 = arith.constant 0 : i32
    %c0_i32_0 = arith.constant 0 : i32
    %c0_i32_1 = arith.constant 0 : i32
    return %c0_i32, %c0_i32_0 : i32, i32
  }
  func.func @transform_2(%arg0: i32) -> (i32, i32) {
    %c0_i32 = arith.constant 0 : i32
    %c0_i32_0 = arith.constant 0 : i32
    %c0_i32_1 = arith.constant 0 : i32
    return %c0_i32, %c0_i32_0 : i32, i32
  }
  func.func @transform_3(%arg0: i32) -> (i32, i32) {
    %c0_i32 = arith.constant 0 : i32
    %c0_i32_0 = arith.constant 0 : i32
    %c0_i32_1 = arith.constant 0 : i32
    return %c0_i32, %c0_i32_0 : i32, i32
  }
  func.func @transform_4(%arg0: i32) -> (i32, i32) {
    %c0_i32 = arith.constant 0 : i32
    %c0_i32_0 = arith.constant 0 : i32
    %c0_i32_1 = arith.constant 0 : i32
    return %c0_i32, %c0_i32_0 : i32, i32
  }
  func.func @transform_5(%arg0: i32) -> (i32, i32) {
    %c0_i32 = arith.constant 0 : i32
    %c0_i32_0 = arith.constant 0 : i32
    %c0_i32_1 = arith.constant 0 : i32
    return %c0_i32, %c0_i32_0 : i32, i32
  }
  func.func @transform_6(%arg0: i32) -> (i32, i32) {
    %c0_i32 = arith.constant 0 : i32
    %c0_i32_0 = arith.constant 0 : i32
    %c0_i32_1 = arith.constant 0 : i32
    return %c0_i32, %c0_i32_0 : i32, i32
  }
  func.func @transform_7(%arg0: i32) -> (i32, i32) {
    %c0_i32 = arith.constant 0 : i32
    %c0_i32_0 = arith.constant 0 : i32
    %c0_i32_1 = arith.constant 0 : i32
    return %c0_i32, %c0_i32_0 : i32, i32
  }
  func.func @transform_8(%arg0: i32) -> (i32, i32) {
    %c0_i32 = arith.constant 0 : i32
    %c0_i32_0 = arith.constant 0 : i32
    %c0_i32_1 = arith.constant 0 : i32
    return %c0_i32, %c0_i32_0 : i32, i32
  }
  func.func @transform_9(%arg0: i32) -> (i32, i32) {
    %c0_i32 = arith.constant 0 : i32
    %c0_i32_0 = arith.constant 0 : i32
    %c0_i32_1 = arith.constant 0 : i32
    return %c0_i32, %c0_i32_0 : i32, i32
  }
  func.func @transform_10(%arg0: i32) -> (i32, i32) {
    %c0_i32 = arith.constant 0 : i32
    %c0_i32_0 = arith.constant 0 : i32
    %c0_i32_1 = arith.constant 0 : i32
    return %c0_i32, %c0_i32_0 : i32, i32
  }
  func.func @transform_11(%arg0: i32) -> (i32, i32) {
    %c0_i32 = arith.constant 0 : i32
    %c0_i32_0 = arith.constant 0 : i32
    %c0_i32_1 = arith.constant 0 : i32
    return %c0_i32, %c0_i32_0 : i32, i32
  }
  func.func @transform_12(%arg0: i32) -> (i32, i32) {
    %c0_i32 = arith.constant 0 : i32
    %c0_i32_0 = arith.constant 0 : i32
    %c0_i32_1 = arith.constant 0 : i32
    return %c0_i32, %c0_i32_0 : i32, i32
  }
  func.func @transform_13(%arg0: i32) -> (i32, i32, i32) {
    %c0_i32 = arith.constant 0 : i32
    %c0_i32_0 = arith.constant 0 : i32
    %c0_i32_1 = arith.constant 0 : i32
    return %arg0, %c0_i32, %c0_i32_0 : i32, i32, i32
  }
}

module attributes {stable_mosaic.version = 11 : i64} {
  func.func @transformer_block_kernel(%arg0: i32, %arg1: memref<1x8x32xf32, #tpu.memory_space<vmem>>, %arg2: memref<32x96xf32, #tpu.memory_space<vmem>>, %arg3: memref<1x96xf32, #tpu.memory_space<vmem>>, %arg4: memref<32x32xf32, #tpu.memory_space<vmem>>, %arg5: memref<1x32xf32, #tpu.memory_space<vmem>>, %arg6: memref<1x32xf32, #tpu.memory_space<vmem>>, %arg7: memref<1x32xf32, #tpu.memory_space<vmem>>, %arg8: memref<32x128xf32, #tpu.memory_space<vmem>>, %arg9: memref<1x128xf32, #tpu.memory_space<vmem>>, %arg10: memref<128x32xf32, #tpu.memory_space<vmem>>, %arg11: memref<1x32xf32, #tpu.memory_space<vmem>>, %arg12: memref<1x32xf32, #tpu.memory_space<vmem>>, %arg13: memref<1x32xf32, #tpu.memory_space<vmem>>, %arg14: memref<1x8x32xf32, #tpu.memory_space<vmem>>) attributes {dimension_semantics = [#tpu.dimension_semantics<parallel>], iteration_bounds = array<i64: 2>, scalar_prefetch = 0 : i64, scratch_operands = 0 : i64, tpu.core_type = #tpu.core_type<tc>, window_params = [{transform_indices = @transform_0, window_bounds = array<i64: 1, 8, 32>}, {pipeline_mode = #tpu.pipeline_mode<synchronous>, transform_indices = @transform_1, window_bounds = array<i64: 32, 96>}, {pipeline_mode = #tpu.pipeline_mode<synchronous>, transform_indices = @transform_2, window_bounds = array<i64: 1, 96>}, {pipeline_mode = #tpu.pipeline_mode<synchronous>, transform_indices = @transform_3, window_bounds = array<i64: 32, 32>}, {pipeline_mode = #tpu.pipeline_mode<synchronous>, transform_indices = @transform_4, window_bounds = array<i64: 1, 32>}, {pipeline_mode = #tpu.pipeline_mode<synchronous>, transform_indices = @transform_5, window_bounds = array<i64: 1, 32>}, {pipeline_mode = #tpu.pipeline_mode<synchronous>, transform_indices = @transform_6, window_bounds = array<i64: 1, 32>}, {pipeline_mode = #tpu.pipeline_mode<synchronous>, transform_indices = @transform_7, window_bounds = array<i64: 32, 128>}, {pipeline_mode = #tpu.pipeline_mode<synchronous>, transform_indices = @transform_8, window_bounds = array<i64: 1, 128>}, {pipeline_mode = #tpu.pipeline_mode<synchronous>, transform_indices = @transform_9, window_bounds = array<i64: 128, 32>}, {pipeline_mode = #tpu.pipeline_mode<synchronous>, transform_indices = @transform_10, window_bounds = array<i64: 1, 32>}, {pipeline_mode = #tpu.pipeline_mode<synchronous>, transform_indices = @transform_11, window_bounds = array<i64: 1, 32>}, {pipeline_mode = #tpu.pipeline_mode<synchronous>, transform_indices = @transform_12, window_bounds = array<i64: 1, 32>}, {transform_indices = @transform_13, window_bounds = array<i64: 1, 8, 32>}]} {
    %c0 = arith.constant 0 : index
    %c0_0 = arith.constant 0 : index
    %c0_1 = arith.constant 0 : index
    %0 = vector.load %arg1[%c0, %c0_0, %c0_1] : memref<1x8x32xf32, #tpu.memory_space<vmem>>, vector<1x8x32xf32>
    %1 = vector.shape_cast %0 : vector<1x8x32xf32> to vector<8x32xf32>
    %c0_2 = arith.constant 0 : index
    %c0_3 = arith.constant 0 : index
    %2 = vector.load %arg2[%c0_2, %c0_3] : memref<32x96xf32, #tpu.memory_space<vmem>>, vector<32x96xf32>
    %cst = arith.constant dense<0.000000e+00> : vector<8x96xf32>
    %3 = tpu.matmul %1, %2, %cst {dimension_numbers = #tpu.dot_dimension_numbers<[1], [0], [0], [1], [0, 0, 1, 1], [], []>} : vector<8x32xf32>, vector<32x96xf32>, vector<8x96xf32> -> vector<8x96xf32>
    %c0_4 = arith.constant 0 : index
    %c0_5 = arith.constant 0 : index
    %4 = vector.load %arg3[%c0_4, %c0_5] : memref<1x96xf32, #tpu.memory_space<vmem>>, vector<1x96xf32>
    %5 = vector.broadcast %4 : vector<1x96xf32> to vector<8x96xf32>
    %6 = arith.addf %3, %5 : vector<8x96xf32>
    %7 = vector.extract_strided_slice %6 {offsets = [0, 0], sizes = [8, 8], strides = [1, 1]} : vector<8x96xf32> to vector<8x8xf32>
    %8 = vector.extract_strided_slice %6 {offsets = [0, 8], sizes = [8, 8], strides = [1, 1]} : vector<8x96xf32> to vector<8x8xf32>
    %9 = vector.extract_strided_slice %6 {offsets = [0, 16], sizes = [8, 8], strides = [1, 1]} : vector<8x96xf32> to vector<8x8xf32>
    %10 = vector.extract_strided_slice %6 {offsets = [0, 24], sizes = [8, 8], strides = [1, 1]} : vector<8x96xf32> to vector<8x8xf32>
    %11 = vector.shape_cast %7 : vector<8x8xf32> to vector<1x8x8xf32>
    %12 = vector.shape_cast %8 : vector<8x8xf32> to vector<1x8x8xf32>
    %13 = vector.shape_cast %9 : vector<8x8xf32> to vector<1x8x8xf32>
    %14 = vector.shape_cast %10 : vector<8x8xf32> to vector<1x8x8xf32>
    %15 = tpu.concatenate %11, %12, %13, %14 in 0 : vector<1x8x8xf32>, vector<1x8x8xf32>, vector<1x8x8xf32>, vector<1x8x8xf32> -> vector<4x8x8xf32>
    %16 = vector.extract_strided_slice %6 {offsets = [0, 32], sizes = [8, 8], strides = [1, 1]} : vector<8x96xf32> to vector<8x8xf32>
    %17 = vector.extract_strided_slice %6 {offsets = [0, 40], sizes = [8, 8], strides = [1, 1]} : vector<8x96xf32> to vector<8x8xf32>
    %18 = vector.extract_strided_slice %6 {offsets = [0, 48], sizes = [8, 8], strides = [1, 1]} : vector<8x96xf32> to vector<8x8xf32>
    %19 = vector.extract_strided_slice %6 {offsets = [0, 56], sizes = [8, 8], strides = [1, 1]} : vector<8x96xf32> to vector<8x8xf32>
    %20 = vector.shape_cast %16 : vector<8x8xf32> to vector<1x8x8xf32>
    %21 = vector.shape_cast %17 : vector<8x8xf32> to vector<1x8x8xf32>
    %22 = vector.shape_cast %18 : vector<8x8xf32> to vector<1x8x8xf32>
    %23 = vector.shape_cast %19 : vector<8x8xf32> to vector<1x8x8xf32>
    %24 = tpu.concatenate %20, %21, %22, %23 in 0 : vector<1x8x8xf32>, vector<1x8x8xf32>, vector<1x8x8xf32>, vector<1x8x8xf32> -> vector<4x8x8xf32>
    %25 = vector.extract_strided_slice %6 {offsets = [0, 64], sizes = [8, 8], strides = [1, 1]} : vector<8x96xf32> to vector<8x8xf32>
    %26 = vector.extract_strided_slice %6 {offsets = [0, 72], sizes = [8, 8], strides = [1, 1]} : vector<8x96xf32> to vector<8x8xf32>
    %27 = vector.extract_strided_slice %6 {offsets = [0, 80], sizes = [8, 8], strides = [1, 1]} : vector<8x96xf32> to vector<8x8xf32>
    %28 = vector.extract_strided_slice %6 {offsets = [0, 88], sizes = [8, 8], strides = [1, 1]} : vector<8x96xf32> to vector<8x8xf32>
    %29 = vector.shape_cast %25 : vector<8x8xf32> to vector<1x8x8xf32>
    %30 = vector.shape_cast %26 : vector<8x8xf32> to vector<1x8x8xf32>
    %31 = vector.shape_cast %27 : vector<8x8xf32> to vector<1x8x8xf32>
    %32 = vector.shape_cast %28 : vector<8x8xf32> to vector<1x8x8xf32>
    %33 = tpu.concatenate %29, %30, %31, %32 in 0 : vector<1x8x8xf32>, vector<1x8x8xf32>, vector<1x8x8xf32>, vector<1x8x8xf32> -> vector<4x8x8xf32>
    %cst_6 = arith.constant 0xFF800000 : f32
    %34 = vector.broadcast %cst_6 : f32 to vector<4x8x1xf32>
    %cst_7 = arith.constant 0.000000e+00 : f32
    %35 = vector.broadcast %cst_7 : f32 to vector<4x8x1xf32>
    %cst_8 = arith.constant 0.000000e+00 : f32
    %36 = vector.broadcast %cst_8 : f32 to vector<4x8x8xf32>
    "tpu.trace_start"() <{level = 10 : i32, message = "hqd,hkd->hqk"}> : () -> ()
    %cst_9 = arith.constant dense<0.000000e+00> : vector<4x8x8xf32>
    %37 = tpu.matmul %15, %24, %cst_9 {dimension_numbers = #tpu.dot_dimension_numbers<[2], [2], [1], [1], [0, 0, 0, 1, 1, 1], [0], [0]>} : vector<4x8x8xf32>, vector<4x8x8xf32>, vector<4x8x8xf32> -> vector<4x8x8xf32>
    "tpu.trace_stop"() : () -> ()
    %cst_10 = arith.constant dense<0xFF800000> : vector<4x8xf32>
    %38 = vector.multi_reduction <maximumf>, %37, %cst_10 [2] : vector<4x8x8xf32> to vector<4x8xf32>
    %39 = vector.shape_cast %38 : vector<4x8xf32> to vector<4x8x1xf32>
    %40 = arith.maximumf %34, %39 : vector<4x8x1xf32>
    %41 = arith.subf %34, %40 : vector<4x8x1xf32>
    %42 = math.exp %41 : vector<4x8x1xf32>
    %43 = vector.broadcast %40 : vector<4x8x1xf32> to vector<4x8x8xf32>
    %44 = arith.subf %37, %43 : vector<4x8x8xf32>
    %45 = math.exp %44 : vector<4x8x8xf32>
    %46 = arith.mulf %42, %35 : vector<4x8x1xf32>
    %cst_11 = arith.constant dense<0.000000e+00> : vector<4x8xf32>
    %47 = vector.multi_reduction <add>, %45, %cst_11 [2] : vector<4x8x8xf32> to vector<4x8xf32>
    %48 = vector.shape_cast %47 : vector<4x8xf32> to vector<4x8x1xf32>
    %49 = arith.addf %46, %48 : vector<4x8x1xf32>
    %50 = vector.broadcast %42 : vector<4x8x1xf32> to vector<4x8x8xf32>
    %51 = arith.mulf %50, %36 : vector<4x8x8xf32>
    "tpu.trace_start"() <{level = 10 : i32, message = "hqk,hkd->hqd"}> : () -> ()
    %cst_12 = arith.constant dense<0.000000e+00> : vector<4x8x8xf32>
    %52 = tpu.matmul %45, %33, %cst_12 {dimension_numbers = #tpu.dot_dimension_numbers<[2], [1], [1], [2], [0, 0, 0, 1, 1, 2], [0], [0]>} : vector<4x8x8xf32>, vector<4x8x8xf32>, vector<4x8x8xf32> -> vector<4x8x8xf32>
    "tpu.trace_stop"() : () -> ()
    %53 = arith.addf %51, %52 : vector<4x8x8xf32>
    %54 = tpu.reciprocal %49 {approx = true} : vector<4x8x1xf32> -> vector<4x8x1xf32>
    %55 = vector.broadcast %54 : vector<4x8x1xf32> to vector<4x8x8xf32>
    %56 = arith.mulf %53, %55 : vector<4x8x8xf32>
    %57 = vector.extract_strided_slice %56 {offsets = [0, 0, 0], sizes = [1, 8, 8], strides = [1, 1, 1]} : vector<4x8x8xf32> to vector<1x8x8xf32>
    %58 = vector.shape_cast %57 : vector<1x8x8xf32> to vector<8x8xf32>
    %59 = vector.extract_strided_slice %56 {offsets = [1, 0, 0], sizes = [1, 8, 8], strides = [1, 1, 1]} : vector<4x8x8xf32> to vector<1x8x8xf32>
    %60 = vector.shape_cast %59 : vector<1x8x8xf32> to vector<8x8xf32>
    %61 = vector.extract_strided_slice %56 {offsets = [2, 0, 0], sizes = [1, 8, 8], strides = [1, 1, 1]} : vector<4x8x8xf32> to vector<1x8x8xf32>
    %62 = vector.shape_cast %61 : vector<1x8x8xf32> to vector<8x8xf32>
    %63 = vector.extract_strided_slice %56 {offsets = [3, 0, 0], sizes = [1, 8, 8], strides = [1, 1, 1]} : vector<4x8x8xf32> to vector<1x8x8xf32>
    %64 = vector.shape_cast %63 : vector<1x8x8xf32> to vector<8x8xf32>
    %65 = tpu.concatenate %58, %60, %62, %64 in 1 : vector<8x8xf32>, vector<8x8xf32>, vector<8x8xf32>, vector<8x8xf32> -> vector<8x32xf32>
    %c0_13 = arith.constant 0 : index
    %c0_14 = arith.constant 0 : index
    %66 = vector.load %arg4[%c0_13, %c0_14] : memref<32x32xf32, #tpu.memory_space<vmem>>, vector<32x32xf32>
    %cst_15 = arith.constant dense<0.000000e+00> : vector<8x32xf32>
    %67 = tpu.matmul %65, %66, %cst_15 {dimension_numbers = #tpu.dot_dimension_numbers<[1], [0], [0], [1], [0, 0, 1, 1], [], []>} : vector<8x32xf32>, vector<32x32xf32>, vector<8x32xf32> -> vector<8x32xf32>
    %c0_16 = arith.constant 0 : index
    %c0_17 = arith.constant 0 : index
    %68 = vector.load %arg5[%c0_16, %c0_17] : memref<1x32xf32, #tpu.memory_space<vmem>>, vector<1x32xf32>
    %69 = vector.broadcast %68 : vector<1x32xf32> to vector<8x32xf32>
    %70 = arith.addf %67, %69 : vector<8x32xf32>
    %71 = arith.addf %1, %70 : vector<8x32xf32>
    %c0_18 = arith.constant 0 : index
    %c0_19 = arith.constant 0 : index
    %72 = vector.load %arg6[%c0_18, %c0_19] : memref<1x32xf32, #tpu.memory_space<vmem>>, vector<1x32xf32>
    %c0_20 = arith.constant 0 : index
    %c0_21 = arith.constant 0 : index
    %73 = vector.load %arg7[%c0_20, %c0_21] : memref<1x32xf32, #tpu.memory_space<vmem>>, vector<1x32xf32>
    %cst_22 = arith.constant dense<0.000000e+00> : vector<8xf32>
    %74 = vector.multi_reduction <add>, %71, %cst_22 [1] : vector<8x32xf32> to vector<8xf32>
    %75 = vector.shape_cast %74 : vector<8xf32> to vector<8x1xf32>
    %cst_23 = arith.constant 3.200000e+01 : f32
    %76 = vector.broadcast %cst_23 : f32 to vector<8x1xf32>
    %77 = arith.divf %75, %76 : vector<8x1xf32>
    %78 = vector.broadcast %77 : vector<8x1xf32> to vector<8x32xf32>
    %79 = arith.subf %71, %78 : vector<8x32xf32>
    %80 = arith.mulf %79, %79 : vector<8x32xf32>
    %cst_24 = arith.constant dense<0.000000e+00> : vector<8xf32>
    %81 = vector.multi_reduction <add>, %80, %cst_24 [1] : vector<8x32xf32> to vector<8xf32>
    %82 = vector.shape_cast %81 : vector<8xf32> to vector<8x1xf32>
    %cst_25 = arith.constant 3.200000e+01 : f32
    %83 = vector.broadcast %cst_25 : f32 to vector<8x1xf32>
    %84 = arith.divf %82, %83 : vector<8x1xf32>
    %85 = vector.broadcast %77 : vector<8x1xf32> to vector<8x32xf32>
    %86 = arith.subf %71, %85 : vector<8x32xf32>
    %cst_26 = arith.constant 9.99999974E-6 : f32
    %87 = vector.broadcast %cst_26 : f32 to vector<8x1xf32>
    %88 = arith.addf %84, %87 : vector<8x1xf32>
    %89 = math.rsqrt %88 : vector<8x1xf32>
    %90 = vector.broadcast %89 : vector<8x1xf32> to vector<8x32xf32>
    %91 = arith.mulf %86, %90 : vector<8x32xf32>
    %92 = vector.broadcast %72 : vector<1x32xf32> to vector<8x32xf32>
    %93 = arith.mulf %91, %92 : vector<8x32xf32>
    %94 = vector.broadcast %73 : vector<1x32xf32> to vector<8x32xf32>
    %95 = arith.addf %93, %94 : vector<8x32xf32>
    %cst_27 = arith.constant 0.000000e+00 : f32
    %96 = vector.broadcast %cst_27 : f32 to vector<8x32xf32>
    %c0_28 = arith.constant 0 : index
    %c0_29 = arith.constant 0 : index
    %97 = vector.load %arg8[%c0_28, %c0_29] : memref<32x128xf32, #tpu.memory_space<vmem>>, vector<32x128xf32>
    %cst_30 = arith.constant dense<0.000000e+00> : vector<8x128xf32>
    %98 = tpu.matmul %95, %97, %cst_30 {dimension_numbers = #tpu.dot_dimension_numbers<[1], [0], [0], [1], [0, 0, 1, 1], [], []>} : vector<8x32xf32>, vector<32x128xf32>, vector<8x128xf32> -> vector<8x128xf32>
    %c0_31 = arith.constant 0 : index
    %c0_32 = arith.constant 0 : index
    %99 = vector.load %arg9[%c0_31, %c0_32] : memref<1x128xf32, #tpu.memory_space<vmem>>, vector<1x128xf32>
    %100 = vector.broadcast %99 : vector<1x128xf32> to vector<8x128xf32>
    %101 = arith.addf %98, %100 : vector<8x128xf32>
    %102 = arith.negf %101 : vector<8x128xf32>
    %103 = math.exp %102 : vector<8x128xf32>
    %cst_33 = arith.constant 1.000000e+00 : f32
    %104 = vector.broadcast %cst_33 : f32 to vector<8x128xf32>
    %105 = arith.addf %104, %103 : vector<8x128xf32>
    %106 = arith.divf %104, %105 : vector<8x128xf32>
    %107 = arith.mulf %101, %106 : vector<8x128xf32>
    %c0_34 = arith.constant 0 : index
    %c0_35 = arith.constant 0 : index
    %108 = vector.load %arg10[%c0_34, %c0_35] : memref<128x32xf32, #tpu.memory_space<vmem>>, vector<128x32xf32>
    %cst_36 = arith.constant dense<0.000000e+00> : vector<8x32xf32>
    %109 = tpu.matmul %107, %108, %cst_36 {dimension_numbers = #tpu.dot_dimension_numbers<[1], [0], [0], [1], [0, 0, 1, 1], [], []>} : vector<8x128xf32>, vector<128x32xf32>, vector<8x32xf32> -> vector<8x32xf32>
    %110 = arith.addf %96, %109 : vector<8x32xf32>
    %c0_37 = arith.constant 0 : index
    %c0_38 = arith.constant 0 : index
    %111 = vector.load %arg11[%c0_37, %c0_38] : memref<1x32xf32, #tpu.memory_space<vmem>>, vector<1x32xf32>
    %112 = vector.broadcast %111 : vector<1x32xf32> to vector<8x32xf32>
    %113 = arith.addf %110, %112 : vector<8x32xf32>
    %114 = arith.addf %95, %113 : vector<8x32xf32>
    %c0_39 = arith.constant 0 : index
    %c0_40 = arith.constant 0 : index
    %115 = vector.load %arg12[%c0_39, %c0_40] : memref<1x32xf32, #tpu.memory_space<vmem>>, vector<1x32xf32>
    %c0_41 = arith.constant 0 : index
    %c0_42 = arith.constant 0 : index
    %116 = vector.load %arg13[%c0_41, %c0_42] : memref<1x32xf32, #tpu.memory_space<vmem>>, vector<1x32xf32>
    %cst_43 = arith.constant dense<0.000000e+00> : vector<8xf32>
    %117 = vector.multi_reduction <add>, %114, %cst_43 [1] : vector<8x32xf32> to vector<8xf32>
    %118 = vector.shape_cast %117 : vector<8xf32> to vector<8x1xf32>
    %cst_44 = arith.constant 3.200000e+01 : f32
    %119 = vector.broadcast %cst_44 : f32 to vector<8x1xf32>
    %120 = arith.divf %118, %119 : vector<8x1xf32>
    %121 = vector.broadcast %120 : vector<8x1xf32> to vector<8x32xf32>
    %122 = arith.subf %114, %121 : vector<8x32xf32>
    %123 = arith.mulf %122, %122 : vector<8x32xf32>
    %cst_45 = arith.constant dense<0.000000e+00> : vector<8xf32>
    %124 = vector.multi_reduction <add>, %123, %cst_45 [1] : vector<8x32xf32> to vector<8xf32>
    %125 = vector.shape_cast %124 : vector<8xf32> to vector<8x1xf32>
    %cst_46 = arith.constant 3.200000e+01 : f32
    %126 = vector.broadcast %cst_46 : f32 to vector<8x1xf32>
    %127 = arith.divf %125, %126 : vector<8x1xf32>
    %128 = vector.broadcast %120 : vector<8x1xf32> to vector<8x32xf32>
    %129 = arith.subf %114, %128 : vector<8x32xf32>
    %cst_47 = arith.constant 9.99999974E-6 : f32
    %130 = vector.broadcast %cst_47 : f32 to vector<8x1xf32>
    %131 = arith.addf %127, %130 : vector<8x1xf32>
    %132 = math.rsqrt %131 : vector<8x1xf32>
    %133 = vector.broadcast %132 : vector<8x1xf32> to vector<8x32xf32>
    %134 = arith.mulf %129, %133 : vector<8x32xf32>
    %135 = vector.broadcast %115 : vector<1x32xf32> to vector<8x32xf32>
    %136 = arith.mulf %134, %135 : vector<8x32xf32>
    %137 = vector.broadcast %116 : vector<1x32xf32> to vector<8x32xf32>
    %138 = arith.addf %136, %137 : vector<8x32xf32>
    %139 = vector.shape_cast %138 : vector<8x32xf32> to vector<1x8x32xf32>
    %c0_48 = arith.constant 0 : index
    %c0_49 = arith.constant 0 : index
    %c0_50 = arith.constant 0 : index
    %140 = vector.load %arg14[%c0_48, %c0_49, %c0_50] : memref<1x8x32xf32, #tpu.memory_space<vmem>>, vector<1x8x32xf32>
    tpu.vector_store %arg14[%c0_48, %c0_49, %c0_50], %139 {strides = array<i32>} : memref<1x8x32xf32, #tpu.memory_space<vmem>>, vector<1x8x32xf32>,
    return
  }
  func.func @transform_0(%arg0: i32) -> (i32, i32, i32) {
    %c0_i32 = arith.constant 0 : i32
    %c0_i32_0 = arith.constant 0 : i32
    %c0_i32_1 = arith.constant 0 : i32
    return %arg0, %c0_i32, %c0_i32_0 : i32, i32, i32
  }
  func.func @transform_1(%arg0: i32) -> (i32, i32) {
    %c0_i32 = arith.constant 0 : i32
    %c0_i32_0 = arith.constant 0 : i32
    %c0_i32_1 = arith.constant 0 : i32
    return %c0_i32, %c0_i32_0 : i32, i32
  }
  func.func @transform_2(%arg0: i32) -> (i32, i32) {
    %c0_i32 = arith.constant 0 : i32
    %c0_i32_0 = arith.constant 0 : i32
    %c0_i32_1 = arith.constant 0 : i32
    return %c0_i32, %c0_i32_0 : i32, i32
  }
  func.func @transform_3(%arg0: i32) -> (i32, i32) {
    %c0_i32 = arith.constant 0 : i32
    %c0_i32_0 = arith.constant 0 : i32
    %c0_i32_1 = arith.constant 0 : i32
    return %c0_i32, %c0_i32_0 : i32, i32
  }
  func.func @transform_4(%arg0: i32) -> (i32, i32) {
    %c0_i32 = arith.constant 0 : i32
    %c0_i32_0 = arith.constant 0 : i32
    %c0_i32_1 = arith.constant 0 : i32
    return %c0_i32, %c0_i32_0 : i32, i32
  }
  func.func @transform_5(%arg0: i32) -> (i32, i32) {
    %c0_i32 = arith.constant 0 : i32
    %c0_i32_0 = arith.constant 0 : i32
    %c0_i32_1 = arith.constant 0 : i32
    return %c0_i32, %c0_i32_0 : i32, i32
  }
  func.func @transform_6(%arg0: i32) -> (i32, i32) {
    %c0_i32 = arith.constant 0 : i32
    %c0_i32_0 = arith.constant 0 : i32
    %c0_i32_1 = arith.constant 0 : i32
    return %c0_i32, %c0_i32_0 : i32, i32
  }
  func.func @transform_7(%arg0: i32) -> (i32, i32) {
    %c0_i32 = arith.constant 0 : i32
    %c0_i32_0 = arith.constant 0 : i32
    %c0_i32_1 = arith.constant 0 : i32
    return %c0_i32, %c0_i32_0 : i32, i32
  }
  func.func @transform_8(%arg0: i32) -> (i32, i32) {
    %c0_i32 = arith.constant 0 : i32
    %c0_i32_0 = arith.constant 0 : i32
    %c0_i32_1 = arith.constant 0 : i32
    return %c0_i32, %c0_i32_0 : i32, i32
  }
  func.func @transform_9(%arg0: i32) -> (i32, i32) {
    %c0_i32 = arith.constant 0 : i32
    %c0_i32_0 = arith.constant 0 : i32
    %c0_i32_1 = arith.constant 0 : i32
    return %c0_i32, %c0_i32_0 : i32, i32
  }
  func.func @transform_10(%arg0: i32) -> (i32, i32) {
    %c0_i32 = arith.constant 0 : i32
    %c0_i32_0 = arith.constant 0 : i32
    %c0_i32_1 = arith.constant 0 : i32
    return %c0_i32, %c0_i32_0 : i32, i32
  }
  func.func @transform_11(%arg0: i32) -> (i32, i32) {
    %c0_i32 = arith.constant 0 : i32
    %c0_i32_0 = arith.constant 0 : i32
    %c0_i32_1 = arith.constant 0 : i32
    return %c0_i32, %c0_i32_0 : i32, i32
  }
  func.func @transform_12(%arg0: i32) -> (i32, i32) {
    %c0_i32 = arith.constant 0 : i32
    %c0_i32_0 = arith.constant 0 : i32
    %c0_i32_1 = arith.constant 0 : i32
    return %c0_i32, %c0_i32_0 : i32, i32
  }
  func.func @transform_13(%arg0: i32) -> (i32, i32, i32) {
    %c0_i32 = arith.constant 0 : i32
    %c0_i32_0 = arith.constant 0 : i32
    %c0_i32_1 = arith.constant 0 : i32
    return %arg0, %c0_i32, %c0_i32_0 : i32, i32, i32
  }
}

</mosaic_0001>

<llo_original>
// kernel: tpu_custom_call.1
$region0: #{tpu_custom_call.1}
  #allocation0 [shape = 'u32[]', space=smem, size = 0x4, offset = 0x4, fixed_abs, tag = 'smem constant byte address 0x4 - core index']
  #allocation1 [shape = 'u32[144,128]{1,0:T(1,128)}', space=vmem, size = 0x12000, scoped, tag = 'internal scratch']
  %s0 = inlined_call_operand.vmem [shape: f32[2,8,32], index: 0, kind: input, shape index: {}]
  %s1 = inlined_call_operand.vmem [shape: f32[32,96], index: 1, kind: input, shape index: {}]
  %s2 = inlined_call_operand.vmem [shape: f32[1,96], index: 2, kind: input, shape index: {}]
  %s3 = inlined_call_operand.vmem [shape: f32[32,32], index: 3, kind: input, shape index: {}]
  %s4 = inlined_call_operand.vmem [shape: f32[1,32], index: 4, kind: input, shape index: {}]
  %s5 = inlined_call_operand.vmem [shape: f32[1,32], index: 5, kind: input, shape index: {}]
  %s6 = inlined_call_operand.vmem [shape: f32[1,32], index: 6, kind: input, shape index: {}]
  %s7 = inlined_call_operand.vmem [shape: f32[32,128], index: 7, kind: input, shape index: {}]
  %s8 = inlined_call_operand.vmem [shape: f32[1,128], index: 8, kind: input, shape index: {}]
  %s9 = inlined_call_operand.vmem [shape: f32[128,32], index: 9, kind: input, shape index: {}]
  %s10 = inlined_call_operand.vmem [shape: f32[1,32], index: 10, kind: input, shape index: {}]
  %s11 = inlined_call_operand.vmem [shape: f32[1,32], index: 11, kind: input, shape index: {}]
  %s12 = inlined_call_operand.vmem [shape: f32[1,32], index: 12, kind: input, shape index: {}]
  %s13 = inlined_call_operand.hbm [shape: f32[2,8,32], index: 13, kind: output, shape index: {}]
  %s14 = sld [smem:[#allocation0]]
  $region85: #{tpu_custom_call.1} parent=0
    _
  %s16 = ssub.s32 1, %s14
  %s17 = scalar_select 0, %s16, %s14
  $region1: #{tpu_custom_call.1} parent=0
    #allocation2 [shape = 'u8[8192]{0}', space=vmem, size = 0x2000, scoped, tag = 'output window, operand 0']
    #allocation3 [shape = 's32[2]{0}', space=sflag, size = 0x8, scoped, tag = 'scoped memory for tpu_custom_call.1']
    %18 = vsyncpa [#allocation3], 0
    %s19 = scalar_lea.sflag [#allocation3], 1
    %20 = vsyncpa %s19, 0
    loop: start=0, step=1, limit=4
    $region2: #{tpu_custom_call.1} parent=1 // loop_pre_header
      _
    $region3: #{tpu_custom_call.1} parent=1 // loop_header
      %s22 = sphi 0, %s26
      %p23 = scmp.ge.s32.totalorder %s22, 4
      %s32 = sphi 0, %s34
      %s35 = sphi 0, %s32
      %s36 = sphi 0, %s35
      %s52 = sphi 0, %s36
      %s56 = sphi 0, %s56
      %s58 = sphi 0, %s56
      %s59 = sphi 0, %s58
      %s73 = sphi 0, %s59
      %s77 = sphi 0, %s77
      %s79 = sphi 0, %s77
      %s80 = sphi 0, %s79
      %s94 = sphi 0, %s80
      %s98 = sphi 0, %s98
      %s100 = sphi 0, %s98
      %s101 = sphi 0, %s100
      %s115 = sphi 0, %s101
      %s119 = sphi 0, %s119
      %s121 = sphi 0, %s119
      %s122 = sphi 0, %s121
      %s136 = sphi 0, %s122
      %s140 = sphi 0, %s140
      %s142 = sphi 0, %s140
      %s143 = sphi 0, %s142
      %s157 = sphi 0, %s143
      %s161 = sphi 0, %s161
      %s163 = sphi 0, %s161
      %s164 = sphi 0, %s163
      %s178 = sphi 0, %s164
      %s182 = sphi 0, %s182
      %s184 = sphi 0, %s182
      %s185 = sphi 0, %s184
      %s199 = sphi 0, %s185
      %s203 = sphi 0, %s203
      %s205 = sphi 0, %s203
      %s206 = sphi 0, %s205
      %s220 = sphi 0, %s206
      %s224 = sphi 0, %s224
      %s226 = sphi 0, %s224
      %s227 = sphi 0, %s226
      %s241 = sphi 0, %s227
      %s245 = sphi 0, %s245
      %s247 = sphi 0, %s245
      %s248 = sphi 0, %s247
      %s262 = sphi 0, %s248
      %s266 = sphi 0, %s266
      %s268 = sphi 0, %s266
      %s269 = sphi 0, %s268
      %s283 = sphi 0, %s269
      %s287 = sphi 0, %s287
      %s289 = sphi 0, %s287
      %s290 = sphi 0, %s289
      %s304 = sphi 0, %s290
      %s310 = sphi 0, %s312
      %s313 = sphi 0, %s310
      %s314 = sphi 0, %s313
      %s330 = sphi 0, %s314
    $region4: #{tpu_custom_call.1} parent=1 // loop_header_branch
      %25 = sbr.rel (%p23) target = $region8
    $region5: #{tpu_custom_call.1} parent=1 // loop_body
      %s27 = ssub.s32 %s22, 1
      %s28 = ssub.s32 %s22, 2
      %s29 = sadd.s32 %s22, 1
      %s30 = ssub.s32 %s22, %s29
      %p31 = scmp.eq.s32.totalorder %s30, 0
      %s33 = sadd.s32 %s32, 1
      %s34 = scalar_select %p31, %s32, %s33
      %p37 = pneg %p31
      %p38 = scmp.eq.s32.totalorder %s22, 1
      %p39 = por %p37, %p38
      %p40 = scmp.ne.s32.totalorder %s32, %s35
      %p41 = scmp.eq.s32.totalorder %s22, 0
      %p42 = por %p40, %p41
      %p43 = scmp.ne.s32.totalorder %s32, %s35
      %p44 = scmp.eq.s32.totalorder %s27, 1
      %p45 = por %p43, %p44
      %p46 = scmp.ne.s32.totalorder %s35, %s36
      %p47 = scmp.eq.s32.totalorder %s27, 0
      %p48 = por %p46, %p47
      %p49 = scmp.ne.s32.totalorder %s35, %s36
      %p50 = scmp.eq.s32.totalorder %s28, 1
      %p51 = por %p49, %p50
      %p53 = scmp.ne.s32.totalorder %s36, %s52
      %p54 = scmp.eq.s32.totalorder %s28, 0
      %p55 = por %p53, %p54
      %s57 = sadd.s32 %s56, 1
      %p60 = scmp.eq.s32.totalorder %s22, 1
      %p61 = scmp.ne.s32.totalorder %s56, %s58
      %p62 = scmp.eq.s32.totalorder %s22, 0
      %p63 = por %p61, %p62
      %p64 = scmp.ne.s32.totalorder %s56, %s58
      %p65 = scmp.eq.s32.totalorder %s27, 1
      %p66 = por %p64, %p65
      %p67 = scmp.ne.s32.totalorder %s58, %s59
      %p68 = scmp.eq.s32.totalorder %s27, 0
      %p69 = por %p67, %p68
      %p70 = scmp.ne.s32.totalorder %s58, %s59
      %p71 = scmp.eq.s32.totalorder %s28, 1
      %p72 = por %p70, %p71
      %p74 = scmp.ne.s32.totalorder %s59, %s73
      %p75 = scmp.eq.s32.totalorder %s28, 0
      %p76 = por %p74, %p75
      %s78 = sadd.s32 %s77, 1
      %p81 = scmp.eq.s32.totalorder %s22, 1
      %p82 = scmp.ne.s32.totalorder %s77, %s79
      %p83 = scmp.eq.s32.totalorder %s22, 0
      %p84 = por %p82, %p83
      %p85 = scmp.ne.s32.totalorder %s77, %s79
      %p86 = scmp.eq.s32.totalorder %s27, 1
      %p87 = por %p85, %p86
      %p88 = scmp.ne.s32.totalorder %s79, %s80
      %p89 = scmp.eq.s32.totalorder %s27, 0
      %p90 = por %p88, %p89
      %p91 = scmp.ne.s32.totalorder %s79, %s80
      %p92 = scmp.eq.s32.totalorder %s28, 1
      %p93 = por %p91, %p92
      %p95 = scmp.ne.s32.totalorder %s80, %s94
      %p96 = scmp.eq.s32.totalorder %s28, 0
      %p97 = por %p95, %p96
      %s99 = sadd.s32 %s98, 1
      %p102 = scmp.eq.s32.totalorder %s22, 1
      %p103 = scmp.ne.s32.totalorder %s98, %s100
      %p104 = scmp.eq.s32.totalorder %s22, 0
      %p105 = por %p103, %p104
      %p106 = scmp.ne.s32.totalorder %s98, %s100
      %p107 = scmp.eq.s32.totalorder %s27, 1
      %p108 = por %p106, %p107
      %p109 = scmp.ne.s32.totalorder %s100, %s101
      %p110 = scmp.eq.s32.totalorder %s27, 0
      %p111 = por %p109, %p110
      %p112 = scmp.ne.s32.totalorder %s100, %s101
      %p113 = scmp.eq.s32.totalorder %s28, 1
      %p114 = por %p112, %p113
      %p116 = scmp.ne.s32.totalorder %s101, %s115
      %p117 = scmp.eq.s32.totalorder %s28, 0
      %p118 = por %p116, %p117
      %s120 = sadd.s32 %s119, 1
      %p123 = scmp.eq.s32.totalorder %s22, 1
      %p124 = scmp.ne.s32.totalorder %s119, %s121
      %p125 = scmp.eq.s32.totalorder %s22, 0
      %p126 = por %p124, %p125
      %p127 = scmp.ne.s32.totalorder %s119, %s121
      %p128 = scmp.eq.s32.totalorder %s27, 1
      %p129 = por %p127, %p128
      %p130 = scmp.ne.s32.totalorder %s121, %s122
      %p131 = scmp.eq.s32.totalorder %s27, 0
      %p132 = por %p130, %p131
      %p133 = scmp.ne.s32.totalorder %s121, %s122
      %p134 = scmp.eq.s32.totalorder %s28, 1
      %p135 = por %p133, %p134
      %p137 = scmp.ne.s32.totalorder %s122, %s136
      %p138 = scmp.eq.s32.totalorder %s28, 0
      %p139 = por %p137, %p138
      %s141 = sadd.s32 %s140, 1
      %p144 = scmp.eq.s32.totalorder %s22, 1
      %p145 = scmp.ne.s32.totalorder %s140, %s142
      %p146 = scmp.eq.s32.totalorder %s22, 0
      %p147 = por %p145, %p146
      %p148 = scmp.ne.s32.totalorder %s140, %s142
      %p149 = scmp.eq.s32.totalorder %s27, 1
      %p150 = por %p148, %p149
      %p151 = scmp.ne.s32.totalorder %s142, %s143
      %p152 = scmp.eq.s32.totalorder %s27, 0
      %p153 = por %p151, %p152
      %p154 = scmp.ne.s32.totalorder %s142, %s143
      %p155 = scmp.eq.s32.totalorder %s28, 1
      %p156 = por %p154, %p155
      %p158 = scmp.ne.s32.totalorder %s143, %s157
      %p159 = scmp.eq.s32.totalorder %s28, 0
      %p160 = por %p158, %p159
      %s162 = sadd.s32 %s161, 1
      %p165 = scmp.eq.s32.totalorder %s22, 1
      %p166 = scmp.ne.s32.totalorder %s161, %s163
      %p167 = scmp.eq.s32.totalorder %s22, 0
      %p168 = por %p166, %p167
      %p169 = scmp.ne.s32.totalorder %s161, %s163
      %p170 = scmp.eq.s32.totalorder %s27, 1
      %p171 = por %p169, %p170
      %p172 = scmp.ne.s32.totalorder %s163, %s164
      %p173 = scmp.eq.s32.totalorder %s27, 0
      %p174 = por %p172, %p173
      %p175 = scmp.ne.s32.totalorder %s163, %s164
      %p176 = scmp.eq.s32.totalorder %s28, 1
      %p177 = por %p175, %p176
      %p179 = scmp.ne.s32.totalorder %s164, %s178
      %p180 = scmp.eq.s32.totalorder %s28, 0
      %p181 = por %p179, %p180
      %s183 = sadd.s32 %s182, 1
      %p186 = scmp.eq.s32.totalorder %s22, 1
      %p187 = scmp.ne.s32.totalorder %s182, %s184
      %p188 = scmp.eq.s32.totalorder %s22, 0
      %p189 = por %p187, %p188
      %p190 = scmp.ne.s32.totalorder %s182, %s184
      %p191 = scmp.eq.s32.totalorder %s27, 1
      %p192 = por %p190, %p191
      %p193 = scmp.ne.s32.totalorder %s184, %s185
      %p194 = scmp.eq.s32.totalorder %s27, 0
      %p195 = por %p193, %p194
      %p196 = scmp.ne.s32.totalorder %s184, %s185
      %p197 = scmp.eq.s32.totalorder %s28, 1
      %p198 = por %p196, %p197
      %p200 = scmp.ne.s32.totalorder %s185, %s199
      %p201 = scmp.eq.s32.totalorder %s28, 0
      %p202 = por %p200, %p201
      %s204 = sadd.s32 %s203, 1
      %p207 = scmp.eq.s32.totalorder %s22, 1
      %p208 = scmp.ne.s32.totalorder %s203, %s205
      %p209 = scmp.eq.s32.totalorder %s22, 0
      %p210 = por %p208, %p209
      %p211 = scmp.ne.s32.totalorder %s203, %s205
      %p212 = scmp.eq.s32.totalorder %s27, 1
      %p213 = por %p211, %p212
      %p214 = scmp.ne.s32.totalorder %s205, %s206
      %p215 = scmp.eq.s32.totalorder %s27, 0
      %p216 = por %p214, %p215
      %p217 = scmp.ne.s32.totalorder %s205, %s206
      %p218 = scmp.eq.s32.totalorder %s28, 1
      %p219 = por %p217, %p218
      %p221 = scmp.ne.s32.totalorder %s206, %s220
      %p222 = scmp.eq.s32.totalorder %s28, 0
      %p223 = por %p221, %p222
      %s225 = sadd.s32 %s224, 1
      %p228 = scmp.eq.s32.totalorder %s22, 1
      %p229 = scmp.ne.s32.totalorder %s224, %s226
      %p230 = scmp.eq.s32.totalorder %s22, 0
      %p231 = por %p229, %p230
      %p232 = scmp.ne.s32.totalorder %s224, %s226
      %p233 = scmp.eq.s32.totalorder %s27, 1
      %p234 = por %p232, %p233
      %p235 = scmp.ne.s32.totalorder %s226, %s227
      %p236 = scmp.eq.s32.totalorder %s27, 0
      %p237 = por %p235, %p236
      %p238 = scmp.ne.s32.totalorder %s226, %s227
      %p239 = scmp.eq.s32.totalorder %s28, 1
      %p240 = por %p238, %p239
      %p242 = scmp.ne.s32.totalorder %s227, %s241
      %p243 = scmp.eq.s32.totalorder %s28, 0
      %p244 = por %p242, %p243
      %s246 = sadd.s32 %s245, 1
      %p249 = scmp.eq.s32.totalorder %s22, 1
      %p250 = scmp.ne.s32.totalorder %s245, %s247
      %p251 = scmp.eq.s32.totalorder %s22, 0
      %p252 = por %p250, %p251
      %p253 = scmp.ne.s32.totalorder %s245, %s247
      %p254 = scmp.eq.s32.totalorder %s27, 1
      %p255 = por %p253, %p254
      %p256 = scmp.ne.s32.totalorder %s247, %s248
      %p257 = scmp.eq.s32.totalorder %s27, 0
      %p258 = por %p256, %p257
      %p259 = scmp.ne.s32.totalorder %s247, %s248
      %p260 = scmp.eq.s32.totalorder %s28, 1
      %p261 = por %p259, %p260
      %p263 = scmp.ne.s32.totalorder %s248, %s262
      %p264 = scmp.eq.s32.totalorder %s28, 0
      %p265 = por %p263, %p264
      %s267 = sadd.s32 %s266, 1
      %p270 = scmp.eq.s32.totalorder %s22, 1
      %p271 = scmp.ne.s32.totalorder %s266, %s268
      %p272 = scmp.eq.s32.totalorder %s22, 0
      %p273 = por %p271, %p272
      %p274 = scmp.ne.s32.totalorder %s266, %s268
      %p275 = scmp.eq.s32.totalorder %s27, 1
      %p276 = por %p274, %p275
      %p277 = scmp.ne.s32.totalorder %s268, %s269
      %p278 = scmp.eq.s32.totalorder %s27, 0
      %p279 = por %p277, %p278
      %p280 = scmp.ne.s32.totalorder %s268, %s269
      %p281 = scmp.eq.s32.totalorder %s28, 1
      %p282 = por %p280, %p281
      %p284 = scmp.ne.s32.totalorder %s269, %s283
      %p285 = scmp.eq.s32.totalorder %s28, 0
      %p286 = por %p284, %p285
      %s288 = sadd.s32 %s287, 1
      %p291 = scmp.eq.s32.totalorder %s22, 1
      %p292 = scmp.ne.s32.totalorder %s287, %s289
      %p293 = scmp.eq.s32.totalorder %s22, 0
      %p294 = por %p292, %p293
      %p295 = scmp.ne.s32.totalorder %s287, %s289
      %p296 = scmp.eq.s32.totalorder %s27, 1
      %p297 = por %p295, %p296
      %p298 = scmp.ne.s32.totalorder %s289, %s290
      %p299 = scmp.eq.s32.totalorder %s27, 0
      %p300 = por %p298, %p299
      %p301 = scmp.ne.s32.totalorder %s289, %s290
      %p302 = scmp.eq.s32.totalorder %s28, 1
      %p303 = por %p301, %p302
      %p305 = scmp.ne.s32.totalorder %s290, %s304
      %p306 = scmp.eq.s32.totalorder %s28, 0
      %p307 = por %p305, %p306
      %s308 = ssub.s32 %s22, %s29
      %p309 = scmp.eq.s32.totalorder %s308, 0
      %s311 = sadd.s32 %s310, 1
      %s312 = scalar_select %p309, %s310, %s311
      %p315 = pneg %p309
      %p316 = scmp.eq.s32.totalorder %s22, 1
      %p317 = por %p315, %p316
      %p318 = scmp.ne.s32.totalorder %s310, %s313
      %p319 = scmp.eq.s32.totalorder %s22, 0
      %p320 = por %p318, %p319
      %p321 = scmp.ne.s32.totalorder %s310, %s313
      %p322 = scmp.eq.s32.totalorder %s27, 1
      %p323 = por %p321, %p322
      %p324 = scmp.ne.s32.totalorder %s313, %s314
      %p325 = scmp.eq.s32.totalorder %s27, 0
      %p326 = por %p324, %p325
      %p327 = scmp.ne.s32.totalorder %s313, %s314
      %p328 = scmp.eq.s32.totalorder %s28, 1
      %p329 = por %p327, %p328
      %p331 = scmp.ne.s32.totalorder %s314, %s330
      %p332 = scmp.eq.s32.totalorder %s28, 0
      %p333 = por %p331, %p332
      %p334 = scmp.le.s32.totalorder 1, %s22
      %p335 = scmp.lt.s32.totalorder %s22, 3
      %p336 = pnand %p334, %p335
      %p337 = pneg %p336
      // Predicated region
      $region9: #{tpu_custom_call.1} parent=5 // pred_check
        _
      $region10: #{tpu_custom_call.1} parent=5 // pred_check_branch
        %339 = sbr.rel (%p336) target = $region12
      $region11: #{tpu_custom_call.1} parent=5 // pred_region
        %s340 = ssub.s32 %s22, 1
        // Predicated region
        $region13: #{tpu_custom_call.1} parent=11 // pred_check
          %p341 = pneg %p69
        $region14: #{tpu_custom_call.1} parent=11 // pred_check_branch
          %343 = sbr.rel (%p341) target = $region16
        $region15: #{tpu_custom_call.1} parent=11 // pred_region
          _
        $region16: #{tpu_custom_call.1} parent=11 // pred_fallthru
          _
        // Predicated region
        $region17: #{tpu_custom_call.1} parent=11 // pred_check
          %p344 = pneg %p90
        $region18: #{tpu_custom_call.1} parent=11 // pred_check_branch
          %346 = sbr.rel (%p344) target = $region20
        $region19: #{tpu_custom_call.1} parent=11 // pred_region
          _
        $region20: #{tpu_custom_call.1} parent=11 // pred_fallthru
          _
        // Predicated region
        $region21: #{tpu_custom_call.1} parent=11 // pred_check
          %p347 = pneg %p111
        $region22: #{tpu_custom_call.1} parent=11 // pred_check_branch
          %349 = sbr.rel (%p347) target = $region24
        $region23: #{tpu_custom_call.1} parent=11 // pred_region
          _
        $region24: #{tpu_custom_call.1} parent=11 // pred_fallthru
          _
        // Predicated region
        $region25: #{tpu_custom_call.1} parent=11 // pred_check
          %p350 = pneg %p132
        $region26: #{tpu_custom_call.1} parent=11 // pred_check_branch
          %352 = sbr.rel (%p350) target = $region28
        $region27: #{tpu_custom_call.1} parent=11 // pred_region
          _
        $region28: #{tpu_custom_call.1} parent=11 // pred_fallthru
          _
        // Predicated region
        $region29: #{tpu_custom_call.1} parent=11 // pred_check
          %p353 = pneg %p153
        $region30: #{tpu_custom_call.1} parent=11 // pred_check_branch
          %355 = sbr.rel (%p353) target = $region32
        $region31: #{tpu_custom_call.1} parent=11 // pred_region
          _
        $region32: #{tpu_custom_call.1} parent=11 // pred_fallthru
          _
        // Predicated region
        $region33: #{tpu_custom_call.1} parent=11 // pred_check
          %p356 = pneg %p174
        $region34: #{tpu_custom_call.1} parent=11 // pred_check_branch
          %358 = sbr.rel (%p356) target = $region36
        $region35: #{tpu_custom_call.1} parent=11 // pred_region
          _
        $region36: #{tpu_custom_call.1} parent=11 // pred_fallthru
          _
        // Predicated region
        $region37: #{tpu_custom_call.1} parent=11 // pred_check
          %p359 = pneg %p195
        $region38: #{tpu_custom_call.1} parent=11 // pred_check_branch
          %361 = sbr.rel (%p359) target = $region40
        $region39: #{tpu_custom_call.1} parent=11 // pred_region
          _
        $region40: #{tpu_custom_call.1} parent=11 // pred_fallthru
          _
        // Predicated region
        $region41: #{tpu_custom_call.1} parent=11 // pred_check
          %p362 = pneg %p216
        $region42: #{tpu_custom_call.1} parent=11 // pred_check_branch
          %364 = sbr.rel (%p362) target = $region44
        $region43: #{tpu_custom_call.1} parent=11 // pred_region
          _
        $region44: #{tpu_custom_call.1} parent=11 // pred_fallthru
          _
        // Predicated region
        $region45: #{tpu_custom_call.1} parent=11 // pred_check
          %p365 = pneg %p237
        $region46: #{tpu_custom_call.1} parent=11 // pred_check_branch
          %367 = sbr.rel (%p365) target = $region48
        $region47: #{tpu_custom_call.1} parent=11 // pred_region
          _
        $region48: #{tpu_custom_call.1} parent=11 // pred_fallthru
          _
        // Predicated region
        $region49: #{tpu_custom_call.1} parent=11 // pred_check
          %p368 = pneg %p258
        $region50: #{tpu_custom_call.1} parent=11 // pred_check_branch
          %370 = sbr.rel (%p368) target = $region52
        $region51: #{tpu_custom_call.1} parent=11 // pred_region
          _
        $region52: #{tpu_custom_call.1} parent=11 // pred_fallthru
          _
        // Predicated region
        $region53: #{tpu_custom_call.1} parent=11 // pred_check
          %p371 = pneg %p279
        $region54: #{tpu_custom_call.1} parent=11 // pred_check_branch
          %373 = sbr.rel (%p371) target = $region56
        $region55: #{tpu_custom_call.1} parent=11 // pred_region
          _
        $region56: #{tpu_custom_call.1} parent=11 // pred_fallthru
          _
        // Predicated region
        $region57: #{tpu_custom_call.1} parent=11 // pred_check
          %p374 = pneg %p300
        $region58: #{tpu_custom_call.1} parent=11 // pred_check_branch
          %376 = sbr.rel (%p374) target = $region60
        $region59: #{tpu_custom_call.1} parent=11 // pred_region
          _
        $region60: #{tpu_custom_call.1} parent=11 // pred_fallthru
          _
      $region12: #{tpu_custom_call.1} parent=5 // pred_fallthru
        _
      %p377 = scmp.lt.s32.totalorder %s22, 2
      // Predicated region
      $region61: #{tpu_custom_call.1} parent=5 // pred_check
        %p378 = pneg %p377
      $region62: #{tpu_custom_call.1} parent=5 // pred_check_branch
        %380 = sbr.rel (%p378) target = $region64
      $region63: #{tpu_custom_call.1} parent=5 // pred_region
        // Predicated region
        $region65: #{tpu_custom_call.1} parent=63 // pred_check
          %p381 = pneg %p42
        $region66: #{tpu_custom_call.1} parent=63 // pred_check_branch
          %383 = sbr.rel (%p381) target = $region68
        $region67: #{tpu_custom_call.1} parent=63 // pred_region
          %p384 = scmp.lt.s32.totalorder %s22, 1
          %s385 = scalar_select %p384, %s22, 1
          %s386 = smul.addr %s385, 8
          %s387 = scalar_lea.vmem %s0, %s386
        $region68: #{tpu_custom_call.1} parent=63 // pred_fallthru
          _
      $region64: #{tpu_custom_call.1} parent=5 // pred_fallthru
        _
      %p388 = scmp.le.s32.totalorder 1, %s22
      %p389 = scmp.lt.s32.totalorder %s22, 3
      %p390 = pnand %p388, %p389
      %p391 = pneg %p390
      // Predicated region
      $region69: #{tpu_custom_call.1} parent=5 // pred_check
        _
      $region70: #{tpu_custom_call.1} parent=5 // pred_check_branch
        %393 = sbr.rel (%p390) target = $region72
      $region71: #{tpu_custom_call.1} parent=5 // pred_region
        %s394 = ssub.s32 %s22, 1
        %p395 = scmp.lt.s32.totalorder %s27, 1
        %s396 = scalar_select %p395, %s27, 1
        %s397 = smul.addr %s396, 8
        %s398 = scalar_lea.vmem %s0, %s397
        %p399 = pneg %p48
        %p400 = pneg %p45
        %p401 = pneg %p69
        %p402 = pneg %p66
        %p403 = pneg %p90
        %p404 = pneg %p87
        %p405 = pneg %p111
        %p406 = pneg %p108
        %p407 = pneg %p132
        %p408 = pneg %p129
        %p409 = pneg %p153
        %p410 = pneg %p150
        %p411 = pneg %p174
        %p412 = pneg %p171
        %p413 = pneg %p195
        %p414 = pneg %p192
        %p415 = pneg %p216
        %p416 = pneg %p213
        %p417 = pneg %p237
        %p418 = pneg %p234
        %p419 = pneg %p258
        %p420 = pneg %p255
        %p421 = pneg %p279
        %p422 = pneg %p276
        %p423 = pneg %p300
        %p424 = pneg %p297
        %p425 = pneg %p326
        %p426 = pneg %p323
        %s427 = sand.u32 %s313, 1
        %s428 = scalar_lea.sflag [#allocation3], %s427
        %s429 = sand.u32 %s313, 1
        %s430 = smul.addr %s429, 8
        %s431 = scalar_lea.vmem [#allocation2], %s430
        %p432 = scmp.lt.s32.totalorder %s27, 1
        %s433 = scalar_select %p432, %s27, 1
        %s434 = smul.addr %s433, 8
        %s435 = scalar_lea.vmem %s0, %s434
        %v436 = vld [vmem:[%s435] sm:$0xff]
        %v437 = vld [vmem:[%s1] sm:$0xff]
        %v438 = vld [vmem:[%s1 + $0x8] sm:$0xff]
        %v439 = vld [vmem:[%s1 + $0x10] sm:$0xff]
        %v440 = vld [vmem:[%s1 + $0x18] sm:$0xff]
        %v441 = vld [vmem:[%s2] sm:$0x1]
        %v443 = vlaneseq
        %v444 = vshrl.u32 %v443, 7
        %v445 = vsub.s32 0, %v444
        %v446 = vrot.slane %v441, %v445
        %vm448 = vcmask 261120
        %v450 = vsel %vm448, %v436, 0
        %452 = vmatprep.subr.mxu0 0.0
        %453 = vmatpush1.msra.mxu0 0.0
        %454 = vmatprep.subr.mxu0 0.0
        %455 = vmatpush1.msra.mxu0 0.0
        %456 = vmatprep.subr.mxu0 0.0
        %457 = vmatpush1.msra.mxu0 0.0
        %458 = vmatprep.subr.mxu0 0.0
        %459 = vmatpush1.msra.mxu0 0.0
        %460 = vmatprep.subr.mxu0 0.0
        %461 = vmatpush1.msra.mxu0 0.0
        %462 = vmatprep.subr.mxu0 0.0
        %463 = vmatpush1.msra.mxu0 0.0
        %464 = vmatprep.subr.mxu0 0.0
        %465 = vmatpush1.msra.mxu0 0.0
        %466 = vmatprep.subr.mxu0 0.0
        %467 = vmatpush1.msra.mxu0 0.0
        %468 = vmatprep.subr.mxu0 0.0
        %469 = vmatpush1.msra.mxu0 0.0
        %470 = vmatprep.subr.mxu0 0.0
        %471 = vmatpush1.msra.mxu0 0.0
        %472 = vmatprep.subr.mxu0 0.0
        %473 = vmatpush1.msra.mxu0 0.0
        %474 = vmatprep.subr.mxu0 0.0
        %475 = vmatpush1.msra.mxu0 0.0
        %476 = vmatprep.subr.mxu0 0.0
        %477 = vmatpush1.msra.mxu0 %v440
        %478 = vmatprep.subr.mxu0 0.0
        %479 = vmatpush1.msra.mxu0 %v439
        %480 = vmatprep.subr.mxu0 0.0
        %481 = vmatpush1.msra.mxu0 %v438
        %482 = vmatprep.subr.mxu0 0.0
        %483 = vmatpush1.msra.mxu0 %v437
        %484 = vmatprep.subr.mxu0 0.0
        %485 = vmatpush2.msra.mxu0 0.0
        %486 = vmatprep.subr.mxu0 0.0
        %487 = vmatpush2.msra.mxu0 0.0
        %488 = vmatprep.subr.mxu0 0.0
        %489 = vmatpush2.msra.mxu0 0.0
        %490 = vmatprep.subr.mxu0 0.0
        %491 = vmatpush2.msra.mxu0 0.0
        %492 = vmatprep.subr.mxu0 0.0
        %493 = vmatpush2.msra.mxu0 0.0
        %494 = vmatprep.subr.mxu0 0.0
        %495 = vmatpush2.msra.mxu0 0.0
        %496 = vmatprep.subr.mxu0 0.0
        %497 = vmatpush2.msra.mxu0 0.0
        %498 = vmatprep.subr.mxu0 0.0
        %499 = vmatpush2.msra.mxu0 0.0
        %500 = vmatprep.subr.mxu0 0.0
        %501 = vmatpush2.msra.mxu0 0.0
        %502 = vmatprep.subr.mxu0 0.0
        %503 = vmatpush2.msra.mxu0 0.0
        %504 = vmatprep.subr.mxu0 0.0
        %505 = vmatpush2.msra.mxu0 0.0
        %506 = vmatprep.subr.mxu0 0.0
        %507 = vmatpush2.msra.mxu0 0.0
        %508 = vmatprep.subr.mxu0 0.0
        %509 = vmatpush2.msra.mxu0 0.0
        %510 = vmatprep.subr.mxu0 0.0
        %511 = vmatpush2.msra.mxu0 0.0
        %512 = vmatprep.subr.mxu0 0.0
        %513 = vmatpush2.msra.mxu0 0.0
        %514 = vmatprep.subr.mxu0 0.0
        %515 = vmatpush2.msra.mxu0 0.0
        %516 = vmatprep.mubr.f32.mxu0 0.0
        %517 = vmatmul.mubr.f32.gmra.mxu0 %v450
        %v518 = vpop.f32.mrf.mxu0
        %v519 = vadd.f32 %v446, %v518
        %v520 = vpop.f32.mrf.mxu0
        %521 = vdwg.mxu0
        %523 = vrot.lane.b32.xlu0 %v519, 120
        %v524 = vpop.permute.xlu0 %523
        %526 = vrot.lane.b32.xlu0 %v519, 112
        %v527 = vpop.permute.xlu0 %526
        %529 = vrot.lane.b32.xlu0 %v519, 104
        %v530 = vpop.permute.xlu0 %529
        %532 = vrot.lane.b32.xlu0 %v519, 96
        %v533 = vpop.permute.xlu0 %532
        %535 = vrot.lane.b32.xlu0 %v519, 88
        %v536 = vpop.permute.xlu0 %535
        %538 = vrot.lane.b32.xlu0 %v519, 80
        %v539 = vpop.permute.xlu0 %538
        %541 = vrot.lane.b32.xlu0 %v519, 72
        %v542 = vpop.permute.xlu0 %541
        %544 = vrot.lane.b32.xlu0 %v519, 64
        %v545 = vpop.permute.xlu0 %544
        %547 = vrot.lane.b32.xlu0 %v519, 56
        %v548 = vpop.permute.xlu0 %547
        %550 = vrot.lane.b32.xlu0 %v519, 48
        %v551 = vpop.permute.xlu0 %550
        %553 = vrot.lane.b32.xlu0 %v519, 40
        %v554 = vpop.permute.xlu0 %553
        %v556 = vcombine.low %v519, %v527
        %v557 = vcombine.high %v519, %v527
        %v559 = vunpack.c.l.s4 1983009808
        %v560 = vunpack.c.0.s8 %v559
        %v561 = vlaneseq
        %v562 = vshrl.u32 %v561, 7
        %v563 = vsub.s32 %v560, %v562
        %v564 = vrot.slane %v556, %v563
        %v566 = vunpack.c.l.s4 1983009808
        %v567 = vunpack.c.0.s8 %v566
        %v568 = vlaneseq
        %v569 = vshrl.u32 %v568, 7
        %v570 = vsub.s32 %v567, %v569
        %v571 = vrot.slane %v557, %v570
        %v572 = vcombine.low %v524, %v530
        %v573 = vcombine.high %v524, %v530
        %v575 = vunpack.c.l.s4 1983009808
        %v576 = vunpack.c.0.s8 %v575
        %v577 = vlaneseq
        %v578 = vshrl.u32 %v577, 7
        %v579 = vsub.s32 %v576, %v578
        %v580 = vrot.slane %v572, %v579
        %v582 = vunpack.c.l.s4 1983009808
        %v583 = vunpack.c.0.s8 %v582
        %v584 = vlaneseq
        %v585 = vshrl.u32 %v584, 7
        %v586 = vsub.s32 %v583, %v585
        %v587 = vrot.slane %v573, %v586
        %v588 = vcombine.low %v533, %v539
        %v589 = vcombine.high %v533, %v539
        %v591 = vunpack.c.l.s4 1983009808
        %v592 = vunpack.c.0.s8 %v591
        %v593 = vlaneseq
        %v594 = vshrl.u32 %v593, 7
        %v595 = vsub.s32 %v592, %v594
        %v596 = vrot.slane %v588, %v595
        %v598 = vunpack.c.l.s4 1983009808
        %v599 = vunpack.c.0.s8 %v598
        %v600 = vlaneseq
        %v601 = vshrl.u32 %v600, 7
        %v602 = vsub.s32 %v599, %v601
        %v603 = vrot.slane %v589, %v602
        %v604 = vcombine.low %v536, %v542
        %v605 = vcombine.high %v536, %v542
        %v607 = vunpack.c.l.s4 1983009808
        %v608 = vunpack.c.0.s8 %v607
        %v609 = vlaneseq
        %v610 = vshrl.u32 %v609, 7
        %v611 = vsub.s32 %v608, %v610
        %v612 = vrot.slane %v604, %v611
        %v614 = vunpack.c.l.s4 1983009808
        %v615 = vunpack.c.0.s8 %v614
        %v616 = vlaneseq
        %v617 = vshrl.u32 %v616, 7
        %v618 = vsub.s32 %v615, %v617
        %v619 = vrot.slane %v605, %v618
        %v620 = vcombine.low %v564, %v580
        %v621 = vcombine.high %v564, %v580
        %v623 = vunpack.c.l.s4 1934713408
        %v624 = vunpack.c.0.s8 %v623
        %v625 = vlaneseq
        %v626 = vshrl.u32 %v625, 7
        %v627 = vsub.s32 %v624, %v626
        %v628 = vrot.slane %v620, %v627
        %v630 = vunpack.c.l.s4 1934713408
        %v631 = vunpack.c.0.s8 %v630
        %v632 = vlaneseq
        %v633 = vshrl.u32 %v632, 7
        %v634 = vsub.s32 %v631, %v633
        %v635 = vrot.slane %v621, %v634
        %v636 = vcombine.low %v571, %v587
        %v637 = vcombine.high %v571, %v587
        %v639 = vunpack.c.l.s4 1934713408
        %v640 = vunpack.c.0.s8 %v639
        %v641 = vlaneseq
        %v642 = vshrl.u32 %v641, 7
        %v643 = vsub.s32 %v640, %v642
        %v644 = vrot.slane %v636, %v643
        %v646 = vunpack.c.l.s4 1934713408
        %v647 = vunpack.c.0.s8 %v646
        %v648 = vlaneseq
        %v649 = vshrl.u32 %v648, 7
        %v650 = vsub.s32 %v647, %v649
        %v651 = vrot.slane %v637, %v650
        %v652 = vcombine.low %v596, %v612
        %v653 = vcombine.high %v596, %v612
        %v655 = vunpack.c.l.s4 1934713408
        %v656 = vunpack.c.0.s8 %v655
        %v657 = vlaneseq
        %v658 = vshrl.u32 %v657, 7
        %v659 = vsub.s32 %v656, %v658
        %v660 = vrot.slane %v652, %v659
        %v662 = vunpack.c.l.s4 1934713408
        %v663 = vunpack.c.0.s8 %v662
        %v664 = vlaneseq
        %v665 = vshrl.u32 %v664, 7
        %v666 = vsub.s32 %v663, %v665
        %v667 = vrot.slane %v653, %v666
        %v668 = vcombine.low %v603, %v619
        %v669 = vcombine.high %v603, %v619
        %v671 = vunpack.c.l.s4 1934713408
        %v672 = vunpack.c.0.s8 %v671
        %v673 = vlaneseq
        %v674 = vshrl.u32 %v673, 7
        %v675 = vsub.s32 %v672, %v674
        %v676 = vrot.slane %v668, %v675
        %v678 = vunpack.c.l.s4 1934713408
        %v679 = vunpack.c.0.s8 %v678
        %v680 = vlaneseq
        %v681 = vshrl.u32 %v680, 7
        %v682 = vsub.s32 %v679, %v681
        %v683 = vrot.slane %v669, %v682
        %v684 = vcombine.low %v628, %v660
        %v685 = vcombine.high %v628, %v660
        %v686 = vcombine.low %v635, %v667
        %v687 = vcombine.high %v635, %v667
        %v688 = vcombine.low %v644, %v676
        %v689 = vcombine.high %v644, %v676
        %v690 = vcombine.low %v651, %v683
        %v691 = vcombine.high %v651, %v683
        %v692 = vcombine.low %v545, %v551
        %v693 = vcombine.high %v545, %v551
        %v695 = vunpack.c.l.s4 1983009808
        %v696 = vunpack.c.0.s8 %v695
        %v697 = vlaneseq
        %v698 = vshrl.u32 %v697, 7
        %v699 = vsub.s32 %v696, %v698
        %v700 = vrot.slane %v692, %v699
        %v702 = vunpack.c.l.s4 1983009808
        %v703 = vunpack.c.0.s8 %v702
        %v704 = vlaneseq
        %v705 = vshrl.u32 %v704, 7
        %v706 = vsub.s32 %v703, %v705
        %v707 = vrot.slane %v693, %v706
        %v708 = vcombine.low %v548, %v554
        %v709 = vcombine.high %v548, %v554
        %v711 = vunpack.c.l.s4 1983009808
        %v712 = vunpack.c.0.s8 %v711
        %v713 = vlaneseq
        %v714 = vshrl.u32 %v713, 7
        %v715 = vsub.s32 %v712, %v714
        %v716 = vrot.slane %v708, %v715
        %v718 = vunpack.c.l.s4 1983009808
        %v719 = vunpack.c.0.s8 %v718
        %v720 = vlaneseq
        %v721 = vshrl.u32 %v720, 7
        %v722 = vsub.s32 %v719, %v721
        %v723 = vrot.slane %v709, %v722
        %v724 = vcombine.low %v700, %v716
        %v725 = vcombine.high %v700, %v716
        %v727 = vunpack.c.l.s4 1934713408
        %v728 = vunpack.c.0.s8 %v727
        %v729 = vlaneseq
        %v730 = vshrl.u32 %v729, 7
        %v731 = vsub.s32 %v728, %v730
        %v732 = vrot.slane %v724, %v731
        %v734 = vunpack.c.l.s4 1934713408
        %v735 = vunpack.c.0.s8 %v734
        %v736 = vlaneseq
        %v737 = vshrl.u32 %v736, 7
        %v738 = vsub.s32 %v735, %v737
        %v739 = vrot.slane %v725, %v738
        %v740 = vcombine.low %v707, %v723
        %v741 = vcombine.high %v707, %v723
        %v743 = vunpack.c.l.s4 1934713408
        %v744 = vunpack.c.0.s8 %v743
        %v745 = vlaneseq
        %v746 = vshrl.u32 %v745, 7
        %v747 = vsub.s32 %v744, %v746
        %v748 = vrot.slane %v740, %v747
        %v750 = vunpack.c.l.s4 1934713408
        %v751 = vunpack.c.0.s8 %v750
        %v752 = vlaneseq
        %v753 = vshrl.u32 %v752, 7
        %v754 = vsub.s32 %v751, %v753
        %v755 = vrot.slane %v741, %v754
        %v756 = vcombine.high %v732, 0.0
        %v757 = vcombine.high %v739, 0.0
        %v758 = vcombine.high %v748, 0.0
        %v759 = vcombine.high %v755, 0.0
        %v760 = vcombine.low %v684, %v686
        %v761 = vcombine.high %v684, %v686
        %v763 = vunpack.c.l.s4 1983009808
        %v764 = vunpack.c.0.s8 %v763
        %v765 = vlaneseq
        %v766 = vshrl.u32 %v765, 7
        %v767 = vsub.s32 %v764, %v766
        %v768 = vrot.slane %v760, %v767
        %v770 = vunpack.c.l.s4 1983009808
        %v771 = vunpack.c.0.s8 %v770
        %v772 = vlaneseq
        %v773 = vshrl.u32 %v772, 7
        %v774 = vsub.s32 %v771, %v773
        %v775 = vrot.slane %v761, %v774
        %v776 = vcombine.low %v685, %v687
        %v777 = vcombine.high %v685, %v687
        %v779 = vunpack.c.l.s4 1983009808
        %v780 = vunpack.c.0.s8 %v779
        %v781 = vlaneseq
        %v782 = vshrl.u32 %v781, 7
        %v783 = vsub.s32 %v780, %v782
        %v784 = vrot.slane %v776, %v783
        %v786 = vunpack.c.l.s4 1983009808
        %v787 = vunpack.c.0.s8 %v786
        %v788 = vlaneseq
        %v789 = vshrl.u32 %v788, 7
        %v790 = vsub.s32 %v787, %v789
        %v791 = vrot.slane %v777, %v790
        %v792 = vcombine.low %v688, %v690
        %v793 = vcombine.high %v688, %v690
        %v795 = vunpack.c.l.s4 1983009808
        %v796 = vunpack.c.0.s8 %v795
        %v797 = vlaneseq
        %v798 = vshrl.u32 %v797, 7
        %v799 = vsub.s32 %v796, %v798
        %v800 = vrot.slane %v792, %v799
        %v802 = vunpack.c.l.s4 1983009808
        %v803 = vunpack.c.0.s8 %v802
        %v804 = vlaneseq
        %v805 = vshrl.u32 %v804, 7
        %v806 = vsub.s32 %v803, %v805
        %v807 = vrot.slane %v793, %v806
        %v808 = vcombine.low %v689, %v691
        %v809 = vcombine.high %v689, %v691
        %v811 = vunpack.c.l.s4 1983009808
        %v812 = vunpack.c.0.s8 %v811
        %v813 = vlaneseq
        %v814 = vshrl.u32 %v813, 7
        %v815 = vsub.s32 %v812, %v814
        %v816 = vrot.slane %v808, %v815
        %v818 = vunpack.c.l.s4 1983009808
        %v819 = vunpack.c.0.s8 %v818
        %v820 = vlaneseq
        %v821 = vshrl.u32 %v820, 7
        %v822 = vsub.s32 %v819, %v821
        %v823 = vrot.slane %v809, %v822
        %v824 = vcombine.low %v768, %v784
        %v825 = vcombine.high %v768, %v784
        %v827 = vunpack.c.l.s4 1934713408
        %v828 = vunpack.c.0.s8 %v827
        %v829 = vlaneseq
        %v830 = vshrl.u32 %v829, 7
        %v831 = vsub.s32 %v828, %v830
        %v832 = vrot.slane %v824, %v831
        %v834 = vunpack.c.l.s4 1934713408
        %v835 = vunpack.c.0.s8 %v834
        %v836 = vlaneseq
        %v837 = vshrl.u32 %v836, 7
        %v838 = vsub.s32 %v835, %v837
        %v839 = vrot.slane %v825, %v838
        %v840 = vcombine.low %v775, %v791
        %v841 = vcombine.high %v775, %v791
        %v843 = vunpack.c.l.s4 1934713408
        %v844 = vunpack.c.0.s8 %v843
        %v845 = vlaneseq
        %v846 = vshrl.u32 %v845, 7
        %v847 = vsub.s32 %v844, %v846
        %v848 = vrot.slane %v840, %v847
        %v850 = vunpack.c.l.s4 1934713408
        %v851 = vunpack.c.0.s8 %v850
        %v852 = vlaneseq
        %v853 = vshrl.u32 %v852, 7
        %v854 = vsub.s32 %v851, %v853
        %v855 = vrot.slane %v841, %v854
        %v856 = vcombine.low %v800, %v816
        %v857 = vcombine.high %v800, %v816
        %v859 = vunpack.c.l.s4 1934713408
        %v860 = vunpack.c.0.s8 %v859
        %v861 = vlaneseq
        %v862 = vshrl.u32 %v861, 7
        %v863 = vsub.s32 %v860, %v862
        %v864 = vrot.slane %v856, %v863
        %v866 = vunpack.c.l.s4 1934713408
        %v867 = vunpack.c.0.s8 %v866
        %v868 = vlaneseq
        %v869 = vshrl.u32 %v868, 7
        %v870 = vsub.s32 %v867, %v869
        %v871 = vrot.slane %v857, %v870
        %v872 = vcombine.low %v807, %v823
        %v873 = vcombine.high %v807, %v823
        %v875 = vunpack.c.l.s4 1934713408
        %v876 = vunpack.c.0.s8 %v875
        %v877 = vlaneseq
        %v878 = vshrl.u32 %v877, 7
        %v879 = vsub.s32 %v876, %v878
        %v880 = vrot.slane %v872, %v879
        %v882 = vunpack.c.l.s4 1934713408
        %v883 = vunpack.c.0.s8 %v882
        %v884 = vlaneseq
        %v885 = vshrl.u32 %v884, 7
        %v886 = vsub.s32 %v883, %v885
        %v887 = vrot.slane %v873, %v886
        %v888 = vcombine.low %v832, %v864
        %v889 = vcombine.high %v832, %v864
        %v890 = vcombine.low %v839, %v871
        %v891 = vcombine.high %v839, %v871
        %v892 = vcombine.low %v848, %v880
        %v893 = vcombine.high %v848, %v880
        %v894 = vcombine.low %v855, %v887
        %v895 = vcombine.high %v855, %v887
        %v896 = vcombine.low %v732, %v739
        %v898 = vunpack.c.l.s4 1983009808
        %v899 = vunpack.c.0.s8 %v898
        %v900 = vlaneseq
        %v901 = vshrl.u32 %v900, 7
        %v902 = vsub.s32 %v899, %v901
        %v903 = vrot.slane %v896, %v902
        %v904 = vcombine.low %v756, %v757
        %v906 = vunpack.c.l.s4 1983009808
        %v907 = vunpack.c.0.s8 %v906
        %v908 = vlaneseq
        %v909 = vshrl.u32 %v908, 7
        %v910 = vsub.s32 %v907, %v909
        %v911 = vrot.slane %v904, %v910
        %v912 = vcombine.low %v748, %v755
        %v914 = vunpack.c.l.s4 1983009808
        %v915 = vunpack.c.0.s8 %v914
        %v916 = vlaneseq
        %v917 = vshrl.u32 %v916, 7
        %v918 = vsub.s32 %v915, %v917
        %v919 = vrot.slane %v912, %v918
        %v920 = vcombine.low %v758, %v759
        %v922 = vunpack.c.l.s4 1983009808
        %v923 = vunpack.c.0.s8 %v922
        %v924 = vlaneseq
        %v925 = vshrl.u32 %v924, 7
        %v926 = vsub.s32 %v923, %v925
        %v927 = vrot.slane %v920, %v926
        %v928 = vcombine.low %v903, %v911
        %v929 = vcombine.high %v903, %v911
        %v931 = vunpack.c.l.s4 1934713408
        %v932 = vunpack.c.0.s8 %v931
        %v933 = vlaneseq
        %v934 = vshrl.u32 %v933, 7
        %v935 = vsub.s32 %v932, %v934
        %v936 = vrot.slane %v928, %v935
        %v938 = vunpack.c.l.s4 1934713408
        %v939 = vunpack.c.0.s8 %v938
        %v940 = vlaneseq
        %v941 = vshrl.u32 %v940, 7
        %v942 = vsub.s32 %v939, %v941
        %v943 = vrot.slane %v929, %v942
        %v944 = vcombine.low %v919, %v927
        %v945 = vcombine.high %v919, %v927
        %v947 = vunpack.c.l.s4 1934713408
        %v948 = vunpack.c.0.s8 %v947
        %v949 = vlaneseq
        %v950 = vshrl.u32 %v949, 7
        %v951 = vsub.s32 %v948, %v950
        %v952 = vrot.slane %v944, %v951
        %v954 = vunpack.c.l.s4 1934713408
        %v955 = vunpack.c.0.s8 %v954
        %v956 = vlaneseq
        %v957 = vshrl.u32 %v956, 7
        %v958 = vsub.s32 %v955, %v957
        %v959 = vrot.slane %v945, %v958
        %v960 = vcombine.low %v936, %v952
        %v961 = vcombine.high %v936, %v952
        %v962 = vcombine.low %v943, %v959
        %v963 = vcombine.high %v943, %v959
        %vm964 = vcmask 64512
        %v966 = vsel %vm964, %v888, 0
        %v969 = vsel %vm964, %v892, 0
        %971 = vmatprep.subr.mxu0 0.0
        %972 = vmatpush1.xpose.msra.mxu0 0.0
        %973 = vmatprep.subr.mxu0 0.0
        %974 = vmatpush1.xpose.msra.mxu0 0.0
        %975 = vmatprep.subr.mxu0 0.0
        %976 = vmatpush1.xpose.msra.mxu0 0.0
        %977 = vmatprep.subr.mxu0 0.0
        %978 = vmatpush1.xpose.msra.mxu0 0.0
        %979 = vmatprep.subr.mxu0 0.0
        %980 = vmatpush1.xpose.msra.mxu0 0.0
        %981 = vmatprep.subr.mxu0 0.0
        %982 = vmatpush1.xpose.msra.mxu0 0.0
        %983 = vmatprep.subr.mxu0 0.0
        %984 = vmatpush1.xpose.msra.mxu0 0.0
        %985 = vmatprep.subr.mxu0 0.0
        %986 = vmatpush1.xpose.msra.mxu0 0.0
        %987 = vmatprep.subr.mxu0 0.0
        %988 = vmatpush1.xpose.msra.mxu0 0.0
        %989 = vmatprep.subr.mxu0 0.0
        %990 = vmatpush1.xpose.msra.mxu0 0.0
        %991 = vmatprep.subr.mxu0 0.0
        %992 = vmatpush1.xpose.msra.mxu0 0.0
        %993 = vmatprep.subr.mxu0 0.0
        %994 = vmatpush1.xpose.msra.mxu0 0.0
        %995 = vmatprep.subr.mxu0 0.0
        %996 = vmatpush1.xpose.msra.mxu0 0.0
        %997 = vmatprep.subr.mxu0 0.0
        %998 = vmatpush1.xpose.msra.mxu0 0.0
        %999 = vmatprep.subr.mxu0 0.0
        %1000 = vmatpush1.xpose.msra.mxu0 0.0
        %1001 = vmatprep.subr.mxu0 0.0
        %1002 = vmatpush1.xpose.msra.mxu0 %v969
        %1003 = vmatprep.subr.mxu0 0.0
        %1004 = vmatpush2.xpose.msra.mxu0 0.0
        %1005 = vmatprep.subr.mxu0 0.0
        %1006 = vmatpush2.xpose.msra.mxu0 0.0
        %1007 = vmatprep.subr.mxu0 0.0
        %1008 = vmatpush2.xpose.msra.mxu0 0.0
        %1009 = vmatprep.subr.mxu0 0.0
        %1010 = vmatpush2.xpose.msra.mxu0 0.0
        %1011 = vmatprep.subr.mxu0 0.0
        %1012 = vmatpush2.xpose.msra.mxu0 0.0
        %1013 = vmatprep.subr.mxu0 0.0
        %1014 = vmatpush2.xpose.msra.mxu0 0.0
        %1015 = vmatprep.subr.mxu0 0.0
        %1016 = vmatpush2.xpose.msra.mxu0 0.0
        %1017 = vmatprep.subr.mxu0 0.0
        %1018 = vmatpush2.xpose.msra.mxu0 0.0
        %1019 = vmatprep.subr.mxu0 0.0
        %1020 = vmatpush2.xpose.msra.mxu0 0.0
        %1021 = vmatprep.subr.mxu0 0.0
        %1022 = vmatpush2.xpose.msra.mxu0 0.0
        %1023 = vmatprep.subr.mxu0 0.0
        %1024 = vmatpush2.xpose.msra.mxu0 0.0
        %1025 = vmatprep.subr.mxu0 0.0
        %1026 = vmatpush2.xpose.msra.mxu0 0.0
        %1027 = vmatprep.subr.mxu0 0.0
        %1028 = vmatpush2.xpose.msra.mxu0 0.0
        %1029 = vmatprep.subr.mxu0 0.0
        %1030 = vmatpush2.xpose.msra.mxu0 0.0
        %1031 = vmatprep.subr.mxu0 0.0
        %1032 = vmatpush2.xpose.msra.mxu0 0.0
        %1033 = vmatprep.subr.mxu0 0.0
        %1034 = vmatpush2.xpose.msra.mxu0 0.0
        %1035 = vmatprep.mubr.f32.mxu0 0.0
        %1036 = vmatmul.mubr.f32.gmra.mxu0 %v966
        %v1037 = vpop.f32.mrf.mxu0
        %v1038 = vadd.f32 0.0, %v1037
        %v1039 = vpop.f32.mrf.mxu0
        %1040 = vdwg.mxu0
        %v1042 = vsel %vm964, %v889, 0
        %v1045 = vsel %vm964, %v893, 0
        %1047 = vmatprep.subr.mxu0 0.0
        %1048 = vmatpush1.xpose.msra.mxu0 0.0
        %1049 = vmatprep.subr.mxu0 0.0
        %1050 = vmatpush1.xpose.msra.mxu0 0.0
        %1051 = vmatprep.subr.mxu0 0.0
        %1052 = vmatpush1.xpose.msra.mxu0 0.0
        %1053 = vmatprep.subr.mxu0 0.0
        %1054 = vmatpush1.xpose.msra.mxu0 0.0
        %1055 = vmatprep.subr.mxu0 0.0
        %1056 = vmatpush1.xpose.msra.mxu0 0.0
        %1057 = vmatprep.subr.mxu0 0.0
        %1058 = vmatpush1.xpose.msra.mxu0 0.0
        %1059 = vmatprep.subr.mxu0 0.0
        %1060 = vmatpush1.xpose.msra.mxu0 0.0
        %1061 = vmatprep.subr.mxu0 0.0
        %1062 = vmatpush1.xpose.msra.mxu0 0.0
        %1063 = vmatprep.subr.mxu0 0.0
        %1064 = vmatpush1.xpose.msra.mxu0 0.0
        %1065 = vmatprep.subr.mxu0 0.0
        %1066 = vmatpush1.xpose.msra.mxu0 0.0
        %1067 = vmatprep.subr.mxu0 0.0
        %1068 = vmatpush1.xpose.msra.mxu0 0.0
        %1069 = vmatprep.subr.mxu0 0.0
        %1070 = vmatpush1.xpose.msra.mxu0 0.0
        %1071 = vmatprep.subr.mxu0 0.0
        %1072 = vmatpush1.xpose.msra.mxu0 0.0
        %1073 = vmatprep.subr.mxu0 0.0
        %1074 = vmatpush1.xpose.msra.mxu0 0.0
        %1075 = vmatprep.subr.mxu0 0.0
        %1076 = vmatpush1.xpose.msra.mxu0 0.0
        %1077 = vmatprep.subr.mxu0 0.0
        %1078 = vmatpush1.xpose.msra.mxu0 %v1045
        %1079 = vmatprep.subr.mxu0 0.0
        %1080 = vmatpush2.xpose.msra.mxu0 0.0
        %1081 = vmatprep.subr.mxu0 0.0
        %1082 = vmatpush2.xpose.msra.mxu0 0.0
        %1083 = vmatprep.subr.mxu0 0.0
        %1084 = vmatpush2.xpose.msra.mxu0 0.0
        %1085 = vmatprep.subr.mxu0 0.0
        %1086 = vmatpush2.xpose.msra.mxu0 0.0
        %1087 = vmatprep.subr.mxu0 0.0
        %1088 = vmatpush2.xpose.msra.mxu0 0.0
        %1089 = vmatprep.subr.mxu0 0.0
        %1090 = vmatpush2.xpose.msra.mxu0 0.0
        %1091 = vmatprep.subr.mxu0 0.0
        %1092 = vmatpush2.xpose.msra.mxu0 0.0
        %1093 = vmatprep.subr.mxu0 0.0
        %1094 = vmatpush2.xpose.msra.mxu0 0.0
        %1095 = vmatprep.subr.mxu0 0.0
        %1096 = vmatpush2.xpose.msra.mxu0 0.0
        %1097 = vmatprep.subr.mxu0 0.0
        %1098 = vmatpush2.xpose.msra.mxu0 0.0
        %1099 = vmatprep.subr.mxu0 0.0
        %1100 = vmatpush2.xpose.msra.mxu0 0.0
        %1101 = vmatprep.subr.mxu0 0.0
        %1102 = vmatpush2.xpose.msra.mxu0 0.0
        %1103 = vmatprep.subr.mxu0 0.0
        %1104 = vmatpush2.xpose.msra.mxu0 0.0
        %1105 = vmatprep.subr.mxu0 0.0
        %1106 = vmatpush2.xpose.msra.mxu0 0.0
        %1107 = vmatprep.subr.mxu0 0.0
        %1108 = vmatpush2.xpose.msra.mxu0 0.0
        %1109 = vmatprep.subr.mxu0 0.0
        %1110 = vmatpush2.xpose.msra.mxu0 0.0
        %1111 = vmatprep.mubr.f32.mxu0 0.0
        %1112 = vmatmul.mubr.f32.gmra.mxu0 %v1042
        %v1113 = vpop.f32.mrf.mxu0
        %v1114 = vadd.f32 0.0, %v1113
        %v1115 = vpop.f32.mrf.mxu0
        %1116 = vdwg.mxu0
        %v1118 = vsel %vm964, %v890, 0
        %v1121 = vsel %vm964, %v894, 0
        %1123 = vmatprep.subr.mxu0 0.0
        %1124 = vmatpush1.xpose.msra.mxu0 0.0
        %1125 = vmatprep.subr.mxu0 0.0
        %1126 = vmatpush1.xpose.msra.mxu0 0.0
        %1127 = vmatprep.subr.mxu0 0.0
        %1128 = vmatpush1.xpose.msra.mxu0 0.0
        %1129 = vmatprep.subr.mxu0 0.0
        %1130 = vmatpush1.xpose.msra.mxu0 0.0
        %1131 = vmatprep.subr.mxu0 0.0
        %1132 = vmatpush1.xpose.msra.mxu0 0.0
        %1133 = vmatprep.subr.mxu0 0.0
        %1134 = vmatpush1.xpose.msra.mxu0 0.0
        %1135 = vmatprep.subr.mxu0 0.0
        %1136 = vmatpush1.xpose.msra.mxu0 0.0
        %1137 = vmatprep.subr.mxu0 0.0
        %1138 = vmatpush1.xpose.msra.mxu0 0.0
        %1139 = vmatprep.subr.mxu0 0.0
        %1140 = vmatpush1.xpose.msra.mxu0 0.0
        %1141 = vmatprep.subr.mxu0 0.0
        %1142 = vmatpush1.xpose.msra.mxu0 0.0
        %1143 = vmatprep.subr.mxu0 0.0
        %1144 = vmatpush1.xpose.msra.mxu0 0.0
        %1145 = vmatprep.subr.mxu0 0.0
        %1146 = vmatpush1.xpose.msra.mxu0 0.0
        %1147 = vmatprep.subr.mxu0 0.0
        %1148 = vmatpush1.xpose.msra.mxu0 0.0
        %1149 = vmatprep.subr.mxu0 0.0
        %1150 = vmatpush1.xpose.msra.mxu0 0.0
        %1151 = vmatprep.subr.mxu0 0.0
        %1152 = vmatpush1.xpose.msra.mxu0 0.0
        %1153 = vmatprep.subr.mxu0 0.0
        %1154 = vmatpush1.xpose.msra.mxu0 %v1121
        %1155 = vmatprep.subr.mxu0 0.0
        %1156 = vmatpush2.xpose.msra.mxu0 0.0
        %1157 = vmatprep.subr.mxu0 0.0
        %1158 = vmatpush2.xpose.msra.mxu0 0.0
        %1159 = vmatprep.subr.mxu0 0.0
        %1160 = vmatpush2.xpose.msra.mxu0 0.0
        %1161 = vmatprep.subr.mxu0 0.0
        %1162 = vmatpush2.xpose.msra.mxu0 0.0
        %1163 = vmatprep.subr.mxu0 0.0
        %1164 = vmatpush2.xpose.msra.mxu0 0.0
        %1165 = vmatprep.subr.mxu0 0.0
        %1166 = vmatpush2.xpose.msra.mxu0 0.0
        %1167 = vmatprep.subr.mxu0 0.0
        %1168 = vmatpush2.xpose.msra.mxu0 0.0
        %1169 = vmatprep.subr.mxu0 0.0
        %1170 = vmatpush2.xpose.msra.mxu0 0.0
        %1171 = vmatprep.subr.mxu0 0.0
        %1172 = vmatpush2.xpose.msra.mxu0 0.0
        %1173 = vmatprep.subr.mxu0 0.0
        %1174 = vmatpush2.xpose.msra.mxu0 0.0
        %1175 = vmatprep.subr.mxu0 0.0
        %1176 = vmatpush2.xpose.msra.mxu0 0.0
        %1177 = vmatprep.subr.mxu0 0.0
        %1178 = vmatpush2.xpose.msra.mxu0 0.0
        %1179 = vmatprep.subr.mxu0 0.0
        %1180 = vmatpush2.xpose.msra.mxu0 0.0
        %1181 = vmatprep.subr.mxu0 0.0
        %1182 = vmatpush2.xpose.msra.mxu0 0.0
        %1183 = vmatprep.subr.mxu0 0.0
        %1184 = vmatpush2.xpose.msra.mxu0 0.0
        %1185 = vmatprep.subr.mxu0 0.0
        %1186 = vmatpush2.xpose.msra.mxu0 0.0
        %1187 = vmatprep.mubr.f32.mxu0 0.0
        %1188 = vmatmul.mubr.f32.gmra.mxu0 %v1118
        %v1189 = vpop.f32.mrf.mxu0
        %v1190 = vadd.f32 0.0, %v1189
        %v1191 = vpop.f32.mrf.mxu0
        %1192 = vdwg.mxu0
        %v1194 = vsel %vm964, %v891, 0
        %v1197 = vsel %vm964, %v895, 0
        %1199 = vmatprep.subr.mxu0 0.0
        %1200 = vmatpush1.xpose.msra.mxu0 0.0
        %1201 = vmatprep.subr.mxu0 0.0
        %1202 = vmatpush1.xpose.msra.mxu0 0.0
        %1203 = vmatprep.subr.mxu0 0.0
        %1204 = vmatpush1.xpose.msra.mxu0 0.0
        %1205 = vmatprep.subr.mxu0 0.0
        %1206 = vmatpush1.xpose.msra.mxu0 0.0
        %1207 = vmatprep.subr.mxu0 0.0
        %1208 = vmatpush1.xpose.msra.mxu0 0.0
        %1209 = vmatprep.subr.mxu0 0.0
        %1210 = vmatpush1.xpose.msra.mxu0 0.0
        %1211 = vmatprep.subr.mxu0 0.0
        %1212 = vmatpush1.xpose.msra.mxu0 0.0
        %1213 = vmatprep.subr.mxu0 0.0
        %1214 = vmatpush1.xpose.msra.mxu0 0.0
        %1215 = vmatprep.subr.mxu0 0.0
        %1216 = vmatpush1.xpose.msra.mxu0 0.0
        %1217 = vmatprep.subr.mxu0 0.0
        %1218 = vmatpush1.xpose.msra.mxu0 0.0
        %1219 = vmatprep.subr.mxu0 0.0
        %1220 = vmatpush1.xpose.msra.mxu0 0.0
        %1221 = vmatprep.subr.mxu0 0.0
        %1222 = vmatpush1.xpose.msra.mxu0 0.0
        %1223 = vmatprep.subr.mxu0 0.0
        %1224 = vmatpush1.xpose.msra.mxu0 0.0
        %1225 = vmatprep.subr.mxu0 0.0
        %1226 = vmatpush1.xpose.msra.mxu0 0.0
        %1227 = vmatprep.subr.mxu0 0.0
        %1228 = vmatpush1.xpose.msra.mxu0 0.0
        %1229 = vmatprep.subr.mxu0 0.0
        %1230 = vmatpush1.xpose.msra.mxu0 %v1197
        %1231 = vmatprep.subr.mxu0 0.0
        %1232 = vmatpush2.xpose.msra.mxu0 0.0
        %1233 = vmatprep.subr.mxu0 0.0
        %1234 = vmatpush2.xpose.msra.mxu0 0.0
        %1235 = vmatprep.subr.mxu0 0.0
        %1236 = vmatpush2.xpose.msra.mxu0 0.0
        %1237 = vmatprep.subr.mxu0 0.0
        %1238 = vmatpush2.xpose.msra.mxu0 0.0
        %1239 = vmatprep.subr.mxu0 0.0
        %1240 = vmatpush2.xpose.msra.mxu0 0.0
        %1241 = vmatprep.subr.mxu0 0.0
        %1242 = vmatpush2.xpose.msra.mxu0 0.0
        %1243 = vmatprep.subr.mxu0 0.0
        %1244 = vmatpush2.xpose.msra.mxu0 0.0
        %1245 = vmatprep.subr.mxu0 0.0
        %1246 = vmatpush2.xpose.msra.mxu0 0.0
        %1247 = vmatprep.subr.mxu0 0.0
        %1248 = vmatpush2.xpose.msra.mxu0 0.0
        %1249 = vmatprep.subr.mxu0 0.0
        %1250 = vmatpush2.xpose.msra.mxu0 0.0
        %1251 = vmatprep.subr.mxu0 0.0
        %1252 = vmatpush2.xpose.msra.mxu0 0.0
        %1253 = vmatprep.subr.mxu0 0.0
        %1254 = vmatpush2.xpose.msra.mxu0 0.0
        %1255 = vmatprep.subr.mxu0 0.0
        %1256 = vmatpush2.xpose.msra.mxu0 0.0
        %1257 = vmatprep.subr.mxu0 0.0
        %1258 = vmatpush2.xpose.msra.mxu0 0.0
        %1259 = vmatprep.subr.mxu0 0.0
        %1260 = vmatpush2.xpose.msra.mxu0 0.0
        %1261 = vmatprep.subr.mxu0 0.0
        %1262 = vmatpush2.xpose.msra.mxu0 0.0
        %1263 = vmatprep.mubr.f32.mxu0 0.0
        %1264 = vmatmul.mubr.f32.gmra.mxu0 %v1194
        %v1265 = vpop.f32.mrf.mxu0
        %v1266 = vadd.f32 0.0, %v1265
        %v1267 = vpop.f32.mrf.mxu0
        %1268 = vdwg.mxu0
        %v1269 = vsel %vm964, %v1038, -inf
        %1270 = vmax.xlane.f32.xlu0 %v1269
        %v1271 = vpop.xlane.xlu0 %1270
        %v1272 = vsel %vm964, %v1114, -inf
        %1273 = vmax.xlane.f32.xlu0 %v1272
        %v1274 = vpop.xlane.xlu0 %1273
        %v1275 = vsel %vm964, %v1190, -inf
        %1276 = vmax.xlane.f32.xlu0 %v1275
        %v1277 = vpop.xlane.xlu0 %1276
        %v1278 = vsel %vm964, %v1266, -inf
        %1279 = vmax.xlane.f32.xlu0 %v1278
        %v1280 = vpop.xlane.xlu0 %1279
        %v1281 = vsub.f32 -inf, %v1271
        %v1282 = vsub.f32 -inf, %v1274
        %v1283 = vsub.f32 -inf, %v1277
        %v1284 = vsub.f32 -inf, %v1280
        %v1285 = vmul.f32 %v1281, 1.442695
        %v1286 = vpow.pop %v1285
        %v1287 = vmul.f32 %v1282, 1.442695
        %v1288 = vpow.pop %v1287
        %v1289 = vmul.f32 %v1283, 1.442695
        %v1290 = vpow.pop %v1289
        %v1291 = vmul.f32 %v1284, 1.442695
        %v1292 = vpow.pop %v1291
        %v1293 = vsub.f32 %v1038, %v1271
        %v1294 = vsub.f32 %v1114, %v1274
        %v1295 = vsub.f32 %v1190, %v1277
        %v1296 = vsub.f32 %v1266, %v1280
        %v1297 = vmul.f32 %v1293, 1.442695
        %v1298 = vpow.pop %v1297
        %v1299 = vmul.f32 %v1294, 1.442695
        %v1300 = vpow.pop %v1299
        %v1301 = vmul.f32 %v1295, 1.442695
        %v1302 = vpow.pop %v1301
        %v1303 = vmul.f32 %v1296, 1.442695
        %v1304 = vpow.pop %v1303
        %v1305 = vmul.f32 %v1286, 0.0
        %v1306 = vmul.f32 %v1288, 0.0
        %v1307 = vmul.f32 %v1290, 0.0
        %v1308 = vmul.f32 %v1292, 0.0
        %v1309 = vsel %vm964, %v1298, 0.0
        %1310 = vadd.xlane.f32.xlu0 %v1309
        %v1311 = vpop.xlane.xlu0 %1310
        %v1312 = vsel %vm964, %v1300, 0.0
        %1313 = vadd.xlane.f32.xlu0 %v1312
        %v1314 = vpop.xlane.xlu0 %1313
        %v1315 = vsel %vm964, %v1302, 0.0
        %1316 = vadd.xlane.f32.xlu0 %v1315
        %v1317 = vpop.xlane.xlu0 %1316
        %v1318 = vsel %vm964, %v1304, 0.0
        %1319 = vadd.xlane.f32.xlu0 %v1318
        %v1320 = vpop.xlane.xlu0 %1319
        %v1321 = vadd.f32 %v1305, %v1311
        %v1322 = vadd.f32 %v1306, %v1314
        %v1323 = vadd.f32 %v1307, %v1317
        %v1324 = vadd.f32 %v1308, %v1320
        %v1326 = vsel %vm964, %v1298, 0
        %1328 = vmatprep.subr.mxu0 0.0
        %1329 = vmatpush1.msra.mxu0 0.0
        %1330 = vmatprep.subr.mxu0 0.0
        %1331 = vmatpush1.msra.mxu0 0.0
        %1332 = vmatprep.subr.mxu0 0.0
        %1333 = vmatpush1.msra.mxu0 0.0
        %1334 = vmatprep.subr.mxu0 0.0
        %1335 = vmatpush1.msra.mxu0 0.0
        %1336 = vmatprep.subr.mxu0 0.0
        %1337 = vmatpush1.msra.mxu0 0.0
        %1338 = vmatprep.subr.mxu0 0.0
        %1339 = vmatpush1.msra.mxu0 0.0
        %1340 = vmatprep.subr.mxu0 0.0
        %1341 = vmatpush1.msra.mxu0 0.0
        %1342 = vmatprep.subr.mxu0 0.0
        %1343 = vmatpush1.msra.mxu0 0.0
        %1344 = vmatprep.subr.mxu0 0.0
        %1345 = vmatpush1.msra.mxu0 0.0
        %1346 = vmatprep.subr.mxu0 0.0
        %1347 = vmatpush1.msra.mxu0 0.0
        %1348 = vmatprep.subr.mxu0 0.0
        %1349 = vmatpush1.msra.mxu0 0.0
        %1350 = vmatprep.subr.mxu0 0.0
        %1351 = vmatpush1.msra.mxu0 0.0
        %1352 = vmatprep.subr.mxu0 0.0
        %1353 = vmatpush1.msra.mxu0 0.0
        %1354 = vmatprep.subr.mxu0 0.0
        %1355 = vmatpush1.msra.mxu0 0.0
        %1356 = vmatprep.subr.mxu0 0.0
        %1357 = vmatpush1.msra.mxu0 0.0
        %1358 = vmatprep.subr.mxu0 0.0
        %1359 = vmatpush1.msra.mxu0 %v960
        %1360 = vmatprep.subr.mxu0 0.0
        %1361 = vmatpush2.msra.mxu0 0.0
        %1362 = vmatprep.subr.mxu0 0.0
        %1363 = vmatpush2.msra.mxu0 0.0
        %1364 = vmatprep.subr.mxu0 0.0
        %1365 = vmatpush2.msra.mxu0 0.0
        %1366 = vmatprep.subr.mxu0 0.0
        %1367 = vmatpush2.msra.mxu0 0.0
        %1368 = vmatprep.subr.mxu0 0.0
        %1369 = vmatpush2.msra.mxu0 0.0
        %1370 = vmatprep.subr.mxu0 0.0
        %1371 = vmatpush2.msra.mxu0 0.0
        %1372 = vmatprep.subr.mxu0 0.0
        %1373 = vmatpush2.msra.mxu0 0.0
        %1374 = vmatprep.subr.mxu0 0.0
        %1375 = vmatpush2.msra.mxu0 0.0
        %1376 = vmatprep.subr.mxu0 0.0
        %1377 = vmatpush2.msra.mxu0 0.0
        %1378 = vmatprep.subr.mxu0 0.0
        %1379 = vmatpush2.msra.mxu0 0.0
        %1380 = vmatprep.subr.mxu0 0.0
        %1381 = vmatpush2.msra.mxu0 0.0
        %1382 = vmatprep.subr.mxu0 0.0
        %1383 = vmatpush2.msra.mxu0 0.0
        %1384 = vmatprep.subr.mxu0 0.0
        %1385 = vmatpush2.msra.mxu0 0.0
        %1386 = vmatprep.subr.mxu0 0.0
        %1387 = vmatpush2.msra.mxu0 0.0
        %1388 = vmatprep.subr.mxu0 0.0
        %1389 = vmatpush2.msra.mxu0 0.0
        %1390 = vmatprep.subr.mxu0 0.0
        %1391 = vmatpush2.msra.mxu0 0.0
        %1392 = vmatprep.mubr.f32.mxu0 0.0
        %1393 = vmatmul.mubr.f32.gmra.mxu0 %v1326
        %v1394 = vpop.f32.mrf.mxu0
        %v1395 = vadd.f32 0.0, %v1394
        %v1396 = vpop.f32.mrf.mxu0
        %1397 = vdwg.mxu0
        %v1399 = vsel %vm964, %v1300, 0
        %1401 = vmatprep.subr.mxu0 0.0
        %1402 = vmatpush1.msra.mxu0 0.0
        %1403 = vmatprep.subr.mxu0 0.0
        %1404 = vmatpush1.msra.mxu0 0.0
        %1405 = vmatprep.subr.mxu0 0.0
        %1406 = vmatpush1.msra.mxu0 0.0
        %1407 = vmatprep.subr.mxu0 0.0
        %1408 = vmatpush1.msra.mxu0 0.0
        %1409 = vmatprep.subr.mxu0 0.0
        %1410 = vmatpush1.msra.mxu0 0.0
        %1411 = vmatprep.subr.mxu0 0.0
        %1412 = vmatpush1.msra.mxu0 0.0
        %1413 = vmatprep.subr.mxu0 0.0
        %1414 = vmatpush1.msra.mxu0 0.0
        %1415 = vmatprep.subr.mxu0 0.0
        %1416 = vmatpush1.msra.mxu0 0.0
        %1417 = vmatprep.subr.mxu0 0.0
        %1418 = vmatpush1.msra.mxu0 0.0
        %1419 = vmatprep.subr.mxu0 0.0
        %1420 = vmatpush1.msra.mxu0 0.0
        %1421 = vmatprep.subr.mxu0 0.0
        %1422 = vmatpush1.msra.mxu0 0.0
        %1423 = vmatprep.subr.mxu0 0.0
        %1424 = vmatpush1.msra.mxu0 0.0
        %1425 = vmatprep.subr.mxu0 0.0
        %1426 = vmatpush1.msra.mxu0 0.0
        %1427 = vmatprep.subr.mxu0 0.0
        %1428 = vmatpush1.msra.mxu0 0.0
        %1429 = vmatprep.subr.mxu0 0.0
        %1430 = vmatpush1.msra.mxu0 0.0
        %1431 = vmatprep.subr.mxu0 0.0
        %1432 = vmatpush1.msra.mxu0 %v961
        %1433 = vmatprep.subr.mxu0 0.0
        %1434 = vmatpush2.msra.mxu0 0.0
        %1435 = vmatprep.subr.mxu0 0.0
        %1436 = vmatpush2.msra.mxu0 0.0
        %1437 = vmatprep.subr.mxu0 0.0
        %1438 = vmatpush2.msra.mxu0 0.0
        %1439 = vmatprep.subr.mxu0 0.0
        %1440 = vmatpush2.msra.mxu0 0.0
        %1441 = vmatprep.subr.mxu0 0.0
        %1442 = vmatpush2.msra.mxu0 0.0
        %1443 = vmatprep.subr.mxu0 0.0
        %1444 = vmatpush2.msra.mxu0 0.0
        %1445 = vmatprep.subr.mxu0 0.0
        %1446 = vmatpush2.msra.mxu0 0.0
        %1447 = vmatprep.subr.mxu0 0.0
        %1448 = vmatpush2.msra.mxu0 0.0
        %1449 = vmatprep.subr.mxu0 0.0
        %1450 = vmatpush2.msra.mxu0 0.0
        %1451 = vmatprep.subr.mxu0 0.0
        %1452 = vmatpush2.msra.mxu0 0.0
        %1453 = vmatprep.subr.mxu0 0.0
        %1454 = vmatpush2.msra.mxu0 0.0
        %1455 = vmatprep.subr.mxu0 0.0
        %1456 = vmatpush2.msra.mxu0 0.0
        %1457 = vmatprep.subr.mxu0 0.0
        %1458 = vmatpush2.msra.mxu0 0.0
        %1459 = vmatprep.subr.mxu0 0.0
        %1460 = vmatpush2.msra.mxu0 0.0
        %1461 = vmatprep.subr.mxu0 0.0
        %1462 = vmatpush2.msra.mxu0 0.0
        %1463 = vmatprep.subr.mxu0 0.0
        %1464 = vmatpush2.msra.mxu0 0.0
        %1465 = vmatprep.mubr.f32.mxu0 0.0
        %1466 = vmatmul.mubr.f32.gmra.mxu0 %v1399
        %v1467 = vpop.f32.mrf.mxu0
        %v1468 = vadd.f32 0.0, %v1467
        %v1469 = vpop.f32.mrf.mxu0
        %1470 = vdwg.mxu0
        %v1472 = vsel %vm964, %v1302, 0
        %1474 = vmatprep.subr.mxu0 0.0
        %1475 = vmatpush1.msra.mxu0 0.0
        %1476 = vmatprep.subr.mxu0 0.0
        %1477 = vmatpush1.msra.mxu0 0.0
        %1478 = vmatprep.subr.mxu0 0.0
        %1479 = vmatpush1.msra.mxu0 0.0
        %1480 = vmatprep.subr.mxu0 0.0
        %1481 = vmatpush1.msra.mxu0 0.0
        %1482 = vmatprep.subr.mxu0 0.0
        %1483 = vmatpush1.msra.mxu0 0.0
        %1484 = vmatprep.subr.mxu0 0.0
        %1485 = vmatpush1.msra.mxu0 0.0
        %1486 = vmatprep.subr.mxu0 0.0
        %1487 = vmatpush1.msra.mxu0 0.0
        %1488 = vmatprep.subr.mxu0 0.0
        %1489 = vmatpush1.msra.mxu0 0.0
        %1490 = vmatprep.subr.mxu0 0.0
        %1491 = vmatpush1.msra.mxu0 0.0
        %1492 = vmatprep.subr.mxu0 0.0
        %1493 = vmatpush1.msra.mxu0 0.0
        %1494 = vmatprep.subr.mxu0 0.0
        %1495 = vmatpush1.msra.mxu0 0.0
        %1496 = vmatprep.subr.mxu0 0.0
        %1497 = vmatpush1.msra.mxu0 0.0
        %1498 = vmatprep.subr.mxu0 0.0
        %1499 = vmatpush1.msra.mxu0 0.0
        %1500 = vmatprep.subr.mxu0 0.0
        %1501 = vmatpush1.msra.mxu0 0.0
        %1502 = vmatprep.subr.mxu0 0.0
        %1503 = vmatpush1.msra.mxu0 0.0
        %1504 = vmatprep.subr.mxu0 0.0
        %1505 = vmatpush1.msra.mxu0 %v962
        %1506 = vmatprep.subr.mxu0 0.0
        %1507 = vmatpush2.msra.mxu0 0.0
        %1508 = vmatprep.subr.mxu0 0.0
        %1509 = vmatpush2.msra.mxu0 0.0
        %1510 = vmatprep.subr.mxu0 0.0
        %1511 = vmatpush2.msra.mxu0 0.0
        %1512 = vmatprep.subr.mxu0 0.0
        %1513 = vmatpush2.msra.mxu0 0.0
        %1514 = vmatprep.subr.mxu0 0.0
        %1515 = vmatpush2.msra.mxu0 0.0
        %1516 = vmatprep.subr.mxu0 0.0
        %1517 = vmatpush2.msra.mxu0 0.0
        %1518 = vmatprep.subr.mxu0 0.0
        %1519 = vmatpush2.msra.mxu0 0.0
        %1520 = vmatprep.subr.mxu0 0.0
        %1521 = vmatpush2.msra.mxu0 0.0
        %1522 = vmatprep.subr.mxu0 0.0
        %1523 = vmatpush2.msra.mxu0 0.0
        %1524 = vmatprep.subr.mxu0 0.0
        %1525 = vmatpush2.msra.mxu0 0.0
        %1526 = vmatprep.subr.mxu0 0.0
        %1527 = vmatpush2.msra.mxu0 0.0
        %1528 = vmatprep.subr.mxu0 0.0
        %1529 = vmatpush2.msra.mxu0 0.0
        %1530 = vmatprep.subr.mxu0 0.0
        %1531 = vmatpush2.msra.mxu0 0.0
        %1532 = vmatprep.subr.mxu0 0.0
        %1533 = vmatpush2.msra.mxu0 0.0
        %1534 = vmatprep.subr.mxu0 0.0
        %1535 = vmatpush2.msra.mxu0 0.0
        %1536 = vmatprep.subr.mxu0 0.0
        %1537 = vmatpush2.msra.mxu0 0.0
        %1538 = vmatprep.mubr.f32.mxu0 0.0
        %1539 = vmatmul.mubr.f32.gmra.mxu0 %v1472
        %v1540 = vpop.f32.mrf.mxu0
        %v1541 = vadd.f32 0.0, %v1540
        %v1542 = vpop.f32.mrf.mxu0
        %1543 = vdwg.mxu0
        %v1545 = vsel %vm964, %v1304, 0
        %1547 = vmatprep.subr.mxu0 0.0
        %1548 = vmatpush1.msra.mxu0 0.0
        %1549 = vmatprep.subr.mxu0 0.0
        %1550 = vmatpush1.msra.mxu0 0.0
        %1551 = vmatprep.subr.mxu0 0.0
        %1552 = vmatpush1.msra.mxu0 0.0
        %1553 = vmatprep.subr.mxu0 0.0
        %1554 = vmatpush1.msra.mxu0 0.0
        %1555 = vmatprep.subr.mxu0 0.0
        %1556 = vmatpush1.msra.mxu0 0.0
        %1557 = vmatprep.subr.mxu0 0.0
        %1558 = vmatpush1.msra.mxu0 0.0
        %1559 = vmatprep.subr.mxu0 0.0
        %1560 = vmatpush1.msra.mxu0 0.0
        %1561 = vmatprep.subr.mxu0 0.0
        %1562 = vmatpush1.msra.mxu0 0.0
        %1563 = vmatprep.subr.mxu0 0.0
        %1564 = vmatpush1.msra.mxu0 0.0
        %1565 = vmatprep.subr.mxu0 0.0
        %1566 = vmatpush1.msra.mxu0 0.0
        %1567 = vmatprep.subr.mxu0 0.0
        %1568 = vmatpush1.msra.mxu0 0.0
        %1569 = vmatprep.subr.mxu0 0.0
        %1570 = vmatpush1.msra.mxu0 0.0
        %1571 = vmatprep.subr.mxu0 0.0
        %1572 = vmatpush1.msra.mxu0 0.0
        %1573 = vmatprep.subr.mxu0 0.0
        %1574 = vmatpush1.msra.mxu0 0.0
        %1575 = vmatprep.subr.mxu0 0.0
        %1576 = vmatpush1.msra.mxu0 0.0
        %1577 = vmatprep.subr.mxu0 0.0
        %1578 = vmatpush1.msra.mxu0 %v963
        %1579 = vmatprep.subr.mxu0 0.0
        %1580 = vmatpush2.msra.mxu0 0.0
        %1581 = vmatprep.subr.mxu0 0.0
        %1582 = vmatpush2.msra.mxu0 0.0
        %1583 = vmatprep.subr.mxu0 0.0
        %1584 = vmatpush2.msra.mxu0 0.0
        %1585 = vmatprep.subr.mxu0 0.0
        %1586 = vmatpush2.msra.mxu0 0.0
        %1587 = vmatprep.subr.mxu0 0.0
        %1588 = vmatpush2.msra.mxu0 0.0
        %1589 = vmatprep.subr.mxu0 0.0
        %1590 = vmatpush2.msra.mxu0 0.0
        %1591 = vmatprep.subr.mxu0 0.0
        %1592 = vmatpush2.msra.mxu0 0.0
        %1593 = vmatprep.subr.mxu0 0.0
        %1594 = vmatpush2.msra.mxu0 0.0
        %1595 = vmatprep.subr.mxu0 0.0
        %1596 = vmatpush2.msra.mxu0 0.0
        %1597 = vmatprep.subr.mxu0 0.0
        %1598 = vmatpush2.msra.mxu0 0.0
        %1599 = vmatprep.subr.mxu0 0.0
        %1600 = vmatpush2.msra.mxu0 0.0
        %1601 = vmatprep.subr.mxu0 0.0
        %1602 = vmatpush2.msra.mxu0 0.0
        %1603 = vmatprep.subr.mxu0 0.0
        %1604 = vmatpush2.msra.mxu0 0.0
        %1605 = vmatprep.subr.mxu0 0.0
        %1606 = vmatpush2.msra.mxu0 0.0
        %1607 = vmatprep.subr.mxu0 0.0
        %1608 = vmatpush2.msra.mxu0 0.0
        %1609 = vmatprep.subr.mxu0 0.0
        %1610 = vmatpush2.msra.mxu0 0.0
        %1611 = vmatprep.mubr.f32.mxu0 0.0
        %1612 = vmatmul.mubr.f32.gmra.mxu0 %v1545
        %v1613 = vpop.f32.mrf.mxu0
        %v1614 = vadd.f32 0.0, %v1613
        %v1615 = vpop.f32.mrf.mxu0
        %1616 = vdwg.mxu0
        %v1617 = vadd.f32 %v1305, %v1395
        %v1618 = vadd.f32 %v1306, %v1468
        %v1619 = vadd.f32 %v1307, %v1541
        %v1620 = vadd.f32 %v1308, %v1614
        %v1621 = vrcp.pop %v1321
        %v1622 = vrcp.pop %v1322
        %v1623 = vrcp.pop %v1323
        %v1624 = vrcp.pop %v1324
        %v1625 = vmul.f32 %v1617, %v1621
        %v1626 = vmul.f32 %v1618, %v1622
        %v1627 = vmul.f32 %v1619, %v1623
        %v1628 = vmul.f32 %v1620, %v1624
        %v1629 = vcombine.low %v1625, %v1627
        %v1630 = vcombine.high %v1625, %v1627
        %v1632 = vunpack.c.l.s4 1983009808
        %v1633 = vunpack.c.0.s8 %v1632
        %v1634 = vlaneseq
        %v1635 = vshrl.u32 %v1634, 7
        %v1636 = vsub.s32 %v1633, %v1635
        %v1637 = vrot.slane %v1629, %v1636
        %v1639 = vunpack.c.l.s4 1983009808
        %v1640 = vunpack.c.0.s8 %v1639
        %v1641 = vlaneseq
        %v1642 = vshrl.u32 %v1641, 7
        %v1643 = vsub.s32 %v1640, %v1642
        %v1644 = vrot.slane %v1630, %v1643
        %v1645 = vcombine.low %v1626, %v1628
        %v1646 = vcombine.high %v1626, %v1628
        %v1648 = vunpack.c.l.s4 1983009808
        %v1649 = vunpack.c.0.s8 %v1648
        %v1650 = vlaneseq
        %v1651 = vshrl.u32 %v1650, 7
        %v1652 = vsub.s32 %v1649, %v1651
        %v1653 = vrot.slane %v1645, %v1652
        %v1655 = vunpack.c.l.s4 1983009808
        %v1656 = vunpack.c.0.s8 %v1655
        %v1657 = vlaneseq
        %v1658 = vshrl.u32 %v1657, 7
        %v1659 = vsub.s32 %v1656, %v1658
        %v1660 = vrot.slane %v1646, %v1659
        %v1661 = vcombine.low %v1637, %v1653
        %v1662 = vcombine.high %v1637, %v1653
        %v1664 = vunpack.c.l.s4 1934713408
        %v1665 = vunpack.c.0.s8 %v1664
        %v1666 = vlaneseq
        %v1667 = vshrl.u32 %v1666, 7
        %v1668 = vsub.s32 %v1665, %v1667
        %v1669 = vrot.slane %v1661, %v1668
        %v1671 = vunpack.c.l.s4 1934713408
        %v1672 = vunpack.c.0.s8 %v1671
        %v1673 = vlaneseq
        %v1674 = vshrl.u32 %v1673, 7
        %v1675 = vsub.s32 %v1672, %v1674
        %v1676 = vrot.slane %v1662, %v1675
        %v1677 = vcombine.low %v1644, %v1660
        %v1678 = vcombine.high %v1644, %v1660
        %v1680 = vunpack.c.l.s4 1934713408
        %v1681 = vunpack.c.0.s8 %v1680
        %v1682 = vlaneseq
        %v1683 = vshrl.u32 %v1682, 7
        %v1684 = vsub.s32 %v1681, %v1683
        %v1685 = vrot.slane %v1677, %v1684
        %v1687 = vunpack.c.l.s4 1934713408
        %v1688 = vunpack.c.0.s8 %v1687
        %v1689 = vlaneseq
        %v1690 = vshrl.u32 %v1689, 7
        %v1691 = vsub.s32 %v1688, %v1690
        %v1692 = vrot.slane %v1678, %v1691
        %v1693 = vcombine.high %v1669, 0.0
        %v1694 = vcombine.high %v1676, 0.0
        %v1695 = vcombine.high %v1685, 0.0
        %v1696 = vcombine.high %v1692, 0.0
        %v1697 = vcombine.low %v1669, %v1676
        %v1699 = vunpack.c.l.s4 1983009808
        %v1700 = vunpack.c.0.s8 %v1699
        %v1701 = vlaneseq
        %v1702 = vshrl.u32 %v1701, 7
        %v1703 = vsub.s32 %v1700, %v1702
        %v1704 = vrot.slane %v1697, %v1703
        %v1705 = vcombine.low %v1693, %v1694
        %v1707 = vunpack.c.l.s4 1983009808
        %v1708 = vunpack.c.0.s8 %v1707
        %v1709 = vlaneseq
        %v1710 = vshrl.u32 %v1709, 7
        %v1711 = vsub.s32 %v1708, %v1710
        %v1712 = vrot.slane %v1705, %v1711
        %v1713 = vcombine.low %v1685, %v1692
        %v1715 = vunpack.c.l.s4 1983009808
        %v1716 = vunpack.c.0.s8 %v1715
        %v1717 = vlaneseq
        %v1718 = vshrl.u32 %v1717, 7
        %v1719 = vsub.s32 %v1716, %v1718
        %v1720 = vrot.slane %v1713, %v1719
        %v1721 = vcombine.low %v1695, %v1696
        %v1723 = vunpack.c.l.s4 1983009808
        %v1724 = vunpack.c.0.s8 %v1723
        %v1725 = vlaneseq
        %v1726 = vshrl.u32 %v1725, 7
        %v1727 = vsub.s32 %v1724, %v1726
        %v1728 = vrot.slane %v1721, %v1727
        %v1729 = vcombine.low %v1704, %v1712
        %v1730 = vcombine.high %v1704, %v1712
        %v1732 = vunpack.c.l.s4 1934713408
        %v1733 = vunpack.c.0.s8 %v1732
        %v1734 = vlaneseq
        %v1735 = vshrl.u32 %v1734, 7
        %v1736 = vsub.s32 %v1733, %v1735
        %v1737 = vrot.slane %v1729, %v1736
        %v1739 = vunpack.c.l.s4 1934713408
        %v1740 = vunpack.c.0.s8 %v1739
        %v1741 = vlaneseq
        %v1742 = vshrl.u32 %v1741, 7
        %v1743 = vsub.s32 %v1740, %v1742
        %v1744 = vrot.slane %v1730, %v1743
        %v1745 = vcombine.low %v1720, %v1728
        %v1746 = vcombine.high %v1720, %v1728
        %v1748 = vunpack.c.l.s4 1934713408
        %v1749 = vunpack.c.0.s8 %v1748
        %v1750 = vlaneseq
        %v1751 = vshrl.u32 %v1750, 7
        %v1752 = vsub.s32 %v1749, %v1751
        %v1753 = vrot.slane %v1745, %v1752
        %v1755 = vunpack.c.l.s4 1934713408
        %v1756 = vunpack.c.0.s8 %v1755
        %v1757 = vlaneseq
        %v1758 = vshrl.u32 %v1757, 7
        %v1759 = vsub.s32 %v1756, %v1758
        %v1760 = vrot.slane %v1746, %v1759
        %v1761 = vcombine.low %v1737, %v1753
        %v1762 = vcombine.high %v1737, %v1753
        %v1763 = vcombine.low %v1744, %v1760
        %v1764 = vcombine.high %v1744, %v1760
        %1766 = vrot.lane.b32.xlu0 %v1762, 8
        %v1767 = vpop.permute.xlu0 %1766
        %1770 = vrot.lane.b32.xlu0 %v1763, 16
        %v1771 = vpop.permute.xlu0 %1770
        %1774 = vrot.lane.b32.xlu0 %v1764, 24
        %v1775 = vpop.permute.xlu0 %1774
        %v1777 = vsel %vm964, %v1761, %v1767
        %vm1778 = vcmask 130048
        %v1779 = vsel %vm1778, %v1777, %v1771
        %vm1780 = vcmask 195584
        %v1781 = vsel %vm1780, %v1779, %v1775
        %v1782 = vld [vmem:[%s3] sm:$0xff]
        %v1783 = vld [vmem:[%s3 + $0x8] sm:$0xff]
        %v1784 = vld [vmem:[%s3 + $0x10] sm:$0xff]
        %v1785 = vld [vmem:[%s3 + $0x18] sm:$0xff]
        %v1786 = vld [vmem:[%s4] sm:$0x1]
        %v1788 = vlaneseq
        %v1789 = vshrl.u32 %v1788, 7
        %v1790 = vsub.s32 0, %v1789
        %v1791 = vrot.slane %v1786, %v1790
        %v1794 = vsel %vm448, %v1781, 0
        %1796 = vmatprep.subr.mxu0 0.0
        %1797 = vmatpush1.msra.mxu0 0.0
        %1798 = vmatprep.subr.mxu0 0.0
        %1799 = vmatpush1.msra.mxu0 0.0
        %1800 = vmatprep.subr.mxu0 0.0
        %1801 = vmatpush1.msra.mxu0 0.0
        %1802 = vmatprep.subr.mxu0 0.0
        %1803 = vmatpush1.msra.mxu0 0.0
        %1804 = vmatprep.subr.mxu0 0.0
        %1805 = vmatpush1.msra.mxu0 0.0
        %1806 = vmatprep.subr.mxu0 0.0
        %1807 = vmatpush1.msra.mxu0 0.0
        %1808 = vmatprep.subr.mxu0 0.0
        %1809 = vmatpush1.msra.mxu0 0.0
        %1810 = vmatprep.subr.mxu0 0.0
        %1811 = vmatpush1.msra.mxu0 0.0
        %1812 = vmatprep.subr.mxu0 0.0
        %1813 = vmatpush1.msra.mxu0 0.0
        %1814 = vmatprep.subr.mxu0 0.0
        %1815 = vmatpush1.msra.mxu0 0.0
        %1816 = vmatprep.subr.mxu0 0.0
        %1817 = vmatpush1.msra.mxu0 0.0
        %1818 = vmatprep.subr.mxu0 0.0
        %1819 = vmatpush1.msra.mxu0 0.0
        %1820 = vmatprep.subr.mxu0 0.0
        %1821 = vmatpush1.msra.mxu0 %v1785
        %1822 = vmatprep.subr.mxu0 0.0
        %1823 = vmatpush1.msra.mxu0 %v1784
        %1824 = vmatprep.subr.mxu0 0.0
        %1825 = vmatpush1.msra.mxu0 %v1783
        %1826 = vmatprep.subr.mxu0 0.0
        %1827 = vmatpush1.msra.mxu0 %v1782
        %1828 = vmatprep.subr.mxu0 0.0
        %1829 = vmatpush2.msra.mxu0 0.0
        %1830 = vmatprep.subr.mxu0 0.0
        %1831 = vmatpush2.msra.mxu0 0.0
        %1832 = vmatprep.subr.mxu0 0.0
        %1833 = vmatpush2.msra.mxu0 0.0
        %1834 = vmatprep.subr.mxu0 0.0
        %1835 = vmatpush2.msra.mxu0 0.0
        %1836 = vmatprep.subr.mxu0 0.0
        %1837 = vmatpush2.msra.mxu0 0.0
        %1838 = vmatprep.subr.mxu0 0.0
        %1839 = vmatpush2.msra.mxu0 0.0
        %1840 = vmatprep.subr.mxu0 0.0
        %1841 = vmatpush2.msra.mxu0 0.0
        %1842 = vmatprep.subr.mxu0 0.0
        %1843 = vmatpush2.msra.mxu0 0.0
        %1844 = vmatprep.subr.mxu0 0.0
        %1845 = vmatpush2.msra.mxu0 0.0
        %1846 = vmatprep.subr.mxu0 0.0
        %1847 = vmatpush2.msra.mxu0 0.0
        %1848 = vmatprep.subr.mxu0 0.0
        %1849 = vmatpush2.msra.mxu0 0.0
        %1850 = vmatprep.subr.mxu0 0.0
        %1851 = vmatpush2.msra.mxu0 0.0
        %1852 = vmatprep.subr.mxu0 0.0
        %1853 = vmatpush2.msra.mxu0 0.0
        %1854 = vmatprep.subr.mxu0 0.0
        %1855 = vmatpush2.msra.mxu0 0.0
        %1856 = vmatprep.subr.mxu0 0.0
        %1857 = vmatpush2.msra.mxu0 0.0
        %1858 = vmatprep.subr.mxu0 0.0
        %1859 = vmatpush2.msra.mxu0 0.0
        %1860 = vmatprep.mubr.f32.mxu0 0.0
        %1861 = vmatmul.mubr.f32.gmra.mxu0 %v1794
        %v1862 = vpop.f32.mrf.mxu0
        %v1863 = vadd.f32 %v1791, %v1862
        %v1864 = vpop.f32.mrf.mxu0
        %1865 = vdwg.mxu0
        %v1866 = vadd.f32 %v436, %v1863
        %v1867 = vld [vmem:[%s5] sm:$0x1]
        %v1868 = vld [vmem:[%s6] sm:$0x1]
        %v1869 = vsel %vm448, %v1866, 0.0
        %1870 = vadd.xlane.f32.xlu0 %v1869
        %v1871 = vpop.xlane.xlu0 %1870
        %v1872 = vrcp.pop 32.0
        %v1873 = vmul.f32 %v1871, %v1872
        %v1874 = vsub.f32 %v1866, %v1873
        %v1875 = vmul.f32 %v1874, %v1874
        %v1876 = vsel %vm448, %v1875, 0.0
        %1877 = vadd.xlane.f32.xlu0 %v1876
        %v1878 = vpop.xlane.xlu0 %1877
        %v1879 = vmul.f32 %v1878, %v1872
        %v1880 = vadd.f32 %v1879, 1e-05
        %v1881 = vrsqrt.pop %v1880
        %v1882 = vmul.f32 %v1874, %v1881
        %v1884 = vlaneseq
        %v1885 = vshrl.u32 %v1884, 7
        %v1886 = vsub.s32 0, %v1885
        %v1887 = vrot.slane %v1867, %v1886
        %v1889 = vmul.f32 %v1882, %v1887
        %v1891 = vlaneseq
        %v1892 = vshrl.u32 %v1891, 7
        %v1893 = vsub.s32 0, %v1892
        %v1894 = vrot.slane %v1868, %v1893
        %v1896 = vadd.f32 %v1889, %v1894
        %v1897 = vld [vmem:[%s7] sm:$0xff]
        %v1898 = vld [vmem:[%s7 + $0x8] sm:$0xff]
        %v1899 = vld [vmem:[%s7 + $0x10] sm:$0xff]
        %v1900 = vld [vmem:[%s7 + $0x18] sm:$0xff]
        %v1901 = vld [vmem:[%s8] sm:$0x1]
        %v1903 = vlaneseq
        %v1904 = vshrl.u32 %v1903, 7
        %v1905 = vsub.s32 0, %v1904
        %v1906 = vrot.slane %v1901, %v1905
        %v1909 = vsel %vm448, %v1896, 0
        %1911 = vmatprep.subr.mxu0 0.0
        %1912 = vmatpush1.msra.mxu0 0.0
        %1913 = vmatprep.subr.mxu0 0.0
        %1914 = vmatpush1.msra.mxu0 0.0
        %1915 = vmatprep.subr.mxu0 0.0
        %1916 = vmatpush1.msra.mxu0 0.0
        %1917 = vmatprep.subr.mxu0 0.0
        %1918 = vmatpush1.msra.mxu0 0.0
        %1919 = vmatprep.subr.mxu0 0.0
        %1920 = vmatpush1.msra.mxu0 0.0
        %1921 = vmatprep.subr.mxu0 0.0
        %1922 = vmatpush1.msra.mxu0 0.0
        %1923 = vmatprep.subr.mxu0 0.0
        %1924 = vmatpush1.msra.mxu0 0.0
        %1925 = vmatprep.subr.mxu0 0.0
        %1926 = vmatpush1.msra.mxu0 0.0
        %1927 = vmatprep.subr.mxu0 0.0
        %1928 = vmatpush1.msra.mxu0 0.0
        %1929 = vmatprep.subr.mxu0 0.0
        %1930 = vmatpush1.msra.mxu0 0.0
        %1931 = vmatprep.subr.mxu0 0.0
        %1932 = vmatpush1.msra.mxu0 0.0
        %1933 = vmatprep.subr.mxu0 0.0
        %1934 = vmatpush1.msra.mxu0 0.0
        %1935 = vmatprep.subr.mxu0 0.0
        %1936 = vmatpush1.msra.mxu0 %v1900
        %1937 = vmatprep.subr.mxu0 0.0
        %1938 = vmatpush1.msra.mxu0 %v1899
        %1939 = vmatprep.subr.mxu0 0.0
        %1940 = vmatpush1.msra.mxu0 %v1898
        %1941 = vmatprep.subr.mxu0 0.0
        %1942 = vmatpush1.msra.mxu0 %v1897
        %1943 = vmatprep.subr.mxu0 0.0
        %1944 = vmatpush2.msra.mxu0 0.0
        %1945 = vmatprep.subr.mxu0 0.0
        %1946 = vmatpush2.msra.mxu0 0.0
        %1947 = vmatprep.subr.mxu0 0.0
        %1948 = vmatpush2.msra.mxu0 0.0
        %1949 = vmatprep.subr.mxu0 0.0
        %1950 = vmatpush2.msra.mxu0 0.0
        %1951 = vmatprep.subr.mxu0 0.0
        %1952 = vmatpush2.msra.mxu0 0.0
        %1953 = vmatprep.subr.mxu0 0.0
        %1954 = vmatpush2.msra.mxu0 0.0
        %1955 = vmatprep.subr.mxu0 0.0
        %1956 = vmatpush2.msra.mxu0 0.0
        %1957 = vmatprep.subr.mxu0 0.0
        %1958 = vmatpush2.msra.mxu0 0.0
        %1959 = vmatprep.subr.mxu0 0.0
        %1960 = vmatpush2.msra.mxu0 0.0
        %1961 = vmatprep.subr.mxu0 0.0
        %1962 = vmatpush2.msra.mxu0 0.0
        %1963 = vmatprep.subr.mxu0 0.0
        %1964 = vmatpush2.msra.mxu0 0.0
        %1965 = vmatprep.subr.mxu0 0.0
        %1966 = vmatpush2.msra.mxu0 0.0
        %1967 = vmatprep.subr.mxu0 0.0
        %1968 = vmatpush2.msra.mxu0 0.0
        %1969 = vmatprep.subr.mxu0 0.0
        %1970 = vmatpush2.msra.mxu0 0.0
        %1971 = vmatprep.subr.mxu0 0.0
        %1972 = vmatpush2.msra.mxu0 0.0
        %1973 = vmatprep.subr.mxu0 0.0
        %1974 = vmatpush2.msra.mxu0 0.0
        %1975 = vmatprep.mubr.f32.mxu0 0.0
        %1976 = vmatmul.mubr.f32.gmra.mxu0 %v1909
        %v1977 = vpop.f32.mrf.mxu0
        %v1978 = vadd.f32 %v1906, %v1977
        %v1979 = vpop.f32.mrf.mxu0
        %1980 = vdwg.mxu0
        %v1981 = vxor.u32 %v1978, 2147483648
        %v1982 = vmul.f32 %v1981, 1.442695
        %v1983 = vpow.pop %v1982
        %v1984 = vadd.f32 %v1983, 1.0
        %v1985 = vrcp.pop %v1984
        %v1986 = vmul.f32 1.0, %v1985
        %v1987 = vmul.f32 %v1978, %v1986
        %v1988 = vld [vmem:[%s9] sm:$0xff]
        %v1989 = vld [vmem:[%s9 + $0x8] sm:$0xff]
        %v1990 = vld [vmem:[%s9 + $0x10] sm:$0xff]
        %v1991 = vld [vmem:[%s9 + $0x18] sm:$0xff]
        %v1992 = vld [vmem:[%s9 + $0x20] sm:$0xff]
        %v1993 = vld [vmem:[%s9 + $0x28] sm:$0xff]
        %v1994 = vld [vmem:[%s9 + $0x30] sm:$0xff]
        %v1995 = vld [vmem:[%s9 + $0x38] sm:$0xff]
        %v1996 = vld [vmem:[%s9 + $0x40] sm:$0xff]
        %v1997 = vld [vmem:[%s9 + $0x48] sm:$0xff]
        %v1998 = vld [vmem:[%s9 + $0x50] sm:$0xff]
        %v1999 = vld [vmem:[%s9 + $0x58] sm:$0xff]
        %v2000 = vld [vmem:[%s9 + $0x60] sm:$0xff]
        %v2001 = vld [vmem:[%s9 + $0x68] sm:$0xff]
        %v2002 = vld [vmem:[%s9 + $0x70] sm:$0xff]
        %v2003 = vld [vmem:[%s9 + $0x78] sm:$0xff]
        %v2004 = vld [vmem:[%s10] sm:$0x1]
        %v2006 = vlaneseq
        %v2007 = vshrl.u32 %v2006, 7
        %v2008 = vsub.s32 0, %v2007
        %v2009 = vrot.slane %v2004, %v2008
        %2011 = vmatprep.subr.mxu0 0.0
        %2012 = vmatpush1.msra.mxu0 %v2003
        %2013 = vmatprep.subr.mxu0 0.0
        %2014 = vmatpush1.msra.mxu0 %v2002
        %2015 = vmatprep.subr.mxu0 0.0
        %2016 = vmatpush1.msra.mxu0 %v2001
        %2017 = vmatprep.subr.mxu0 0.0
        %2018 = vmatpush1.msra.mxu0 %v2000
        %2019 = vmatprep.subr.mxu0 0.0
        %2020 = vmatpush1.msra.mxu0 %v1999
        %2021 = vmatprep.subr.mxu0 0.0
        %2022 = vmatpush1.msra.mxu0 %v1998
        %2023 = vmatprep.subr.mxu0 0.0
        %2024 = vmatpush1.msra.mxu0 %v1997
        %2025 = vmatprep.subr.mxu0 0.0
        %2026 = vmatpush1.msra.mxu0 %v1996
        %2027 = vmatprep.subr.mxu0 0.0
        %2028 = vmatpush1.msra.mxu0 %v1995
        %2029 = vmatprep.subr.mxu0 0.0
        %2030 = vmatpush1.msra.mxu0 %v1994
        %2031 = vmatprep.subr.mxu0 0.0
        %2032 = vmatpush1.msra.mxu0 %v1993
        %2033 = vmatprep.subr.mxu0 0.0
        %2034 = vmatpush1.msra.mxu0 %v1992
        %2035 = vmatprep.subr.mxu0 0.0
        %2036 = vmatpush1.msra.mxu0 %v1991
        %2037 = vmatprep.subr.mxu0 0.0
        %2038 = vmatpush1.msra.mxu0 %v1990
        %2039 = vmatprep.subr.mxu0 0.0
        %2040 = vmatpush1.msra.mxu0 %v1989
        %2041 = vmatprep.subr.mxu0 0.0
        %2042 = vmatpush1.msra.mxu0 %v1988
        %2043 = vmatprep.subr.mxu0 0.0
        %2044 = vmatpush2.msra.mxu0 0.0
        %2045 = vmatprep.subr.mxu0 0.0
        %2046 = vmatpush2.msra.mxu0 0.0
        %2047 = vmatprep.subr.mxu0 0.0
        %2048 = vmatpush2.msra.mxu0 0.0
        %2049 = vmatprep.subr.mxu0 0.0
        %2050 = vmatpush2.msra.mxu0 0.0
        %2051 = vmatprep.subr.mxu0 0.0
        %2052 = vmatpush2.msra.mxu0 0.0
        %2053 = vmatprep.subr.mxu0 0.0
        %2054 = vmatpush2.msra.mxu0 0.0
        %2055 = vmatprep.subr.mxu0 0.0
        %2056 = vmatpush2.msra.mxu0 0.0
        %2057 = vmatprep.subr.mxu0 0.0
        %2058 = vmatpush2.msra.mxu0 0.0
        %2059 = vmatprep.subr.mxu0 0.0
        %2060 = vmatpush2.msra.mxu0 0.0
        %2061 = vmatprep.subr.mxu0 0.0
        %2062 = vmatpush2.msra.mxu0 0.0
        %2063 = vmatprep.subr.mxu0 0.0
        %2064 = vmatpush2.msra.mxu0 0.0
        %2065 = vmatprep.subr.mxu0 0.0
        %2066 = vmatpush2.msra.mxu0 0.0
        %2067 = vmatprep.subr.mxu0 0.0
        %2068 = vmatpush2.msra.mxu0 0.0
        %2069 = vmatprep.subr.mxu0 0.0
        %2070 = vmatpush2.msra.mxu0 0.0
        %2071 = vmatprep.subr.mxu0 0.0
        %2072 = vmatpush2.msra.mxu0 0.0
        %2073 = vmatprep.subr.mxu0 0.0
        %2074 = vmatpush2.msra.mxu0 0.0
        %2075 = vmatprep.mubr.f32.mxu0 0.0
        %2076 = vmatmul.mubr.f32.gmra.mxu0 %v1987
        %v2077 = vpop.f32.mrf.mxu0
        %v2078 = vadd.f32 %v2009, %v2077
        %v2079 = vpop.f32.mrf.mxu0
        %2080 = vdwg.mxu0
        %v2081 = vadd.f32 %v1896, %v2078
        %v2082 = vld [vmem:[%s11] sm:$0x1]
        %v2083 = vld [vmem:[%s12] sm:$0x1]
        %v2084 = vsel %vm448, %v2081, 0.0
        %2085 = vadd.xlane.f32.xlu0 %v2084
        %v2086 = vpop.xlane.xlu0 %2085
        %v2087 = vmul.f32 %v2086, %v1872
        %v2088 = vsub.f32 %v2081, %v2087
        %v2089 = vmul.f32 %v2088, %v2088
        %v2090 = vsel %vm448, %v2089, 0.0
        %2091 = vadd.xlane.f32.xlu0 %v2090
        %v2092 = vpop.xlane.xlu0 %2091
        %v2093 = vmul.f32 %v2092, %v1872
        %v2094 = vadd.f32 %v2093, 1e-05
        %v2095 = vrsqrt.pop %v2094
        %v2096 = vmul.f32 %v2088, %v2095
        %v2098 = vlaneseq
        %v2099 = vshrl.u32 %v2098, 7
        %v2100 = vsub.s32 0, %v2099
        %v2101 = vrot.slane %v2082, %v2100
        %v2103 = vmul.f32 %v2096, %v2101
        %v2105 = vlaneseq
        %v2106 = vshrl.u32 %v2105, 7
        %v2107 = vsub.s32 0, %v2106
        %v2108 = vrot.slane %v2083, %v2107
        %v2110 = vadd.f32 %v2103, %v2108
        %2111 = vst.msk [vmem:[%s431] sm:$0xff] %vm448, %v2110
        %s2112 = sand.u32 %s313, 1
        %s2113 = scalar_lea.sflag [#allocation3], %s2112
        %s2114 = sand.u32 %s313, 1
        %s2115 = smul.addr %s2114, 8
        %s2116 = scalar_lea.vmem [#allocation2], %s2115
        // Predicated region
        $region73: #{tpu_custom_call.1} parent=71 // pred_check
          %p2117 = pneg %p323
        $region74: #{tpu_custom_call.1} parent=71 // pred_check_branch
          %2119 = sbr.rel (%p2117) target = $region76
        $region75: #{tpu_custom_call.1} parent=71 // pred_region
          %s2121 = ssub.s32 128, 128
          %2122 = vsyncadd %s2113, %s2121
          %s2123 = smul.addr %s27, 128
          %s2124 = scalar_lea.hbm %s13, %s2123
          %s2126 = sshll.u32 %s2116, 4
          %s2127 = int_to_ptr.vmem [resolvable:$true] %s2126
          %2129 = dma.vmem_to_hbm [thread:$0]  %s2127, 128, %s2124, %s2113
        $region76: #{tpu_custom_call.1} parent=71 // pred_fallthru
          _
      $region72: #{tpu_custom_call.1} parent=5 // pred_fallthru
        _
      %p2130 = scmp.le.s32.totalorder 2, %s22
      // Predicated region
      $region77: #{tpu_custom_call.1} parent=5 // pred_check
        %p2131 = pneg %p2130
      $region78: #{tpu_custom_call.1} parent=5 // pred_check_branch
        %2133 = sbr.rel (%p2131) target = $region80
      $region79: #{tpu_custom_call.1} parent=5 // pred_region
        %s2134 = ssub.s32 %s22, 2
        // Predicated region
        $region81: #{tpu_custom_call.1} parent=79 // pred_check
          %p2135 = pneg %p329
        $region82: #{tpu_custom_call.1} parent=79 // pred_check_branch
          %2137 = sbr.rel (%p2135) target = $region84
        $region83: #{tpu_custom_call.1} parent=79 // pred_region
          %s2138 = sand.u32 %s314, 1
          %s2139 = scalar_lea.sflag [#allocation3], %s2138
          %s2140 = sand.u32 %s314, 1
          %s2141 = smul.addr %s2140, 8
          %s2142 = scalar_lea.vmem [#allocation2], %s2141
          %2143 = dma.done %s2139, 128
        $region84: #{tpu_custom_call.1} parent=79 // pred_fallthru
          _
      $region80: #{tpu_custom_call.1} parent=5 // pred_fallthru
        _
    $region6: #{tpu_custom_call.1} parent=1 // loop_footer
      %s26 = sadd.s32 1, %s22
    $region7: #{tpu_custom_call.1} parent=1 // loop_footer_branch
      %21 = sbr.rel target = $region3
    $region8: #{tpu_custom_call.1} parent=1 // loop_exit
      _
    %2144 = vsyncpa [#allocation3], 1
    %s2145 = scalar_lea.sflag [#allocation3], 1
    %2146 = vsyncpa %s2145, 1

// kernel: tpu_custom_call.1
$region0: #{tpu_custom_call.1}
  #allocation0 [shape = 'u32[]', space=smem, size = 0x4, offset = 0x4, fixed_abs, tag = 'smem constant byte address 0x4 - core index']
  #allocation1 [shape = 'u32[144,128]{1,0:T(1,128)}', space=vmem, size = 0x12000, scoped, tag = 'internal scratch']
  %s0 = inlined_call_operand.vmem [shape: f32[2,8,32], index: 0, kind: input, shape index: {}]
  %s1 = inlined_call_operand.vmem [shape: f32[32,96], index: 1, kind: input, shape index: {}]
  %s2 = inlined_call_operand.vmem [shape: f32[1,96], index: 2, kind: input, shape index: {}]
  %s3 = inlined_call_operand.vmem [shape: f32[32,32], index: 3, kind: input, shape index: {}]
  %s4 = inlined_call_operand.vmem [shape: f32[1,32], index: 4, kind: input, shape index: {}]
  %s5 = inlined_call_operand.vmem [shape: f32[1,32], index: 5, kind: input, shape index: {}]
  %s6 = inlined_call_operand.vmem [shape: f32[1,32], index: 6, kind: input, shape index: {}]
  %s7 = inlined_call_operand.vmem [shape: f32[32,128], index: 7, kind: input, shape index: {}]
  %s8 = inlined_call_operand.vmem [shape: f32[1,128], index: 8, kind: input, shape index: {}]
  %s9 = inlined_call_operand.vmem [shape: f32[128,32], index: 9, kind: input, shape index: {}]
  %s10 = inlined_call_operand.vmem [shape: f32[1,32], index: 10, kind: input, shape index: {}]
  %s11 = inlined_call_operand.vmem [shape: f32[1,32], index: 11, kind: input, shape index: {}]
  %s12 = inlined_call_operand.vmem [shape: f32[1,32], index: 12, kind: input, shape index: {}]
  %s13 = inlined_call_operand.hbm [shape: f32[2,8,32], index: 13, kind: output, shape index: {}]
  %s14 = sld [smem:[#allocation0]]
  $region85: #{tpu_custom_call.1} parent=0
    _
  %s16 = ssub.s32 1, %s14
  %s17 = scalar_select 0, %s16, %s14
  $region1: #{tpu_custom_call.1} parent=0
    #allocation2 [shape = 'u8[8192]{0}', space=vmem, size = 0x2000, scoped, tag = 'output window, operand 0']
    #allocation3 [shape = 's32[2]{0}', space=sflag, size = 0x8, scoped, tag = 'scoped memory for tpu_custom_call.1']
    %18 = vsyncpa [#allocation3], 0
    %s19 = scalar_lea.sflag [#allocation3], 1
    %20 = vsyncpa %s19, 0
    loop: start=0, step=1, limit=4
    $region2: #{tpu_custom_call.1} parent=1 // loop_pre_header
      _
    $region3: #{tpu_custom_call.1} parent=1 // loop_header
      %s22 = sphi 0, %s26
      %p23 = scmp.ge.s32.totalorder %s22, 4
      %s32 = sphi 0, %s34
      %s35 = sphi 0, %s32
      %s36 = sphi 0, %s35
      %s52 = sphi 0, %s36
      %s56 = sphi 0, %s56
      %s58 = sphi 0, %s56
      %s59 = sphi 0, %s58
      %s73 = sphi 0, %s59
      %s77 = sphi 0, %s77
      %s79 = sphi 0, %s77
      %s80 = sphi 0, %s79
      %s94 = sphi 0, %s80
      %s98 = sphi 0, %s98
      %s100 = sphi 0, %s98
      %s101 = sphi 0, %s100
      %s115 = sphi 0, %s101
      %s119 = sphi 0, %s119
      %s121 = sphi 0, %s119
      %s122 = sphi 0, %s121
      %s136 = sphi 0, %s122
      %s140 = sphi 0, %s140
      %s142 = sphi 0, %s140
      %s143 = sphi 0, %s142
      %s157 = sphi 0, %s143
      %s161 = sphi 0, %s161
      %s163 = sphi 0, %s161
      %s164 = sphi 0, %s163
      %s178 = sphi 0, %s164
      %s182 = sphi 0, %s182
      %s184 = sphi 0, %s182
      %s185 = sphi 0, %s184
      %s199 = sphi 0, %s185
      %s203 = sphi 0, %s203
      %s205 = sphi 0, %s203
      %s206 = sphi 0, %s205
      %s220 = sphi 0, %s206
      %s224 = sphi 0, %s224
      %s226 = sphi 0, %s224
      %s227 = sphi 0, %s226
      %s241 = sphi 0, %s227
      %s245 = sphi 0, %s245
      %s247 = sphi 0, %s245
      %s248 = sphi 0, %s247
      %s262 = sphi 0, %s248
      %s266 = sphi 0, %s266
      %s268 = sphi 0, %s266
      %s269 = sphi 0, %s268
      %s283 = sphi 0, %s269
      %s287 = sphi 0, %s287
      %s289 = sphi 0, %s287
      %s290 = sphi 0, %s289
      %s304 = sphi 0, %s290
      %s310 = sphi 0, %s312
      %s313 = sphi 0, %s310
      %s314 = sphi 0, %s313
      %s330 = sphi 0, %s314
    $region4: #{tpu_custom_call.1} parent=1 // loop_header_branch
      %25 = sbr.rel (%p23) target = $region8
    $region5: #{tpu_custom_call.1} parent=1 // loop_body
      %s27 = ssub.s32 %s22, 1
      %s28 = ssub.s32 %s22, 2
      %s29 = sadd.s32 %s22, 1
      %s30 = ssub.s32 %s22, %s29
      %p31 = scmp.eq.s32.totalorder %s30, 0
      %s33 = sadd.s32 %s32, 1
      %s34 = scalar_select %p31, %s32, %s33
      %p37 = pneg %p31
      %p38 = scmp.eq.s32.totalorder %s22, 1
      %p39 = por %p37, %p38
      %p40 = scmp.ne.s32.totalorder %s32, %s35
      %p41 = scmp.eq.s32.totalorder %s22, 0
      %p42 = por %p40, %p41
      %p43 = scmp.ne.s32.totalorder %s32, %s35
      %p44 = scmp.eq.s32.totalorder %s27, 1
      %p45 = por %p43, %p44
      %p46 = scmp.ne.s32.totalorder %s35, %s36
      %p47 = scmp.eq.s32.totalorder %s27, 0
      %p48 = por %p46, %p47
      %p49 = scmp.ne.s32.totalorder %s35, %s36
      %p50 = scmp.eq.s32.totalorder %s28, 1
      %p51 = por %p49, %p50
      %p53 = scmp.ne.s32.totalorder %s36, %s52
      %p54 = scmp.eq.s32.totalorder %s28, 0
      %p55 = por %p53, %p54
      %s57 = sadd.s32 %s56, 1
      %p60 = scmp.eq.s32.totalorder %s22, 1
      %p61 = scmp.ne.s32.totalorder %s56, %s58
      %p62 = scmp.eq.s32.totalorder %s22, 0
      %p63 = por %p61, %p62
      %p64 = scmp.ne.s32.totalorder %s56, %s58
      %p65 = scmp.eq.s32.totalorder %s27, 1
      %p66 = por %p64, %p65
      %p67 = scmp.ne.s32.totalorder %s58, %s59
      %p68 = scmp.eq.s32.totalorder %s27, 0
      %p69 = por %p67, %p68
      %p70 = scmp.ne.s32.totalorder %s58, %s59
      %p71 = scmp.eq.s32.totalorder %s28, 1
      %p72 = por %p70, %p71
      %p74 = scmp.ne.s32.totalorder %s59, %s73
      %p75 = scmp.eq.s32.totalorder %s28, 0
      %p76 = por %p74, %p75
      %s78 = sadd.s32 %s77, 1
      %p81 = scmp.eq.s32.totalorder %s22, 1
      %p82 = scmp.ne.s32.totalorder %s77, %s79
      %p83 = scmp.eq.s32.totalorder %s22, 0
      %p84 = por %p82, %p83
      %p85 = scmp.ne.s32.totalorder %s77, %s79
      %p86 = scmp.eq.s32.totalorder %s27, 1
      %p87 = por %p85, %p86
      %p88 = scmp.ne.s32.totalorder %s79, %s80
      %p89 = scmp.eq.s32.totalorder %s27, 0
      %p90 = por %p88, %p89
      %p91 = scmp.ne.s32.totalorder %s79, %s80
      %p92 = scmp.eq.s32.totalorder %s28, 1
      %p93 = por %p91, %p92
      %p95 = scmp.ne.s32.totalorder %s80, %s94
      %p96 = scmp.eq.s32.totalorder %s28, 0
      %p97 = por %p95, %p96
      %s99 = sadd.s32 %s98, 1
      %p102 = scmp.eq.s32.totalorder %s22, 1
      %p103 = scmp.ne.s32.totalorder %s98, %s100
      %p104 = scmp.eq.s32.totalorder %s22, 0
      %p105 = por %p103, %p104
      %p106 = scmp.ne.s32.totalorder %s98, %s100
      %p107 = scmp.eq.s32.totalorder %s27, 1
      %p108 = por %p106, %p107
      %p109 = scmp.ne.s32.totalorder %s100, %s101
      %p110 = scmp.eq.s32.totalorder %s27, 0
      %p111 = por %p109, %p110
      %p112 = scmp.ne.s32.totalorder %s100, %s101
      %p113 = scmp.eq.s32.totalorder %s28, 1
      %p114 = por %p112, %p113
      %p116 = scmp.ne.s32.totalorder %s101, %s115
      %p117 = scmp.eq.s32.totalorder %s28, 0
      %p118 = por %p116, %p117
      %s120 = sadd.s32 %s119, 1
      %p123 = scmp.eq.s32.totalorder %s22, 1
      %p124 = scmp.ne.s32.totalorder %s119, %s121
      %p125 = scmp.eq.s32.totalorder %s22, 0
      %p126 = por %p124, %p125
      %p127 = scmp.ne.s32.totalorder %s119, %s121
      %p128 = scmp.eq.s32.totalorder %s27, 1
      %p129 = por %p127, %p128
      %p130 = scmp.ne.s32.totalorder %s121, %s122
      %p131 = scmp.eq.s32.totalorder %s27, 0
      %p132 = por %p130, %p131
      %p133 = scmp.ne.s32.totalorder %s121, %s122
      %p134 = scmp.eq.s32.totalorder %s28, 1
      %p135 = por %p133, %p134
      %p137 = scmp.ne.s32.totalorder %s122, %s136
      %p138 = scmp.eq.s32.totalorder %s28, 0
      %p139 = por %p137, %p138
      %s141 = sadd.s32 %s140, 1
      %p144 = scmp.eq.s32.totalorder %s22, 1
      %p145 = scmp.ne.s32.totalorder %s140, %s142
      %p146 = scmp.eq.s32.totalorder %s22, 0
      %p147 = por %p145, %p146
      %p148 = scmp.ne.s32.totalorder %s140, %s142
      %p149 = scmp.eq.s32.totalorder %s27, 1
      %p150 = por %p148, %p149
      %p151 = scmp.ne.s32.totalorder %s142, %s143
      %p152 = scmp.eq.s32.totalorder %s27, 0
      %p153 = por %p151, %p152
      %p154 = scmp.ne.s32.totalorder %s142, %s143
      %p155 = scmp.eq.s32.totalorder %s28, 1
      %p156 = por %p154, %p155
      %p158 = scmp.ne.s32.totalorder %s143, %s157
      %p159 = scmp.eq.s32.totalorder %s28, 0
      %p160 = por %p158, %p159
      %s162 = sadd.s32 %s161, 1
      %p165 = scmp.eq.s32.totalorder %s22, 1
      %p166 = scmp.ne.s32.totalorder %s161, %s163
      %p167 = scmp.eq.s32.totalorder %s22, 0
      %p168 = por %p166, %p167
      %p169 = scmp.ne.s32.totalorder %s161, %s163
      %p170 = scmp.eq.s32.totalorder %s27, 1
      %p171 = por %p169, %p170
      %p172 = scmp.ne.s32.totalorder %s163, %s164
      %p173 = scmp.eq.s32.totalorder %s27, 0
      %p174 = por %p172, %p173
      %p175 = scmp.ne.s32.totalorder %s163, %s164
      %p176 = scmp.eq.s32.totalorder %s28, 1
      %p177 = por %p175, %p176
      %p179 = scmp.ne.s32.totalorder %s164, %s178
      %p180 = scmp.eq.s32.totalorder %s28, 0
      %p181 = por %p179, %p180
      %s183 = sadd.s32 %s182, 1
      %p186 = scmp.eq.s32.totalorder %s22, 1
      %p187 = scmp.ne.s32.totalorder %s182, %s184
      %p188 = scmp.eq.s32.totalorder %s22, 0
      %p189 = por %p187, %p188
      %p190 = scmp.ne.s32.totalorder %s182, %s184
      %p191 = scmp.eq.s32.totalorder %s27, 1
      %p192 = por %p190, %p191
      %p193 = scmp.ne.s32.totalorder %s184, %s185
      %p194 = scmp.eq.s32.totalorder %s27, 0
      %p195 = por %p193, %p194
      %p196 = scmp.ne.s32.totalorder %s184, %s185
      %p197 = scmp.eq.s32.totalorder %s28, 1
      %p198 = por %p196, %p197
      %p200 = scmp.ne.s32.totalorder %s185, %s199
      %p201 = scmp.eq.s32.totalorder %s28, 0
      %p202 = por %p200, %p201
      %s204 = sadd.s32 %s203, 1
      %p207 = scmp.eq.s32.totalorder %s22, 1
      %p208 = scmp.ne.s32.totalorder %s203, %s205
      %p209 = scmp.eq.s32.totalorder %s22, 0
      %p210 = por %p208, %p209
      %p211 = scmp.ne.s32.totalorder %s203, %s205
      %p212 = scmp.eq.s32.totalorder %s27, 1
      %p213 = por %p211, %p212
      %p214 = scmp.ne.s32.totalorder %s205, %s206
      %p215 = scmp.eq.s32.totalorder %s27, 0
      %p216 = por %p214, %p215
      %p217 = scmp.ne.s32.totalorder %s205, %s206
      %p218 = scmp.eq.s32.totalorder %s28, 1
      %p219 = por %p217, %p218
      %p221 = scmp.ne.s32.totalorder %s206, %s220
      %p222 = scmp.eq.s32.totalorder %s28, 0
      %p223 = por %p221, %p222
      %s225 = sadd.s32 %s224, 1
      %p228 = scmp.eq.s32.totalorder %s22, 1
      %p229 = scmp.ne.s32.totalorder %s224, %s226
      %p230 = scmp.eq.s32.totalorder %s22, 0
      %p231 = por %p229, %p230
      %p232 = scmp.ne.s32.totalorder %s224, %s226
      %p233 = scmp.eq.s32.totalorder %s27, 1
      %p234 = por %p232, %p233
      %p235 = scmp.ne.s32.totalorder %s226, %s227
      %p236 = scmp.eq.s32.totalorder %s27, 0
      %p237 = por %p235, %p236
      %p238 = scmp.ne.s32.totalorder %s226, %s227
      %p239 = scmp.eq.s32.totalorder %s28, 1
      %p240 = por %p238, %p239
      %p242 = scmp.ne.s32.totalorder %s227, %s241
      %p243 = scmp.eq.s32.totalorder %s28, 0
      %p244 = por %p242, %p243
      %s246 = sadd.s32 %s245, 1
      %p249 = scmp.eq.s32.totalorder %s22, 1
      %p250 = scmp.ne.s32.totalorder %s245, %s247
      %p251 = scmp.eq.s32.totalorder %s22, 0
      %p252 = por %p250, %p251
      %p253 = scmp.ne.s32.totalorder %s245, %s247
      %p254 = scmp.eq.s32.totalorder %s27, 1
      %p255 = por %p253, %p254
      %p256 = scmp.ne.s32.totalorder %s247, %s248
      %p257 = scmp.eq.s32.totalorder %s27, 0
      %p258 = por %p256, %p257
      %p259 = scmp.ne.s32.totalorder %s247, %s248
      %p260 = scmp.eq.s32.totalorder %s28, 1
      %p261 = por %p259, %p260
      %p263 = scmp.ne.s32.totalorder %s248, %s262
      %p264 = scmp.eq.s32.totalorder %s28, 0
      %p265 = por %p263, %p264
      %s267 = sadd.s32 %s266, 1
      %p270 = scmp.eq.s32.totalorder %s22, 1
      %p271 = scmp.ne.s32.totalorder %s266, %s268
      %p272 = scmp.eq.s32.totalorder %s22, 0
      %p273 = por %p271, %p272
      %p274 = scmp.ne.s32.totalorder %s266, %s268
      %p275 = scmp.eq.s32.totalorder %s27, 1
      %p276 = por %p274, %p275
      %p277 = scmp.ne.s32.totalorder %s268, %s269
      %p278 = scmp.eq.s32.totalorder %s27, 0
      %p279 = por %p277, %p278
      %p280 = scmp.ne.s32.totalorder %s268, %s269
      %p281 = scmp.eq.s32.totalorder %s28, 1
      %p282 = por %p280, %p281
      %p284 = scmp.ne.s32.totalorder %s269, %s283
      %p285 = scmp.eq.s32.totalorder %s28, 0
      %p286 = por %p284, %p285
      %s288 = sadd.s32 %s287, 1
      %p291 = scmp.eq.s32.totalorder %s22, 1
      %p292 = scmp.ne.s32.totalorder %s287, %s289
      %p293 = scmp.eq.s32.totalorder %s22, 0
      %p294 = por %p292, %p293
      %p295 = scmp.ne.s32.totalorder %s287, %s289
      %p296 = scmp.eq.s32.totalorder %s27, 1
      %p297 = por %p295, %p296
      %p298 = scmp.ne.s32.totalorder %s289, %s290
      %p299 = scmp.eq.s32.totalorder %s27, 0
      %p300 = por %p298, %p299
      %p301 = scmp.ne.s32.totalorder %s289, %s290
      %p302 = scmp.eq.s32.totalorder %s28, 1
      %p303 = por %p301, %p302
      %p305 = scmp.ne.s32.totalorder %s290, %s304
      %p306 = scmp.eq.s32.totalorder %s28, 0
      %p307 = por %p305, %p306
      %s308 = ssub.s32 %s22, %s29
      %p309 = scmp.eq.s32.totalorder %s308, 0
      %s311 = sadd.s32 %s310, 1
      %s312 = scalar_select %p309, %s310, %s311
      %p315 = pneg %p309
      %p316 = scmp.eq.s32.totalorder %s22, 1
      %p317 = por %p315, %p316
      %p318 = scmp.ne.s32.totalorder %s310, %s313
      %p319 = scmp.eq.s32.totalorder %s22, 0
      %p320 = por %p318, %p319
      %p321 = scmp.ne.s32.totalorder %s310, %s313
      %p322 = scmp.eq.s32.totalorder %s27, 1
      %p323 = por %p321, %p322
      %p324 = scmp.ne.s32.totalorder %s313, %s314
      %p325 = scmp.eq.s32.totalorder %s27, 0
      %p326 = por %p324, %p325
      %p327 = scmp.ne.s32.totalorder %s313, %s314
      %p328 = scmp.eq.s32.totalorder %s28, 1
      %p329 = por %p327, %p328
      %p331 = scmp.ne.s32.totalorder %s314, %s330
      %p332 = scmp.eq.s32.totalorder %s28, 0
      %p333 = por %p331, %p332
      %p334 = scmp.le.s32.totalorder 1, %s22
      %p335 = scmp.lt.s32.totalorder %s22, 3
      %p336 = pnand %p334, %p335
      %p337 = pneg %p336
      // Predicated region
      $region9: #{tpu_custom_call.1} parent=5 // pred_check
        _
      $region10: #{tpu_custom_call.1} parent=5 // pred_check_branch
        %339 = sbr.rel (%p336) target = $region12
      $region11: #{tpu_custom_call.1} parent=5 // pred_region
        %s340 = ssub.s32 %s22, 1
        // Predicated region
        $region13: #{tpu_custom_call.1} parent=11 // pred_check
          %p341 = pneg %p69
        $region14: #{tpu_custom_call.1} parent=11 // pred_check_branch
          %343 = sbr.rel (%p341) target = $region16
        $region15: #{tpu_custom_call.1} parent=11 // pred_region
          _
        $region16: #{tpu_custom_call.1} parent=11 // pred_fallthru
          _
        // Predicated region
        $region17: #{tpu_custom_call.1} parent=11 // pred_check
          %p344 = pneg %p90
        $region18: #{tpu_custom_call.1} parent=11 // pred_check_branch
          %346 = sbr.rel (%p344) target = $region20
        $region19: #{tpu_custom_call.1} parent=11 // pred_region
          _
        $region20: #{tpu_custom_call.1} parent=11 // pred_fallthru
          _
        // Predicated region
        $region21: #{tpu_custom_call.1} parent=11 // pred_check
          %p347 = pneg %p111
        $region22: #{tpu_custom_call.1} parent=11 // pred_check_branch
          %349 = sbr.rel (%p347) target = $region24
        $region23: #{tpu_custom_call.1} parent=11 // pred_region
          _
        $region24: #{tpu_custom_call.1} parent=11 // pred_fallthru
          _
        // Predicated region
        $region25: #{tpu_custom_call.1} parent=11 // pred_check
          %p350 = pneg %p132
        $region26: #{tpu_custom_call.1} parent=11 // pred_check_branch
          %352 = sbr.rel (%p350) target = $region28
        $region27: #{tpu_custom_call.1} parent=11 // pred_region
          _
        $region28: #{tpu_custom_call.1} parent=11 // pred_fallthru
          _
        // Predicated region
        $region29: #{tpu_custom_call.1} parent=11 // pred_check
          %p353 = pneg %p153
        $region30: #{tpu_custom_call.1} parent=11 // pred_check_branch
          %355 = sbr.rel (%p353) target = $region32
        $region31: #{tpu_custom_call.1} parent=11 // pred_region
          _
        $region32: #{tpu_custom_call.1} parent=11 // pred_fallthru
          _
        // Predicated region
        $region33: #{tpu_custom_call.1} parent=11 // pred_check
          %p356 = pneg %p174
        $region34: #{tpu_custom_call.1} parent=11 // pred_check_branch
          %358 = sbr.rel (%p356) target = $region36
        $region35: #{tpu_custom_call.1} parent=11 // pred_region
          _
        $region36: #{tpu_custom_call.1} parent=11 // pred_fallthru
          _
        // Predicated region
        $region37: #{tpu_custom_call.1} parent=11 // pred_check
          %p359 = pneg %p195
        $region38: #{tpu_custom_call.1} parent=11 // pred_check_branch
          %361 = sbr.rel (%p359) target = $region40
        $region39: #{tpu_custom_call.1} parent=11 // pred_region
          _
        $region40: #{tpu_custom_call.1} parent=11 // pred_fallthru
          _
        // Predicated region
        $region41: #{tpu_custom_call.1} parent=11 // pred_check
          %p362 = pneg %p216
        $region42: #{tpu_custom_call.1} parent=11 // pred_check_branch
          %364 = sbr.rel (%p362) target = $region44
        $region43: #{tpu_custom_call.1} parent=11 // pred_region
          _
        $region44: #{tpu_custom_call.1} parent=11 // pred_fallthru
          _
        // Predicated region
        $region45: #{tpu_custom_call.1} parent=11 // pred_check
          %p365 = pneg %p237
        $region46: #{tpu_custom_call.1} parent=11 // pred_check_branch
          %367 = sbr.rel (%p365) target = $region48
        $region47: #{tpu_custom_call.1} parent=11 // pred_region
          _
        $region48: #{tpu_custom_call.1} parent=11 // pred_fallthru
          _
        // Predicated region
        $region49: #{tpu_custom_call.1} parent=11 // pred_check
          %p368 = pneg %p258
        $region50: #{tpu_custom_call.1} parent=11 // pred_check_branch
          %370 = sbr.rel (%p368) target = $region52
        $region51: #{tpu_custom_call.1} parent=11 // pred_region
          _
        $region52: #{tpu_custom_call.1} parent=11 // pred_fallthru
          _
        // Predicated region
        $region53: #{tpu_custom_call.1} parent=11 // pred_check
          %p371 = pneg %p279
        $region54: #{tpu_custom_call.1} parent=11 // pred_check_branch
          %373 = sbr.rel (%p371) target = $region56
        $region55: #{tpu_custom_call.1} parent=11 // pred_region
          _
        $region56: #{tpu_custom_call.1} parent=11 // pred_fallthru
          _
        // Predicated region
        $region57: #{tpu_custom_call.1} parent=11 // pred_check
          %p374 = pneg %p300
        $region58: #{tpu_custom_call.1} parent=11 // pred_check_branch
          %376 = sbr.rel (%p374) target = $region60
        $region59: #{tpu_custom_call.1} parent=11 // pred_region
          _
        $region60: #{tpu_custom_call.1} parent=11 // pred_fallthru
          _
      $region12: #{tpu_custom_call.1} parent=5 // pred_fallthru
        _
      %p377 = scmp.lt.s32.totalorder %s22, 2
      // Predicated region
      $region61: #{tpu_custom_call.1} parent=5 // pred_check
        %p378 = pneg %p377
      $region62: #{tpu_custom_call.1} parent=5 // pred_check_branch
        %380 = sbr.rel (%p378) target = $region64
      $region63: #{tpu_custom_call.1} parent=5 // pred_region
        // Predicated region
        $region65: #{tpu_custom_call.1} parent=63 // pred_check
          %p381 = pneg %p42
        $region66: #{tpu_custom_call.1} parent=63 // pred_check_branch
          %383 = sbr.rel (%p381) target = $region68
        $region67: #{tpu_custom_call.1} parent=63 // pred_region
          %p384 = scmp.lt.s32.totalorder %s22, 1
          %s385 = scalar_select %p384, %s22, 1
          %s386 = smul.addr %s385, 8
          %s387 = scalar_lea.vmem %s0, %s386
        $region68: #{tpu_custom_call.1} parent=63 // pred_fallthru
          _
      $region64: #{tpu_custom_call.1} parent=5 // pred_fallthru
        _
      %p388 = scmp.le.s32.totalorder 1, %s22
      %p389 = scmp.lt.s32.totalorder %s22, 3
      %p390 = pnand %p388, %p389
      %p391 = pneg %p390
      // Predicated region
      $region69: #{tpu_custom_call.1} parent=5 // pred_check
        _
      $region70: #{tpu_custom_call.1} parent=5 // pred_check_branch
        %393 = sbr.rel (%p390) target = $region72
      $region71: #{tpu_custom_call.1} parent=5 // pred_region
        %s394 = ssub.s32 %s22, 1
        %p395 = scmp.lt.s32.totalorder %s27, 1
        %s396 = scalar_select %p395, %s27, 1
        %s397 = smul.addr %s396, 8
        %s398 = scalar_lea.vmem %s0, %s397
        %p399 = pneg %p48
        %p400 = pneg %p45
        %p401 = pneg %p69
        %p402 = pneg %p66
        %p403 = pneg %p90
        %p404 = pneg %p87
        %p405 = pneg %p111
        %p406 = pneg %p108
        %p407 = pneg %p132
        %p408 = pneg %p129
        %p409 = pneg %p153
        %p410 = pneg %p150
        %p411 = pneg %p174
        %p412 = pneg %p171
        %p413 = pneg %p195
        %p414 = pneg %p192
        %p415 = pneg %p216
        %p416 = pneg %p213
        %p417 = pneg %p237
        %p418 = pneg %p234
        %p419 = pneg %p258
        %p420 = pneg %p255
        %p421 = pneg %p279
        %p422 = pneg %p276
        %p423 = pneg %p300
        %p424 = pneg %p297
        %p425 = pneg %p326
        %p426 = pneg %p323
        %s427 = sand.u32 %s313, 1
        %s428 = scalar_lea.sflag [#allocation3], %s427
        %s429 = sand.u32 %s313, 1
        %s430 = smul.addr %s429, 8
        %s431 = scalar_lea.vmem [#allocation2], %s430
        %p432 = scmp.lt.s32.totalorder %s27, 1
        %s433 = scalar_select %p432, %s27, 1
        %s434 = smul.addr %s433, 8
        %s435 = scalar_lea.vmem %s0, %s434
        %v436 = vld [vmem:[%s435] sm:$0xff]
        %v437 = vld [vmem:[%s1] sm:$0xff]
        %v438 = vld [vmem:[%s1 + $0x8] sm:$0xff]
        %v439 = vld [vmem:[%s1 + $0x10] sm:$0xff]
        %v440 = vld [vmem:[%s1 + $0x18] sm:$0xff]
        %v441 = vld [vmem:[%s2] sm:$0x1]
        %v443 = vlaneseq
        %v444 = vshrl.u32 %v443, 7
        %v445 = vsub.s32 0, %v444
        %v446 = vrot.slane %v441, %v445
        %vm448 = vcmask 261120
        %v450 = vsel %vm448, %v436, 0
        %452 = vmatprep.subr.mxu0 0.0
        %453 = vmatpush1.msra.mxu0 0.0
        %454 = vmatprep.subr.mxu0 0.0
        %455 = vmatpush1.msra.mxu0 0.0
        %456 = vmatprep.subr.mxu0 0.0
        %457 = vmatpush1.msra.mxu0 0.0
        %458 = vmatprep.subr.mxu0 0.0
        %459 = vmatpush1.msra.mxu0 0.0
        %460 = vmatprep.subr.mxu0 0.0
        %461 = vmatpush1.msra.mxu0 0.0
        %462 = vmatprep.subr.mxu0 0.0
        %463 = vmatpush1.msra.mxu0 0.0
        %464 = vmatprep.subr.mxu0 0.0
        %465 = vmatpush1.msra.mxu0 0.0
        %466 = vmatprep.subr.mxu0 0.0
        %467 = vmatpush1.msra.mxu0 0.0
        %468 = vmatprep.subr.mxu0 0.0
        %469 = vmatpush1.msra.mxu0 0.0
        %470 = vmatprep.subr.mxu0 0.0
        %471 = vmatpush1.msra.mxu0 0.0
        %472 = vmatprep.subr.mxu0 0.0
        %473 = vmatpush1.msra.mxu0 0.0
        %474 = vmatprep.subr.mxu0 0.0
        %475 = vmatpush1.msra.mxu0 0.0
        %476 = vmatprep.subr.mxu0 0.0
        %477 = vmatpush1.msra.mxu0 %v440
        %478 = vmatprep.subr.mxu0 0.0
        %479 = vmatpush1.msra.mxu0 %v439
        %480 = vmatprep.subr.mxu0 0.0
        %481 = vmatpush1.msra.mxu0 %v438
        %482 = vmatprep.subr.mxu0 0.0
        %483 = vmatpush1.msra.mxu0 %v437
        %484 = vmatprep.subr.mxu0 0.0
        %485 = vmatpush2.msra.mxu0 0.0
        %486 = vmatprep.subr.mxu0 0.0
        %487 = vmatpush2.msra.mxu0 0.0
        %488 = vmatprep.subr.mxu0 0.0
        %489 = vmatpush2.msra.mxu0 0.0
        %490 = vmatprep.subr.mxu0 0.0
        %491 = vmatpush2.msra.mxu0 0.0
        %492 = vmatprep.subr.mxu0 0.0
        %493 = vmatpush2.msra.mxu0 0.0
        %494 = vmatprep.subr.mxu0 0.0
        %495 = vmatpush2.msra.mxu0 0.0
        %496 = vmatprep.subr.mxu0 0.0
        %497 = vmatpush2.msra.mxu0 0.0
        %498 = vmatprep.subr.mxu0 0.0
        %499 = vmatpush2.msra.mxu0 0.0
        %500 = vmatprep.subr.mxu0 0.0
        %501 = vmatpush2.msra.mxu0 0.0
        %502 = vmatprep.subr.mxu0 0.0
        %503 = vmatpush2.msra.mxu0 0.0
        %504 = vmatprep.subr.mxu0 0.0
        %505 = vmatpush2.msra.mxu0 0.0
        %506 = vmatprep.subr.mxu0 0.0
        %507 = vmatpush2.msra.mxu0 0.0
        %508 = vmatprep.subr.mxu0 0.0
        %509 = vmatpush2.msra.mxu0 0.0
        %510 = vmatprep.subr.mxu0 0.0
        %511 = vmatpush2.msra.mxu0 0.0
        %512 = vmatprep.subr.mxu0 0.0
        %513 = vmatpush2.msra.mxu0 0.0
        %514 = vmatprep.subr.mxu0 0.0
        %515 = vmatpush2.msra.mxu0 0.0
        %516 = vmatprep.mubr.f32.mxu0 0.0
        %517 = vmatmul.mubr.f32.gmra.mxu0 %v450
        %v518 = vpop.f32.mrf.mxu0
        %v519 = vadd.f32 %v446, %v518
        %v520 = vpop.f32.mrf.mxu0
        %521 = vdwg.mxu0
        %523 = vrot.lane.b32.xlu0 %v519, 120
        %v524 = vpop.permute.xlu0 %523
        %525 = vrot.lane.b32.xlu0 %v519, 112
        %v526 = vpop.permute.xlu0 %525
        %527 = vrot.lane.b32.xlu0 %v519, 104
        %v528 = vpop.permute.xlu0 %527
        %529 = vrot.lane.b32.xlu0 %v519, 96
        %v530 = vpop.permute.xlu0 %529
        %vm531 = vcmask 64512
        %v532 = vsel %vm531, %v519, 0
        %v534 = vsel %vm531, %v530, 0
        %536 = vmatprep.subr.mxu0 0.0
        %537 = vmatpush1.xpose.msra.mxu0 0.0
        %538 = vmatprep.subr.mxu0 0.0
        %539 = vmatpush1.xpose.msra.mxu0 0.0
        %540 = vmatprep.subr.mxu0 0.0
        %541 = vmatpush1.xpose.msra.mxu0 0.0
        %542 = vmatprep.subr.mxu0 0.0
        %543 = vmatpush1.xpose.msra.mxu0 0.0
        %544 = vmatprep.subr.mxu0 0.0
        %545 = vmatpush1.xpose.msra.mxu0 0.0
        %546 = vmatprep.subr.mxu0 0.0
        %547 = vmatpush1.xpose.msra.mxu0 0.0
        %548 = vmatprep.subr.mxu0 0.0
        %549 = vmatpush1.xpose.msra.mxu0 0.0
        %550 = vmatprep.subr.mxu0 0.0
        %551 = vmatpush1.xpose.msra.mxu0 0.0
        %552 = vmatprep.subr.mxu0 0.0
        %553 = vmatpush1.xpose.msra.mxu0 0.0
        %554 = vmatprep.subr.mxu0 0.0
        %555 = vmatpush1.xpose.msra.mxu0 0.0
        %556 = vmatprep.subr.mxu0 0.0
        %557 = vmatpush1.xpose.msra.mxu0 0.0
        %558 = vmatprep.subr.mxu0 0.0
        %559 = vmatpush1.xpose.msra.mxu0 0.0
        %560 = vmatprep.subr.mxu0 0.0
        %561 = vmatpush1.xpose.msra.mxu0 0.0
        %562 = vmatprep.subr.mxu0 0.0
        %563 = vmatpush1.xpose.msra.mxu0 0.0
        %564 = vmatprep.subr.mxu0 0.0
        %565 = vmatpush1.xpose.msra.mxu0 0.0
        %566 = vmatprep.subr.mxu0 0.0
        %567 = vmatpush1.xpose.msra.mxu0 %v534
        %568 = vmatprep.subr.mxu0 0.0
        %569 = vmatpush2.xpose.msra.mxu0 0.0
        %570 = vmatprep.subr.mxu0 0.0
        %571 = vmatpush2.xpose.msra.mxu0 0.0
        %572 = vmatprep.subr.mxu0 0.0
        %573 = vmatpush2.xpose.msra.mxu0 0.0
        %574 = vmatprep.subr.mxu0 0.0
        %575 = vmatpush2.xpose.msra.mxu0 0.0
        %576 = vmatprep.subr.mxu0 0.0
        %577 = vmatpush2.xpose.msra.mxu0 0.0
        %578 = vmatprep.subr.mxu0 0.0
        %579 = vmatpush2.xpose.msra.mxu0 0.0
        %580 = vmatprep.subr.mxu0 0.0
        %581 = vmatpush2.xpose.msra.mxu0 0.0
        %582 = vmatprep.subr.mxu0 0.0
        %583 = vmatpush2.xpose.msra.mxu0 0.0
        %584 = vmatprep.subr.mxu0 0.0
        %585 = vmatpush2.xpose.msra.mxu0 0.0
        %586 = vmatprep.subr.mxu0 0.0
        %587 = vmatpush2.xpose.msra.mxu0 0.0
        %588 = vmatprep.subr.mxu0 0.0
        %589 = vmatpush2.xpose.msra.mxu0 0.0
        %590 = vmatprep.subr.mxu0 0.0
        %591 = vmatpush2.xpose.msra.mxu0 0.0
        %592 = vmatprep.subr.mxu0 0.0
        %593 = vmatpush2.xpose.msra.mxu0 0.0
        %594 = vmatprep.subr.mxu0 0.0
        %595 = vmatpush2.xpose.msra.mxu0 0.0
        %596 = vmatprep.subr.mxu0 0.0
        %597 = vmatpush2.xpose.msra.mxu0 0.0
        %598 = vmatprep.subr.mxu0 0.0
        %599 = vmatpush2.xpose.msra.mxu0 0.0
        %600 = vmatprep.mubr.f32.mxu0 0.0
        %601 = vmatmul.mubr.f32.gmra.mxu0 %v532
        %v602 = vpop.f32.mrf.mxu0
        %v603 = vadd.f32 0.0, %v602
        %v604 = vpop.f32.mrf.mxu0
        %605 = vdwg.mxu0
        %606 = vrot.lane.b32.xlu0 %v524, 96
        %v607 = vpop.permute.xlu0 %606
        %v608 = vsel %vm531, %v524, 0
        %v610 = vsel %vm531, %v607, 0
        %612 = vmatprep.subr.mxu0 0.0
        %613 = vmatpush1.xpose.msra.mxu0 0.0
        %614 = vmatprep.subr.mxu0 0.0
        %615 = vmatpush1.xpose.msra.mxu0 0.0
        %616 = vmatprep.subr.mxu0 0.0
        %617 = vmatpush1.xpose.msra.mxu0 0.0
        %618 = vmatprep.subr.mxu0 0.0
        %619 = vmatpush1.xpose.msra.mxu0 0.0
        %620 = vmatprep.subr.mxu0 0.0
        %621 = vmatpush1.xpose.msra.mxu0 0.0
        %622 = vmatprep.subr.mxu0 0.0
        %623 = vmatpush1.xpose.msra.mxu0 0.0
        %624 = vmatprep.subr.mxu0 0.0
        %625 = vmatpush1.xpose.msra.mxu0 0.0
        %626 = vmatprep.subr.mxu0 0.0
        %627 = vmatpush1.xpose.msra.mxu0 0.0
        %628 = vmatprep.subr.mxu0 0.0
        %629 = vmatpush1.xpose.msra.mxu0 0.0
        %630 = vmatprep.subr.mxu0 0.0
        %631 = vmatpush1.xpose.msra.mxu0 0.0
        %632 = vmatprep.subr.mxu0 0.0
        %633 = vmatpush1.xpose.msra.mxu0 0.0
        %634 = vmatprep.subr.mxu0 0.0
        %635 = vmatpush1.xpose.msra.mxu0 0.0
        %636 = vmatprep.subr.mxu0 0.0
        %637 = vmatpush1.xpose.msra.mxu0 0.0
        %638 = vmatprep.subr.mxu0 0.0
        %639 = vmatpush1.xpose.msra.mxu0 0.0
        %640 = vmatprep.subr.mxu0 0.0
        %641 = vmatpush1.xpose.msra.mxu0 0.0
        %642 = vmatprep.subr.mxu0 0.0
        %643 = vmatpush1.xpose.msra.mxu0 %v610
        %644 = vmatprep.subr.mxu0 0.0
        %645 = vmatpush2.xpose.msra.mxu0 0.0
        %646 = vmatprep.subr.mxu0 0.0
        %647 = vmatpush2.xpose.msra.mxu0 0.0
        %648 = vmatprep.subr.mxu0 0.0
        %649 = vmatpush2.xpose.msra.mxu0 0.0
        %650 = vmatprep.subr.mxu0 0.0
        %651 = vmatpush2.xpose.msra.mxu0 0.0
        %652 = vmatprep.subr.mxu0 0.0
        %653 = vmatpush2.xpose.msra.mxu0 0.0
        %654 = vmatprep.subr.mxu0 0.0
        %655 = vmatpush2.xpose.msra.mxu0 0.0
        %656 = vmatprep.subr.mxu0 0.0
        %657 = vmatpush2.xpose.msra.mxu0 0.0
        %658 = vmatprep.subr.mxu0 0.0
        %659 = vmatpush2.xpose.msra.mxu0 0.0
        %660 = vmatprep.subr.mxu0 0.0
        %661 = vmatpush2.xpose.msra.mxu0 0.0
        %662 = vmatprep.subr.mxu0 0.0
        %663 = vmatpush2.xpose.msra.mxu0 0.0
        %664 = vmatprep.subr.mxu0 0.0
        %665 = vmatpush2.xpose.msra.mxu0 0.0
        %666 = vmatprep.subr.mxu0 0.0
        %667 = vmatpush2.xpose.msra.mxu0 0.0
        %668 = vmatprep.subr.mxu0 0.0
        %669 = vmatpush2.xpose.msra.mxu0 0.0
        %670 = vmatprep.subr.mxu0 0.0
        %671 = vmatpush2.xpose.msra.mxu0 0.0
        %672 = vmatprep.subr.mxu0 0.0
        %673 = vmatpush2.xpose.msra.mxu0 0.0
        %674 = vmatprep.subr.mxu0 0.0
        %675 = vmatpush2.xpose.msra.mxu0 0.0
        %676 = vmatprep.mubr.f32.mxu0 0.0
        %677 = vmatmul.mubr.f32.gmra.mxu0 %v608
        %v678 = vpop.f32.mrf.mxu0
        %v679 = vadd.f32 0.0, %v678
        %v680 = vpop.f32.mrf.mxu0
        %681 = vdwg.mxu0
        %682 = vrot.lane.b32.xlu0 %v526, 96
        %v683 = vpop.permute.xlu0 %682
        %v684 = vsel %vm531, %v526, 0
        %v686 = vsel %vm531, %v683, 0
        %688 = vmatprep.subr.mxu0 0.0
        %689 = vmatpush1.xpose.msra.mxu0 0.0
        %690 = vmatprep.subr.mxu0 0.0
        %691 = vmatpush1.xpose.msra.mxu0 0.0
        %692 = vmatprep.subr.mxu0 0.0
        %693 = vmatpush1.xpose.msra.mxu0 0.0
        %694 = vmatprep.subr.mxu0 0.0
        %695 = vmatpush1.xpose.msra.mxu0 0.0
        %696 = vmatprep.subr.mxu0 0.0
        %697 = vmatpush1.xpose.msra.mxu0 0.0
        %698 = vmatprep.subr.mxu0 0.0
        %699 = vmatpush1.xpose.msra.mxu0 0.0
        %700 = vmatprep.subr.mxu0 0.0
        %701 = vmatpush1.xpose.msra.mxu0 0.0
        %702 = vmatprep.subr.mxu0 0.0
        %703 = vmatpush1.xpose.msra.mxu0 0.0
        %704 = vmatprep.subr.mxu0 0.0
        %705 = vmatpush1.xpose.msra.mxu0 0.0
        %706 = vmatprep.subr.mxu0 0.0
        %707 = vmatpush1.xpose.msra.mxu0 0.0
        %708 = vmatprep.subr.mxu0 0.0
        %709 = vmatpush1.xpose.msra.mxu0 0.0
        %710 = vmatprep.subr.mxu0 0.0
        %711 = vmatpush1.xpose.msra.mxu0 0.0
        %712 = vmatprep.subr.mxu0 0.0
        %713 = vmatpush1.xpose.msra.mxu0 0.0
        %714 = vmatprep.subr.mxu0 0.0
        %715 = vmatpush1.xpose.msra.mxu0 0.0
        %716 = vmatprep.subr.mxu0 0.0
        %717 = vmatpush1.xpose.msra.mxu0 0.0
        %718 = vmatprep.subr.mxu0 0.0
        %719 = vmatpush1.xpose.msra.mxu0 %v686
        %720 = vmatprep.subr.mxu0 0.0
        %721 = vmatpush2.xpose.msra.mxu0 0.0
        %722 = vmatprep.subr.mxu0 0.0
        %723 = vmatpush2.xpose.msra.mxu0 0.0
        %724 = vmatprep.subr.mxu0 0.0
        %725 = vmatpush2.xpose.msra.mxu0 0.0
        %726 = vmatprep.subr.mxu0 0.0
        %727 = vmatpush2.xpose.msra.mxu0 0.0
        %728 = vmatprep.subr.mxu0 0.0
        %729 = vmatpush2.xpose.msra.mxu0 0.0
        %730 = vmatprep.subr.mxu0 0.0
        %731 = vmatpush2.xpose.msra.mxu0 0.0
        %732 = vmatprep.subr.mxu0 0.0
        %733 = vmatpush2.xpose.msra.mxu0 0.0
        %734 = vmatprep.subr.mxu0 0.0
        %735 = vmatpush2.xpose.msra.mxu0 0.0
        %736 = vmatprep.subr.mxu0 0.0
        %737 = vmatpush2.xpose.msra.mxu0 0.0
        %738 = vmatprep.subr.mxu0 0.0
        %739 = vmatpush2.xpose.msra.mxu0 0.0
        %740 = vmatprep.subr.mxu0 0.0
        %741 = vmatpush2.xpose.msra.mxu0 0.0
        %742 = vmatprep.subr.mxu0 0.0
        %743 = vmatpush2.xpose.msra.mxu0 0.0
        %744 = vmatprep.subr.mxu0 0.0
        %745 = vmatpush2.xpose.msra.mxu0 0.0
        %746 = vmatprep.subr.mxu0 0.0
        %747 = vmatpush2.xpose.msra.mxu0 0.0
        %748 = vmatprep.subr.mxu0 0.0
        %749 = vmatpush2.xpose.msra.mxu0 0.0
        %750 = vmatprep.subr.mxu0 0.0
        %751 = vmatpush2.xpose.msra.mxu0 0.0
        %752 = vmatprep.mubr.f32.mxu0 0.0
        %753 = vmatmul.mubr.f32.gmra.mxu0 %v684
        %v754 = vpop.f32.mrf.mxu0
        %v755 = vadd.f32 0.0, %v754
        %v756 = vpop.f32.mrf.mxu0
        %757 = vdwg.mxu0
        %758 = vrot.lane.b32.xlu0 %v528, 96
        %v759 = vpop.permute.xlu0 %758
        %v760 = vsel %vm531, %v528, 0
        %v762 = vsel %vm531, %v759, 0
        %764 = vmatprep.subr.mxu0 0.0
        %765 = vmatpush1.xpose.msra.mxu0 0.0
        %766 = vmatprep.subr.mxu0 0.0
        %767 = vmatpush1.xpose.msra.mxu0 0.0
        %768 = vmatprep.subr.mxu0 0.0
        %769 = vmatpush1.xpose.msra.mxu0 0.0
        %770 = vmatprep.subr.mxu0 0.0
        %771 = vmatpush1.xpose.msra.mxu0 0.0
        %772 = vmatprep.subr.mxu0 0.0
        %773 = vmatpush1.xpose.msra.mxu0 0.0
        %774 = vmatprep.subr.mxu0 0.0
        %775 = vmatpush1.xpose.msra.mxu0 0.0
        %776 = vmatprep.subr.mxu0 0.0
        %777 = vmatpush1.xpose.msra.mxu0 0.0
        %778 = vmatprep.subr.mxu0 0.0
        %779 = vmatpush1.xpose.msra.mxu0 0.0
        %780 = vmatprep.subr.mxu0 0.0
        %781 = vmatpush1.xpose.msra.mxu0 0.0
        %782 = vmatprep.subr.mxu0 0.0
        %783 = vmatpush1.xpose.msra.mxu0 0.0
        %784 = vmatprep.subr.mxu0 0.0
        %785 = vmatpush1.xpose.msra.mxu0 0.0
        %786 = vmatprep.subr.mxu0 0.0
        %787 = vmatpush1.xpose.msra.mxu0 0.0
        %788 = vmatprep.subr.mxu0 0.0
        %789 = vmatpush1.xpose.msra.mxu0 0.0
        %790 = vmatprep.subr.mxu0 0.0
        %791 = vmatpush1.xpose.msra.mxu0 0.0
        %792 = vmatprep.subr.mxu0 0.0
        %793 = vmatpush1.xpose.msra.mxu0 0.0
        %794 = vmatprep.subr.mxu0 0.0
        %795 = vmatpush1.xpose.msra.mxu0 %v762
        %796 = vmatprep.subr.mxu0 0.0
        %797 = vmatpush2.xpose.msra.mxu0 0.0
        %798 = vmatprep.subr.mxu0 0.0
        %799 = vmatpush2.xpose.msra.mxu0 0.0
        %800 = vmatprep.subr.mxu0 0.0
        %801 = vmatpush2.xpose.msra.mxu0 0.0
        %802 = vmatprep.subr.mxu0 0.0
        %803 = vmatpush2.xpose.msra.mxu0 0.0
        %804 = vmatprep.subr.mxu0 0.0
        %805 = vmatpush2.xpose.msra.mxu0 0.0
        %806 = vmatprep.subr.mxu0 0.0
        %807 = vmatpush2.xpose.msra.mxu0 0.0
        %808 = vmatprep.subr.mxu0 0.0
        %809 = vmatpush2.xpose.msra.mxu0 0.0
        %810 = vmatprep.subr.mxu0 0.0
        %811 = vmatpush2.xpose.msra.mxu0 0.0
        %812 = vmatprep.subr.mxu0 0.0
        %813 = vmatpush2.xpose.msra.mxu0 0.0
        %814 = vmatprep.subr.mxu0 0.0
        %815 = vmatpush2.xpose.msra.mxu0 0.0
        %816 = vmatprep.subr.mxu0 0.0
        %817 = vmatpush2.xpose.msra.mxu0 0.0
        %818 = vmatprep.subr.mxu0 0.0
        %819 = vmatpush2.xpose.msra.mxu0 0.0
        %820 = vmatprep.subr.mxu0 0.0
        %821 = vmatpush2.xpose.msra.mxu0 0.0
        %822 = vmatprep.subr.mxu0 0.0
        %823 = vmatpush2.xpose.msra.mxu0 0.0
        %824 = vmatprep.subr.mxu0 0.0
        %825 = vmatpush2.xpose.msra.mxu0 0.0
        %826 = vmatprep.subr.mxu0 0.0
        %827 = vmatpush2.xpose.msra.mxu0 0.0
        %828 = vmatprep.mubr.f32.mxu0 0.0
        %829 = vmatmul.mubr.f32.gmra.mxu0 %v760
        %v830 = vpop.f32.mrf.mxu0
        %v831 = vadd.f32 0.0, %v830
        %v832 = vpop.f32.mrf.mxu0
        %833 = vdwg.mxu0
        %v834 = vsel %vm531, %v603, -inf
        %835 = vmax.xlane.f32.xlu0 %v834
        %v836 = vpop.xlane.xlu0 %835
        %v837 = vsel %vm531, %v679, -inf
        %838 = vmax.xlane.f32.xlu0 %v837
        %v839 = vpop.xlane.xlu0 %838
        %v840 = vsel %vm531, %v755, -inf
        %841 = vmax.xlane.f32.xlu0 %v840
        %v842 = vpop.xlane.xlu0 %841
        %v843 = vsel %vm531, %v831, -inf
        %844 = vmax.xlane.f32.xlu0 %v843
        %v845 = vpop.xlane.xlu0 %844
        %v846 = vsub.f32 -inf, %v836
        %v847 = vsub.f32 -inf, %v839
        %v848 = vsub.f32 -inf, %v842
        %v849 = vsub.f32 -inf, %v845
        %v850 = vmul.f32 %v846, 1.442695
        %v851 = vpow.pop %v850
        %v852 = vmul.f32 %v847, 1.442695
        %v853 = vpow.pop %v852
        %v854 = vmul.f32 %v848, 1.442695
        %v855 = vpow.pop %v854
        %v856 = vmul.f32 %v849, 1.442695
        %v857 = vpow.pop %v856
        %v858 = vsub.f32 %v603, %v836
        %v859 = vsub.f32 %v679, %v839
        %v860 = vsub.f32 %v755, %v842
        %v861 = vsub.f32 %v831, %v845
        %v862 = vmul.f32 %v858, 1.442695
        %v863 = vpow.pop %v862
        %v864 = vmul.f32 %v859, 1.442695
        %v865 = vpow.pop %v864
        %v866 = vmul.f32 %v860, 1.442695
        %v867 = vpow.pop %v866
        %v868 = vmul.f32 %v861, 1.442695
        %v869 = vpow.pop %v868
        %v870 = vmul.f32 %v851, 0.0
        %v871 = vmul.f32 %v853, 0.0
        %v872 = vmul.f32 %v855, 0.0
        %v873 = vmul.f32 %v857, 0.0
        %v874 = vsel %vm531, %v863, 0.0
        %875 = vadd.xlane.f32.xlu0 %v874
        %v876 = vpop.xlane.xlu0 %875
        %v877 = vsel %vm531, %v865, 0.0
        %878 = vadd.xlane.f32.xlu0 %v877
        %v879 = vpop.xlane.xlu0 %878
        %v880 = vsel %vm531, %v867, 0.0
        %881 = vadd.xlane.f32.xlu0 %v880
        %v882 = vpop.xlane.xlu0 %881
        %v883 = vsel %vm531, %v869, 0.0
        %884 = vadd.xlane.f32.xlu0 %v883
        %v885 = vpop.xlane.xlu0 %884
        %v886 = vadd.f32 %v870, %v876
        %v887 = vadd.f32 %v871, %v879
        %v888 = vadd.f32 %v872, %v882
        %v889 = vadd.f32 %v873, %v885
        %890 = vrot.lane.b32.xlu0 %v519, 64
        %v891 = vpop.permute.xlu0 %890
        %v894 = vsel %vm531, %v863, 0
        %896 = vmatprep.subr.mxu0 0.0
        %897 = vmatpush1.msra.mxu0 0.0
        %898 = vmatprep.subr.mxu0 0.0
        %899 = vmatpush1.msra.mxu0 0.0
        %900 = vmatprep.subr.mxu0 0.0
        %901 = vmatpush1.msra.mxu0 0.0
        %902 = vmatprep.subr.mxu0 0.0
        %903 = vmatpush1.msra.mxu0 0.0
        %904 = vmatprep.subr.mxu0 0.0
        %905 = vmatpush1.msra.mxu0 0.0
        %906 = vmatprep.subr.mxu0 0.0
        %907 = vmatpush1.msra.mxu0 0.0
        %908 = vmatprep.subr.mxu0 0.0
        %909 = vmatpush1.msra.mxu0 0.0
        %910 = vmatprep.subr.mxu0 0.0
        %911 = vmatpush1.msra.mxu0 0.0
        %912 = vmatprep.subr.mxu0 0.0
        %913 = vmatpush1.msra.mxu0 0.0
        %914 = vmatprep.subr.mxu0 0.0
        %915 = vmatpush1.msra.mxu0 0.0
        %916 = vmatprep.subr.mxu0 0.0
        %917 = vmatpush1.msra.mxu0 0.0
        %918 = vmatprep.subr.mxu0 0.0
        %919 = vmatpush1.msra.mxu0 0.0
        %920 = vmatprep.subr.mxu0 0.0
        %921 = vmatpush1.msra.mxu0 0.0
        %922 = vmatprep.subr.mxu0 0.0
        %923 = vmatpush1.msra.mxu0 0.0
        %924 = vmatprep.subr.mxu0 0.0
        %925 = vmatpush1.msra.mxu0 0.0
        %926 = vmatprep.subr.mxu0 0.0
        %927 = vmatpush1.msra.mxu0 %v891
        %928 = vmatprep.subr.mxu0 0.0
        %929 = vmatpush2.msra.mxu0 0.0
        %930 = vmatprep.subr.mxu0 0.0
        %931 = vmatpush2.msra.mxu0 0.0
        %932 = vmatprep.subr.mxu0 0.0
        %933 = vmatpush2.msra.mxu0 0.0
        %934 = vmatprep.subr.mxu0 0.0
        %935 = vmatpush2.msra.mxu0 0.0
        %936 = vmatprep.subr.mxu0 0.0
        %937 = vmatpush2.msra.mxu0 0.0
        %938 = vmatprep.subr.mxu0 0.0
        %939 = vmatpush2.msra.mxu0 0.0
        %940 = vmatprep.subr.mxu0 0.0
        %941 = vmatpush2.msra.mxu0 0.0
        %942 = vmatprep.subr.mxu0 0.0
        %943 = vmatpush2.msra.mxu0 0.0
        %944 = vmatprep.subr.mxu0 0.0
        %945 = vmatpush2.msra.mxu0 0.0
        %946 = vmatprep.subr.mxu0 0.0
        %947 = vmatpush2.msra.mxu0 0.0
        %948 = vmatprep.subr.mxu0 0.0
        %949 = vmatpush2.msra.mxu0 0.0
        %950 = vmatprep.subr.mxu0 0.0
        %951 = vmatpush2.msra.mxu0 0.0
        %952 = vmatprep.subr.mxu0 0.0
        %953 = vmatpush2.msra.mxu0 0.0
        %954 = vmatprep.subr.mxu0 0.0
        %955 = vmatpush2.msra.mxu0 0.0
        %956 = vmatprep.subr.mxu0 0.0
        %957 = vmatpush2.msra.mxu0 0.0
        %958 = vmatprep.subr.mxu0 0.0
        %959 = vmatpush2.msra.mxu0 0.0
        %960 = vmatprep.mubr.f32.mxu0 0.0
        %961 = vmatmul.mubr.f32.gmra.mxu0 %v894
        %v962 = vpop.f32.mrf.mxu0
        %v963 = vadd.f32 0.0, %v962
        %v964 = vpop.f32.mrf.mxu0
        %965 = vdwg.mxu0
        %966 = vrot.lane.b32.xlu0 %v524, 64
        %v967 = vpop.permute.xlu0 %966
        %v970 = vsel %vm531, %v865, 0
        %972 = vmatprep.subr.mxu0 0.0
        %973 = vmatpush1.msra.mxu0 0.0
        %974 = vmatprep.subr.mxu0 0.0
        %975 = vmatpush1.msra.mxu0 0.0
        %976 = vmatprep.subr.mxu0 0.0
        %977 = vmatpush1.msra.mxu0 0.0
        %978 = vmatprep.subr.mxu0 0.0
        %979 = vmatpush1.msra.mxu0 0.0
        %980 = vmatprep.subr.mxu0 0.0
        %981 = vmatpush1.msra.mxu0 0.0
        %982 = vmatprep.subr.mxu0 0.0
        %983 = vmatpush1.msra.mxu0 0.0
        %984 = vmatprep.subr.mxu0 0.0
        %985 = vmatpush1.msra.mxu0 0.0
        %986 = vmatprep.subr.mxu0 0.0
        %987 = vmatpush1.msra.mxu0 0.0
        %988 = vmatprep.subr.mxu0 0.0
        %989 = vmatpush1.msra.mxu0 0.0
        %990 = vmatprep.subr.mxu0 0.0
        %991 = vmatpush1.msra.mxu0 0.0
        %992 = vmatprep.subr.mxu0 0.0
        %993 = vmatpush1.msra.mxu0 0.0
        %994 = vmatprep.subr.mxu0 0.0
        %995 = vmatpush1.msra.mxu0 0.0
        %996 = vmatprep.subr.mxu0 0.0
        %997 = vmatpush1.msra.mxu0 0.0
        %998 = vmatprep.subr.mxu0 0.0
        %999 = vmatpush1.msra.mxu0 0.0
        %1000 = vmatprep.subr.mxu0 0.0
        %1001 = vmatpush1.msra.mxu0 0.0
        %1002 = vmatprep.subr.mxu0 0.0
        %1003 = vmatpush1.msra.mxu0 %v967
        %1004 = vmatprep.subr.mxu0 0.0
        %1005 = vmatpush2.msra.mxu0 0.0
        %1006 = vmatprep.subr.mxu0 0.0
        %1007 = vmatpush2.msra.mxu0 0.0
        %1008 = vmatprep.subr.mxu0 0.0
        %1009 = vmatpush2.msra.mxu0 0.0
        %1010 = vmatprep.subr.mxu0 0.0
        %1011 = vmatpush2.msra.mxu0 0.0
        %1012 = vmatprep.subr.mxu0 0.0
        %1013 = vmatpush2.msra.mxu0 0.0
        %1014 = vmatprep.subr.mxu0 0.0
        %1015 = vmatpush2.msra.mxu0 0.0
        %1016 = vmatprep.subr.mxu0 0.0
        %1017 = vmatpush2.msra.mxu0 0.0
        %1018 = vmatprep.subr.mxu0 0.0
        %1019 = vmatpush2.msra.mxu0 0.0
        %1020 = vmatprep.subr.mxu0 0.0
        %1021 = vmatpush2.msra.mxu0 0.0
        %1022 = vmatprep.subr.mxu0 0.0
        %1023 = vmatpush2.msra.mxu0 0.0
        %1024 = vmatprep.subr.mxu0 0.0
        %1025 = vmatpush2.msra.mxu0 0.0
        %1026 = vmatprep.subr.mxu0 0.0
        %1027 = vmatpush2.msra.mxu0 0.0
        %1028 = vmatprep.subr.mxu0 0.0
        %1029 = vmatpush2.msra.mxu0 0.0
        %1030 = vmatprep.subr.mxu0 0.0
        %1031 = vmatpush2.msra.mxu0 0.0
        %1032 = vmatprep.subr.mxu0 0.0
        %1033 = vmatpush2.msra.mxu0 0.0
        %1034 = vmatprep.subr.mxu0 0.0
        %1035 = vmatpush2.msra.mxu0 0.0
        %1036 = vmatprep.mubr.f32.mxu0 0.0
        %1037 = vmatmul.mubr.f32.gmra.mxu0 %v970
        %v1038 = vpop.f32.mrf.mxu0
        %v1039 = vadd.f32 0.0, %v1038
        %v1040 = vpop.f32.mrf.mxu0
        %1041 = vdwg.mxu0
        %1042 = vrot.lane.b32.xlu0 %v526, 64
        %v1043 = vpop.permute.xlu0 %1042
        %v1046 = vsel %vm531, %v867, 0
        %1048 = vmatprep.subr.mxu0 0.0
        %1049 = vmatpush1.msra.mxu0 0.0
        %1050 = vmatprep.subr.mxu0 0.0
        %1051 = vmatpush1.msra.mxu0 0.0
        %1052 = vmatprep.subr.mxu0 0.0
        %1053 = vmatpush1.msra.mxu0 0.0
        %1054 = vmatprep.subr.mxu0 0.0
        %1055 = vmatpush1.msra.mxu0 0.0
        %1056 = vmatprep.subr.mxu0 0.0
        %1057 = vmatpush1.msra.mxu0 0.0
        %1058 = vmatprep.subr.mxu0 0.0
        %1059 = vmatpush1.msra.mxu0 0.0
        %1060 = vmatprep.subr.mxu0 0.0
        %1061 = vmatpush1.msra.mxu0 0.0
        %1062 = vmatprep.subr.mxu0 0.0
        %1063 = vmatpush1.msra.mxu0 0.0
        %1064 = vmatprep.subr.mxu0 0.0
        %1065 = vmatpush1.msra.mxu0 0.0
        %1066 = vmatprep.subr.mxu0 0.0
        %1067 = vmatpush1.msra.mxu0 0.0
        %1068 = vmatprep.subr.mxu0 0.0
        %1069 = vmatpush1.msra.mxu0 0.0
        %1070 = vmatprep.subr.mxu0 0.0
        %1071 = vmatpush1.msra.mxu0 0.0
        %1072 = vmatprep.subr.mxu0 0.0
        %1073 = vmatpush1.msra.mxu0 0.0
        %1074 = vmatprep.subr.mxu0 0.0
        %1075 = vmatpush1.msra.mxu0 0.0
        %1076 = vmatprep.subr.mxu0 0.0
        %1077 = vmatpush1.msra.mxu0 0.0
        %1078 = vmatprep.subr.mxu0 0.0
        %1079 = vmatpush1.msra.mxu0 %v1043
        %1080 = vmatprep.subr.mxu0 0.0
        %1081 = vmatpush2.msra.mxu0 0.0
        %1082 = vmatprep.subr.mxu0 0.0
        %1083 = vmatpush2.msra.mxu0 0.0
        %1084 = vmatprep.subr.mxu0 0.0
        %1085 = vmatpush2.msra.mxu0 0.0
        %1086 = vmatprep.subr.mxu0 0.0
        %1087 = vmatpush2.msra.mxu0 0.0
        %1088 = vmatprep.subr.mxu0 0.0
        %1089 = vmatpush2.msra.mxu0 0.0
        %1090 = vmatprep.subr.mxu0 0.0
        %1091 = vmatpush2.msra.mxu0 0.0
        %1092 = vmatprep.subr.mxu0 0.0
        %1093 = vmatpush2.msra.mxu0 0.0
        %1094 = vmatprep.subr.mxu0 0.0
        %1095 = vmatpush2.msra.mxu0 0.0
        %1096 = vmatprep.subr.mxu0 0.0
        %1097 = vmatpush2.msra.mxu0 0.0
        %1098 = vmatprep.subr.mxu0 0.0
        %1099 = vmatpush2.msra.mxu0 0.0
        %1100 = vmatprep.subr.mxu0 0.0
        %1101 = vmatpush2.msra.mxu0 0.0
        %1102 = vmatprep.subr.mxu0 0.0
        %1103 = vmatpush2.msra.mxu0 0.0
        %1104 = vmatprep.subr.mxu0 0.0
        %1105 = vmatpush2.msra.mxu0 0.0
        %1106 = vmatprep.subr.mxu0 0.0
        %1107 = vmatpush2.msra.mxu0 0.0
        %1108 = vmatprep.subr.mxu0 0.0
        %1109 = vmatpush2.msra.mxu0 0.0
        %1110 = vmatprep.subr.mxu0 0.0
        %1111 = vmatpush2.msra.mxu0 0.0
        %1112 = vmatprep.mubr.f32.mxu0 0.0
        %1113 = vmatmul.mubr.f32.gmra.mxu0 %v1046
        %v1114 = vpop.f32.mrf.mxu0
        %v1115 = vadd.f32 0.0, %v1114
        %v1116 = vpop.f32.mrf.mxu0
        %1117 = vdwg.mxu0
        %1118 = vrot.lane.b32.xlu0 %v528, 64
        %v1119 = vpop.permute.xlu0 %1118
        %v1122 = vsel %vm531, %v869, 0
        %1124 = vmatprep.subr.mxu0 0.0
        %1125 = vmatpush1.msra.mxu0 0.0
        %1126 = vmatprep.subr.mxu0 0.0
        %1127 = vmatpush1.msra.mxu0 0.0
        %1128 = vmatprep.subr.mxu0 0.0
        %1129 = vmatpush1.msra.mxu0 0.0
        %1130 = vmatprep.subr.mxu0 0.0
        %1131 = vmatpush1.msra.mxu0 0.0
        %1132 = vmatprep.subr.mxu0 0.0
        %1133 = vmatpush1.msra.mxu0 0.0
        %1134 = vmatprep.subr.mxu0 0.0
        %1135 = vmatpush1.msra.mxu0 0.0
        %1136 = vmatprep.subr.mxu0 0.0
        %1137 = vmatpush1.msra.mxu0 0.0
        %1138 = vmatprep.subr.mxu0 0.0
        %1139 = vmatpush1.msra.mxu0 0.0
        %1140 = vmatprep.subr.mxu0 0.0
        %1141 = vmatpush1.msra.mxu0 0.0
        %1142 = vmatprep.subr.mxu0 0.0
        %1143 = vmatpush1.msra.mxu0 0.0
        %1144 = vmatprep.subr.mxu0 0.0
        %1145 = vmatpush1.msra.mxu0 0.0
        %1146 = vmatprep.subr.mxu0 0.0
        %1147 = vmatpush1.msra.mxu0 0.0
        %1148 = vmatprep.subr.mxu0 0.0
        %1149 = vmatpush1.msra.mxu0 0.0
        %1150 = vmatprep.subr.mxu0 0.0
        %1151 = vmatpush1.msra.mxu0 0.0
        %1152 = vmatprep.subr.mxu0 0.0
        %1153 = vmatpush1.msra.mxu0 0.0
        %1154 = vmatprep.subr.mxu0 0.0
        %1155 = vmatpush1.msra.mxu0 %v1119
        %1156 = vmatprep.subr.mxu0 0.0
        %1157 = vmatpush2.msra.mxu0 0.0
        %1158 = vmatprep.subr.mxu0 0.0
        %1159 = vmatpush2.msra.mxu0 0.0
        %1160 = vmatprep.subr.mxu0 0.0
        %1161 = vmatpush2.msra.mxu0 0.0
        %1162 = vmatprep.subr.mxu0 0.0
        %1163 = vmatpush2.msra.mxu0 0.0
        %1164 = vmatprep.subr.mxu0 0.0
        %1165 = vmatpush2.msra.mxu0 0.0
        %1166 = vmatprep.subr.mxu0 0.0
        %1167 = vmatpush2.msra.mxu0 0.0
        %1168 = vmatprep.subr.mxu0 0.0
        %1169 = vmatpush2.msra.mxu0 0.0
        %1170 = vmatprep.subr.mxu0 0.0
        %1171 = vmatpush2.msra.mxu0 0.0
        %1172 = vmatprep.subr.mxu0 0.0
        %1173 = vmatpush2.msra.mxu0 0.0
        %1174 = vmatprep.subr.mxu0 0.0
        %1175 = vmatpush2.msra.mxu0 0.0
        %1176 = vmatprep.subr.mxu0 0.0
        %1177 = vmatpush2.msra.mxu0 0.0
        %1178 = vmatprep.subr.mxu0 0.0
        %1179 = vmatpush2.msra.mxu0 0.0
        %1180 = vmatprep.subr.mxu0 0.0
        %1181 = vmatpush2.msra.mxu0 0.0
        %1182 = vmatprep.subr.mxu0 0.0
        %1183 = vmatpush2.msra.mxu0 0.0
        %1184 = vmatprep.subr.mxu0 0.0
        %1185 = vmatpush2.msra.mxu0 0.0
        %1186 = vmatprep.subr.mxu0 0.0
        %1187 = vmatpush2.msra.mxu0 0.0
        %1188 = vmatprep.mubr.f32.mxu0 0.0
        %1189 = vmatmul.mubr.f32.gmra.mxu0 %v1122
        %v1190 = vpop.f32.mrf.mxu0
        %v1191 = vadd.f32 0.0, %v1190
        %v1192 = vpop.f32.mrf.mxu0
        %1193 = vdwg.mxu0
        %v1194 = vadd.f32 %v870, %v963
        %v1195 = vadd.f32 %v871, %v1039
        %v1196 = vadd.f32 %v872, %v1115
        %v1197 = vadd.f32 %v873, %v1191
        %v1198 = vrcp.pop %v886
        %v1199 = vrcp.pop %v887
        %v1200 = vrcp.pop %v888
        %v1201 = vrcp.pop %v889
        %v1202 = vmul.f32 %v1194, %v1198
        %v1203 = vmul.f32 %v1195, %v1199
        %v1204 = vmul.f32 %v1196, %v1200
        %v1205 = vmul.f32 %v1197, %v1201
        %1207 = vrot.lane.b32.xlu0 %v1203, 8
        %v1208 = vpop.permute.xlu0 %1207
        %1211 = vrot.lane.b32.xlu0 %v1204, 16
        %v1212 = vpop.permute.xlu0 %1211
        %1215 = vrot.lane.b32.xlu0 %v1205, 24
        %v1216 = vpop.permute.xlu0 %1215
        %v1218 = vsel %vm531, %v1202, %v1208
        %vm1219 = vcmask 130048
        %v1220 = vsel %vm1219, %v1218, %v1212
        %vm1221 = vcmask 195584
        %v1222 = vsel %vm1221, %v1220, %v1216
        %v1223 = vld [vmem:[%s3] sm:$0xff]
        %v1224 = vld [vmem:[%s3 + $0x8] sm:$0xff]
        %v1225 = vld [vmem:[%s3 + $0x10] sm:$0xff]
        %v1226 = vld [vmem:[%s3 + $0x18] sm:$0xff]
        %v1227 = vld [vmem:[%s4] sm:$0x1]
        %v1229 = vlaneseq
        %v1230 = vshrl.u32 %v1229, 7
        %v1231 = vsub.s32 0, %v1230
        %v1232 = vrot.slane %v1227, %v1231
        %v1235 = vsel %vm448, %v1222, 0
        %1237 = vmatprep.subr.mxu0 0.0
        %1238 = vmatpush1.msra.mxu0 0.0
        %1239 = vmatprep.subr.mxu0 0.0
        %1240 = vmatpush1.msra.mxu0 0.0
        %1241 = vmatprep.subr.mxu0 0.0
        %1242 = vmatpush1.msra.mxu0 0.0
        %1243 = vmatprep.subr.mxu0 0.0
        %1244 = vmatpush1.msra.mxu0 0.0
        %1245 = vmatprep.subr.mxu0 0.0
        %1246 = vmatpush1.msra.mxu0 0.0
        %1247 = vmatprep.subr.mxu0 0.0
        %1248 = vmatpush1.msra.mxu0 0.0
        %1249 = vmatprep.subr.mxu0 0.0
        %1250 = vmatpush1.msra.mxu0 0.0
        %1251 = vmatprep.subr.mxu0 0.0
        %1252 = vmatpush1.msra.mxu0 0.0
        %1253 = vmatprep.subr.mxu0 0.0
        %1254 = vmatpush1.msra.mxu0 0.0
        %1255 = vmatprep.subr.mxu0 0.0
        %1256 = vmatpush1.msra.mxu0 0.0
        %1257 = vmatprep.subr.mxu0 0.0
        %1258 = vmatpush1.msra.mxu0 0.0
        %1259 = vmatprep.subr.mxu0 0.0
        %1260 = vmatpush1.msra.mxu0 0.0
        %1261 = vmatprep.subr.mxu0 0.0
        %1262 = vmatpush1.msra.mxu0 %v1226
        %1263 = vmatprep.subr.mxu0 0.0
        %1264 = vmatpush1.msra.mxu0 %v1225
        %1265 = vmatprep.subr.mxu0 0.0
        %1266 = vmatpush1.msra.mxu0 %v1224
        %1267 = vmatprep.subr.mxu0 0.0
        %1268 = vmatpush1.msra.mxu0 %v1223
        %1269 = vmatprep.subr.mxu0 0.0
        %1270 = vmatpush2.msra.mxu0 0.0
        %1271 = vmatprep.subr.mxu0 0.0
        %1272 = vmatpush2.msra.mxu0 0.0
        %1273 = vmatprep.subr.mxu0 0.0
        %1274 = vmatpush2.msra.mxu0 0.0
        %1275 = vmatprep.subr.mxu0 0.0
        %1276 = vmatpush2.msra.mxu0 0.0
        %1277 = vmatprep.subr.mxu0 0.0
        %1278 = vmatpush2.msra.mxu0 0.0
        %1279 = vmatprep.subr.mxu0 0.0
        %1280 = vmatpush2.msra.mxu0 0.0
        %1281 = vmatprep.subr.mxu0 0.0
        %1282 = vmatpush2.msra.mxu0 0.0
        %1283 = vmatprep.subr.mxu0 0.0
        %1284 = vmatpush2.msra.mxu0 0.0
        %1285 = vmatprep.subr.mxu0 0.0
        %1286 = vmatpush2.msra.mxu0 0.0
        %1287 = vmatprep.subr.mxu0 0.0
        %1288 = vmatpush2.msra.mxu0 0.0
        %1289 = vmatprep.subr.mxu0 0.0
        %1290 = vmatpush2.msra.mxu0 0.0
        %1291 = vmatprep.subr.mxu0 0.0
        %1292 = vmatpush2.msra.mxu0 0.0
        %1293 = vmatprep.subr.mxu0 0.0
        %1294 = vmatpush2.msra.mxu0 0.0
        %1295 = vmatprep.subr.mxu0 0.0
        %1296 = vmatpush2.msra.mxu0 0.0
        %1297 = vmatprep.subr.mxu0 0.0
        %1298 = vmatpush2.msra.mxu0 0.0
        %1299 = vmatprep.subr.mxu0 0.0
        %1300 = vmatpush2.msra.mxu0 0.0
        %1301 = vmatprep.mubr.f32.mxu0 0.0
        %1302 = vmatmul.mubr.f32.gmra.mxu0 %v1235
        %v1303 = vpop.f32.mrf.mxu0
        %v1304 = vadd.f32 %v1232, %v1303
        %v1305 = vpop.f32.mrf.mxu0
        %1306 = vdwg.mxu0
        %v1307 = vadd.f32 %v436, %v1304
        %v1308 = vld [vmem:[%s5] sm:$0x1]
        %v1309 = vld [vmem:[%s6] sm:$0x1]
        %v1310 = vsel %vm448, %v1307, 0.0
        %1311 = vadd.xlane.f32.xlu0 %v1310
        %v1312 = vpop.xlane.xlu0 %1311
        %v1313 = vrcp.pop 32.0
        %v1314 = vmul.f32 %v1312, %v1313
        %v1315 = vsub.f32 %v1307, %v1314
        %v1316 = vmul.f32 %v1315, %v1315
        %v1317 = vsel %vm448, %v1316, 0.0
        %1318 = vadd.xlane.f32.xlu0 %v1317
        %v1319 = vpop.xlane.xlu0 %1318
        %v1320 = vmul.f32 %v1319, %v1313
        %v1321 = vadd.f32 %v1320, 1e-05
        %v1322 = vrsqrt.pop %v1321
        %v1323 = vmul.f32 %v1315, %v1322
        %v1325 = vlaneseq
        %v1326 = vshrl.u32 %v1325, 7
        %v1327 = vsub.s32 0, %v1326
        %v1328 = vrot.slane %v1308, %v1327
        %v1330 = vmul.f32 %v1323, %v1328
        %v1332 = vlaneseq
        %v1333 = vshrl.u32 %v1332, 7
        %v1334 = vsub.s32 0, %v1333
        %v1335 = vrot.slane %v1309, %v1334
        %v1337 = vadd.f32 %v1330, %v1335
        %v1338 = vld [vmem:[%s7] sm:$0xff]
        %v1339 = vld [vmem:[%s7 + $0x8] sm:$0xff]
        %v1340 = vld [vmem:[%s7 + $0x10] sm:$0xff]
        %v1341 = vld [vmem:[%s7 + $0x18] sm:$0xff]
        %v1342 = vld [vmem:[%s8] sm:$0x1]
        %v1344 = vlaneseq
        %v1345 = vshrl.u32 %v1344, 7
        %v1346 = vsub.s32 0, %v1345
        %v1347 = vrot.slane %v1342, %v1346
        %v1350 = vsel %vm448, %v1337, 0
        %1352 = vmatprep.subr.mxu0 0.0
        %1353 = vmatpush1.msra.mxu0 0.0
        %1354 = vmatprep.subr.mxu0 0.0
        %1355 = vmatpush1.msra.mxu0 0.0
        %1356 = vmatprep.subr.mxu0 0.0
        %1357 = vmatpush1.msra.mxu0 0.0
        %1358 = vmatprep.subr.mxu0 0.0
        %1359 = vmatpush1.msra.mxu0 0.0
        %1360 = vmatprep.subr.mxu0 0.0
        %1361 = vmatpush1.msra.mxu0 0.0
        %1362 = vmatprep.subr.mxu0 0.0
        %1363 = vmatpush1.msra.mxu0 0.0
        %1364 = vmatprep.subr.mxu0 0.0
        %1365 = vmatpush1.msra.mxu0 0.0
        %1366 = vmatprep.subr.mxu0 0.0
        %1367 = vmatpush1.msra.mxu0 0.0
        %1368 = vmatprep.subr.mxu0 0.0
        %1369 = vmatpush1.msra.mxu0 0.0
        %1370 = vmatprep.subr.mxu0 0.0
        %1371 = vmatpush1.msra.mxu0 0.0
        %1372 = vmatprep.subr.mxu0 0.0
        %1373 = vmatpush1.msra.mxu0 0.0
        %1374 = vmatprep.subr.mxu0 0.0
        %1375 = vmatpush1.msra.mxu0 0.0
        %1376 = vmatprep.subr.mxu0 0.0
        %1377 = vmatpush1.msra.mxu0 %v1341
        %1378 = vmatprep.subr.mxu0 0.0
        %1379 = vmatpush1.msra.mxu0 %v1340
        %1380 = vmatprep.subr.mxu0 0.0
        %1381 = vmatpush1.msra.mxu0 %v1339
        %1382 = vmatprep.subr.mxu0 0.0
        %1383 = vmatpush1.msra.mxu0 %v1338
        %1384 = vmatprep.subr.mxu0 0.0
        %1385 = vmatpush2.msra.mxu0 0.0
        %1386 = vmatprep.subr.mxu0 0.0
        %1387 = vmatpush2.msra.mxu0 0.0
        %1388 = vmatprep.subr.mxu0 0.0
        %1389 = vmatpush2.msra.mxu0 0.0
        %1390 = vmatprep.subr.mxu0 0.0
        %1391 = vmatpush2.msra.mxu0 0.0
        %1392 = vmatprep.subr.mxu0 0.0
        %1393 = vmatpush2.msra.mxu0 0.0
        %1394 = vmatprep.subr.mxu0 0.0
        %1395 = vmatpush2.msra.mxu0 0.0
        %1396 = vmatprep.subr.mxu0 0.0
        %1397 = vmatpush2.msra.mxu0 0.0
        %1398 = vmatprep.subr.mxu0 0.0
        %1399 = vmatpush2.msra.mxu0 0.0
        %1400 = vmatprep.subr.mxu0 0.0
        %1401 = vmatpush2.msra.mxu0 0.0
        %1402 = vmatprep.subr.mxu0 0.0
        %1403 = vmatpush2.msra.mxu0 0.0
        %1404 = vmatprep.subr.mxu0 0.0
        %1405 = vmatpush2.msra.mxu0 0.0
        %1406 = vmatprep.subr.mxu0 0.0
        %1407 = vmatpush2.msra.mxu0 0.0
        %1408 = vmatprep.subr.mxu0 0.0
        %1409 = vmatpush2.msra.mxu0 0.0
        %1410 = vmatprep.subr.mxu0 0.0
        %1411 = vmatpush2.msra.mxu0 0.0
        %1412 = vmatprep.subr.mxu0 0.0
        %1413 = vmatpush2.msra.mxu0 0.0
        %1414 = vmatprep.subr.mxu0 0.0
        %1415 = vmatpush2.msra.mxu0 0.0
        %1416 = vmatprep.mubr.f32.mxu0 0.0
        %1417 = vmatmul.mubr.f32.gmra.mxu0 %v1350
        %v1418 = vpop.f32.mrf.mxu0
        %v1419 = vadd.f32 %v1347, %v1418
        %v1420 = vpop.f32.mrf.mxu0
        %1421 = vdwg.mxu0
        %v1422 = vxor.u32 %v1419, 2147483648
        %v1423 = vmul.f32 %v1422, 1.442695
        %v1424 = vpow.pop %v1423
        %v1425 = vadd.f32 %v1424, 1.0
        %v1426 = vrcp.pop %v1425
        %v1427 = vmul.f32 1.0, %v1426
        %v1428 = vmul.f32 %v1419, %v1427
        %v1429 = vld [vmem:[%s9] sm:$0xff]
        %v1430 = vld [vmem:[%s9 + $0x8] sm:$0xff]
        %v1431 = vld [vmem:[%s9 + $0x10] sm:$0xff]
        %v1432 = vld [vmem:[%s9 + $0x18] sm:$0xff]
        %v1433 = vld [vmem:[%s9 + $0x20] sm:$0xff]
        %v1434 = vld [vmem:[%s9 + $0x28] sm:$0xff]
        %v1435 = vld [vmem:[%s9 + $0x30] sm:$0xff]
        %v1436 = vld [vmem:[%s9 + $0x38] sm:$0xff]
        %v1437 = vld [vmem:[%s9 + $0x40] sm:$0xff]
        %v1438 = vld [vmem:[%s9 + $0x48] sm:$0xff]
        %v1439 = vld [vmem:[%s9 + $0x50] sm:$0xff]
        %v1440 = vld [vmem:[%s9 + $0x58] sm:$0xff]
        %v1441 = vld [vmem:[%s9 + $0x60] sm:$0xff]
        %v1442 = vld [vmem:[%s9 + $0x68] sm:$0xff]
        %v1443 = vld [vmem:[%s9 + $0x70] sm:$0xff]
        %v1444 = vld [vmem:[%s9 + $0x78] sm:$0xff]
        %v1445 = vld [vmem:[%s10] sm:$0x1]
        %v1447 = vlaneseq
        %v1448 = vshrl.u32 %v1447, 7
        %v1449 = vsub.s32 0, %v1448
        %v1450 = vrot.slane %v1445, %v1449
        %1452 = vmatprep.subr.mxu0 0.0
        %1453 = vmatpush1.msra.mxu0 %v1444
        %1454 = vmatprep.subr.mxu0 0.0
        %1455 = vmatpush1.msra.mxu0 %v1443
        %1456 = vmatprep.subr.mxu0 0.0
        %1457 = vmatpush1.msra.mxu0 %v1442
        %1458 = vmatprep.subr.mxu0 0.0
        %1459 = vmatpush1.msra.mxu0 %v1441
        %1460 = vmatprep.subr.mxu0 0.0
        %1461 = vmatpush1.msra.mxu0 %v1440
        %1462 = vmatprep.subr.mxu0 0.0
        %1463 = vmatpush1.msra.mxu0 %v1439
        %1464 = vmatprep.subr.mxu0 0.0
        %1465 = vmatpush1.msra.mxu0 %v1438
        %1466 = vmatprep.subr.mxu0 0.0
        %1467 = vmatpush1.msra.mxu0 %v1437
        %1468 = vmatprep.subr.mxu0 0.0
        %1469 = vmatpush1.msra.mxu0 %v1436
        %1470 = vmatprep.subr.mxu0 0.0
        %1471 = vmatpush1.msra.mxu0 %v1435
        %1472 = vmatprep.subr.mxu0 0.0
        %1473 = vmatpush1.msra.mxu0 %v1434
        %1474 = vmatprep.subr.mxu0 0.0
        %1475 = vmatpush1.msra.mxu0 %v1433
        %1476 = vmatprep.subr.mxu0 0.0
        %1477 = vmatpush1.msra.mxu0 %v1432
        %1478 = vmatprep.subr.mxu0 0.0
        %1479 = vmatpush1.msra.mxu0 %v1431
        %1480 = vmatprep.subr.mxu0 0.0
        %1481 = vmatpush1.msra.mxu0 %v1430
        %1482 = vmatprep.subr.mxu0 0.0
        %1483 = vmatpush1.msra.mxu0 %v1429
        %1484 = vmatprep.subr.mxu0 0.0
        %1485 = vmatpush2.msra.mxu0 0.0
        %1486 = vmatprep.subr.mxu0 0.0
        %1487 = vmatpush2.msra.mxu0 0.0
        %1488 = vmatprep.subr.mxu0 0.0
        %1489 = vmatpush2.msra.mxu0 0.0
        %1490 = vmatprep.subr.mxu0 0.0
        %1491 = vmatpush2.msra.mxu0 0.0
        %1492 = vmatprep.subr.mxu0 0.0
        %1493 = vmatpush2.msra.mxu0 0.0
        %1494 = vmatprep.subr.mxu0 0.0
        %1495 = vmatpush2.msra.mxu0 0.0
        %1496 = vmatprep.subr.mxu0 0.0
        %1497 = vmatpush2.msra.mxu0 0.0
        %1498 = vmatprep.subr.mxu0 0.0
        %1499 = vmatpush2.msra.mxu0 0.0
        %1500 = vmatprep.subr.mxu0 0.0
        %1501 = vmatpush2.msra.mxu0 0.0
        %1502 = vmatprep.subr.mxu0 0.0
        %1503 = vmatpush2.msra.mxu0 0.0
        %1504 = vmatprep.subr.mxu0 0.0
        %1505 = vmatpush2.msra.mxu0 0.0
        %1506 = vmatprep.subr.mxu0 0.0
        %1507 = vmatpush2.msra.mxu0 0.0
        %1508 = vmatprep.subr.mxu0 0.0
        %1509 = vmatpush2.msra.mxu0 0.0
        %1510 = vmatprep.subr.mxu0 0.0
        %1511 = vmatpush2.msra.mxu0 0.0
        %1512 = vmatprep.subr.mxu0 0.0
        %1513 = vmatpush2.msra.mxu0 0.0
        %1514 = vmatprep.subr.mxu0 0.0
        %1515 = vmatpush2.msra.mxu0 0.0
        %1516 = vmatprep.mubr.f32.mxu0 0.0
        %1517 = vmatmul.mubr.f32.gmra.mxu0 %v1428
        %v1518 = vpop.f32.mrf.mxu0
        %v1519 = vadd.f32 %v1450, %v1518
        %v1520 = vpop.f32.mrf.mxu0
        %1521 = vdwg.mxu0
        %v1522 = vadd.f32 %v1337, %v1519
        %v1523 = vld [vmem:[%s11] sm:$0x1]
        %v1524 = vld [vmem:[%s12] sm:$0x1]
        %v1525 = vsel %vm448, %v1522, 0.0
        %1526 = vadd.xlane.f32.xlu0 %v1525
        %v1527 = vpop.xlane.xlu0 %1526
        %v1528 = vmul.f32 %v1527, %v1313
        %v1529 = vsub.f32 %v1522, %v1528
        %v1530 = vmul.f32 %v1529, %v1529
        %v1531 = vsel %vm448, %v1530, 0.0
        %1532 = vadd.xlane.f32.xlu0 %v1531
        %v1533 = vpop.xlane.xlu0 %1532
        %v1534 = vmul.f32 %v1533, %v1313
        %v1535 = vadd.f32 %v1534, 1e-05
        %v1536 = vrsqrt.pop %v1535
        %v1537 = vmul.f32 %v1529, %v1536
        %v1539 = vlaneseq
        %v1540 = vshrl.u32 %v1539, 7
        %v1541 = vsub.s32 0, %v1540
        %v1542 = vrot.slane %v1523, %v1541
        %v1544 = vmul.f32 %v1537, %v1542
        %v1546 = vlaneseq
        %v1547 = vshrl.u32 %v1546, 7
        %v1548 = vsub.s32 0, %v1547
        %v1549 = vrot.slane %v1524, %v1548
        %v1551 = vadd.f32 %v1544, %v1549
        %1552 = vst.msk [vmem:[%s431] sm:$0xff] %vm448, %v1551
        %s1553 = sand.u32 %s313, 1
        %s1554 = scalar_lea.sflag [#allocation3], %s1553
        %s1555 = sand.u32 %s313, 1
        %s1556 = smul.addr %s1555, 8
        %s1557 = scalar_lea.vmem [#allocation2], %s1556
        // Predicated region
        $region73: #{tpu_custom_call.1} parent=71 // pred_check
          %p1558 = pneg %p323
        $region74: #{tpu_custom_call.1} parent=71 // pred_check_branch
          %1560 = sbr.rel (%p1558) target = $region76
        $region75: #{tpu_custom_call.1} parent=71 // pred_region
          %s1562 = ssub.s32 128, 128
          %1563 = vsyncadd %s1554, %s1562
          %s1564 = smul.addr %s27, 128
          %s1565 = scalar_lea.hbm %s13, %s1564
          %s1567 = sshll.u32 %s1557, 4
          %s1568 = int_to_ptr.vmem [resolvable:$true] %s1567
          %1570 = dma.vmem_to_hbm [thread:$0]  %s1568, 128, %s1565, %s1554
        $region76: #{tpu_custom_call.1} parent=71 // pred_fallthru
          _
      $region72: #{tpu_custom_call.1} parent=5 // pred_fallthru
        _
      %p1571 = scmp.le.s32.totalorder 2, %s22
      // Predicated region
      $region77: #{tpu_custom_call.1} parent=5 // pred_check
        %p1572 = pneg %p1571
      $region78: #{tpu_custom_call.1} parent=5 // pred_check_branch
        %1574 = sbr.rel (%p1572) target = $region80
      $region79: #{tpu_custom_call.1} parent=5 // pred_region
        %s1575 = ssub.s32 %s22, 2
        // Predicated region
        $region81: #{tpu_custom_call.1} parent=79 // pred_check
          %p1576 = pneg %p329
        $region82: #{tpu_custom_call.1} parent=79 // pred_check_branch
          %1578 = sbr.rel (%p1576) target = $region84
        $region83: #{tpu_custom_call.1} parent=79 // pred_region
          %s1579 = sand.u32 %s314, 1
          %s1580 = scalar_lea.sflag [#allocation3], %s1579
          %s1581 = sand.u32 %s314, 1
          %s1582 = smul.addr %s1581, 8
          %s1583 = scalar_lea.vmem [#allocation2], %s1582
          %1584 = dma.done %s1580, 128
        $region84: #{tpu_custom_call.1} parent=79 // pred_fallthru
          _
      $region80: #{tpu_custom_call.1} parent=5 // pred_fallthru
        _
    $region6: #{tpu_custom_call.1} parent=1 // loop_footer
      %s26 = sadd.s32 1, %s22
    $region7: #{tpu_custom_call.1} parent=1 // loop_footer_branch
      %21 = sbr.rel target = $region3
    $region8: #{tpu_custom_call.1} parent=1 // loop_exit
      _
    %1585 = vsyncpa [#allocation3], 1
    %s1586 = scalar_lea.sflag [#allocation3], 1
    %1587 = vsyncpa %s1586, 1

</llo_original>
